<compile_context>
chip_gen: v6e
topology: v6e:2x2x1
jax: 0.10.0
libtpu: 0.0.40
codegen_flags: <defaults>
</compile_context>

<pallas_src>
import jax
import jax.numpy as jnp
from jax.experimental import pallas as pl
from jax.experimental.pallas import tpu as pltpu


def stnkd_kernel(x_ref,
                 w1_ref, b1_ref, w2_ref, b2_ref, w3_ref, b3_ref,
                 fw1_ref, fb1_ref, fw2_ref, fb2_ref, fw3_ref, fb3_ref,
                 iden_ref, out_ref, gmax_ref):
    """Grid = (batch tiles, point chunks). One step: TB batch elems x TN points."""
    n = pl.program_id(1)
    TB, k, TN = x_ref.shape

    # x arrives in native (TB, k, TN) layout; transpose each tiny (k, TN) slab
    # in-kernel and stack -> (TB*TN, k) so the conv stack is one big-M matmul.
    xt = jnp.concatenate([x_ref[t].T for t in range(TB)], axis=0)      # (TB*TN, k) f32
    xt = xt.astype(jnp.bfloat16)

    # conv1 + bn1 + relu   (BN folded on host; act_cfg assumed ReLU)
    h = jnp.dot(xt, w1_ref[...], preferred_element_type=jnp.float32) + b1_ref[...]
    h = jnp.maximum(h, 0.0)                                            # (TB*TN, 64)

    # conv2 + bn2 + relu
    h = jnp.dot(h.astype(jnp.bfloat16), w2_ref[...],
                preferred_element_type=jnp.float32) + b2_ref[...]
    h = jnp.maximum(h, 0.0)                                            # (TB*TN, 128)

    # conv3 + bn3 (no activation before the pool -- matches the reference module)
    h = jnp.dot(h.astype(jnp.bfloat16), w3_ref[...],
                preferred_element_type=jnp.float32) + b3_ref[...]      # (TB*TN, 1024)

    # streamed max-pool over the point chunks (pool='max' path)
    # TODO(synk): 'mean' / 'ema-max' pool variants not emitted (max only).
    per_b = [jnp.max(h[t * TN:(t + 1) * TN, :], axis=0, keepdims=True)
             for t in range(TB)]
    chunk_max = jnp.concatenate(per_b, axis=0)                         # (TB, 1024)

    @pl.when(n == 0)
    def _():
        gmax_ref[...] = jnp.full_like(gmax_ref, -jnp.inf)

    gmax_ref[...] = jnp.maximum(gmax_ref[...], chunk_max)

    # FC head once per batch tile, after the last point chunk.
    @pl.when(n == pl.num_programs(1) - 1)
    def _():
        g = gmax_ref[...]                                              # (TB, 1024)

        # fc1 + bn4 + relu
        g = jnp.dot(g.astype(jnp.bfloat16), fw1_ref[...],
                    preferred_element_type=jnp.float32) + fb1_ref[...]
        g = jnp.maximum(g, 0.0)                                        # (TB, 512)

        # fc2 + bn5 + relu
        g = jnp.dot(g.astype(jnp.bfloat16), fw2_ref[...],
                    preferred_element_type=jnp.float32) + fb2_ref[...]
        g = jnp.maximum(g, 0.0)                                        # (TB, 256)

        # fc3 + flattened identity
        g = jnp.dot(g.astype(jnp.bfloat16), fw3_ref[...],
                    preferred_element_type=jnp.float32) + fb3_ref[...]
        out_ref[0] = g + iden_ref[...]                                 # (TB, k*k)


def init_params(key, k):
    """Deterministically init conv/fc weights; fold inference-mode BN; weights in bf16."""
    layer_dims = [(k, 64), (64, 128), (128, 1024),        # conv1..conv3 (+bn1..bn3)
                  (1024, 512), (512, 256), (256, k * k)]  # fc1(+bn4), fc2(+bn5), fc3
    has_bn = [True, True, True, True, True, False]
    keys = jax.random.split(key, 6 * 6).reshape(6, 6, 2)

    params = []
    for (cin, cout), bn, lk in zip(layer_dims, has_bn, keys):
        w = jax.random.normal(lk[0], (cin, cout), jnp.float32) / jnp.sqrt(float(cin))
        b = 0.01 * jax.random.normal(lk[1], (cout,), jnp.float32)
        if bn:
            gamma = 1.0 + 0.1 * jax.random.normal(lk[2], (cout,), jnp.float32)
            beta = 0.1 * jax.random.normal(lk[3], (cout,), jnp.float32)
            mean = 0.05 * jax.random.normal(lk[4], (cout,), jnp.float32)
            var = 1.0 + 0.1 * jnp.abs(jax.random.normal(lk[5], (cout,), jnp.float32))
            es = gamma / jnp.sqrt(var + 1e-5)             # BN scale
            w = w * es[None, :]
            b = b * es + beta - mean * es
        # bf16 weights (MXU-native on v6e/v7x, halves weight DMA/VMEM); f32 biases.
        params.append((w.astype(jnp.bfloat16), b.reshape(1, cout).astype(jnp.float32)))
    return params


def stnkd_forward(x_bkn, params, *, tb=2, tn=128):
    """x_bkn: (B, k, N) float32, same layout as the PyTorch module input."""
    B, k, N = x_bkn.shape
    assert B % tb == 0, (B, tb)
    assert N % tn == 0, (N, tn)
    kk = k * k
    iden = jnp.eye(k, dtype=jnp.float32).reshape(1, kk)

    const_spec = lambda a: pl.BlockSpec(a.shape, lambda b, n: (0, 0))
    in_specs = [pl.BlockSpec((tb, k, tn), lambda b, n: (b, 0, n))]   # native layout chunk
    flat_args = [x_bkn.astype(jnp.float32)]
    for w, bias in params:
        in_specs += [const_spec(w), const_spec(bias)]
        flat_args += [w, bias]
    in_specs.append(const_spec(iden))
    flat_args.append(iden)

    out = pl.pallas_call(
        stnkd_kernel,
        out_shape=jax.ShapeDtypeStruct((B // tb, tb, kk), jnp.float32),
        grid_spec=pltpu.PrefetchScalarGridSpec(
            num_scalar_prefetch=0,
            grid=(B // tb, N // tn),
            in_specs=in_specs,
            out_specs=pl.BlockSpec((1, tb, kk), lambda b, n: (b, 0, 0)),
            scratch_shapes=[pltpu.VMEM((tb, 1024), jnp.float32)],    # running max-pool
        ),
        compiler_params=pltpu.CompilerParams(
            dimension_semantics=("parallel", "arbitrary"),
            # headroom for larger tb/tn; sized to fit v7x's 64 MiB physical VMEM
            vmem_limit_bytes=64 * 1024 * 1024,
        ),
    )(*flat_args)

    return out.reshape(B, k, k)


if __name__ == "__main__":
    key = jax.random.PRNGKey(0)
    kx, kp = jax.random.split(key)

    # Small shapes: batch=4, k=4 channels, 256 points; TB=2 keeps 2 parallel
    # grid steps (v7x megacore), TN=128 exercises the streamed max-pool.
    B, k, N = 4, 4, 256
    x = jax.random.normal(kx, (B, k, N), jnp.float32)
    params = init_params(kp, k)

    out = stnkd_forward(x, params, tb=2, tn=128)
    jax.block_until_ready(out)
    assert out.shape == (B, k, k), out.shape
    print("KERNEL_OK")
</pallas_src>

<mosaic_0001>
module attributes {stable_mosaic.version = 11 : i64} {
  func.func @stnkd_kernel(%arg0: i32, %arg1: i32, %arg2: memref<2x4x128xf32, #tpu.memory_space<vmem>>, %arg3: memref<4x64xbf16, #tpu.memory_space<vmem>>, %arg4: memref<1x64xf32, #tpu.memory_space<vmem>>, %arg5: memref<64x128xbf16, #tpu.memory_space<vmem>>, %arg6: memref<1x128xf32, #tpu.memory_space<vmem>>, %arg7: memref<128x1024xbf16, #tpu.memory_space<vmem>>, %arg8: memref<1x1024xf32, #tpu.memory_space<vmem>>, %arg9: memref<1024x512xbf16, #tpu.memory_space<vmem>>, %arg10: memref<1x512xf32, #tpu.memory_space<vmem>>, %arg11: memref<512x256xbf16, #tpu.memory_space<vmem>>, %arg12: memref<1x256xf32, #tpu.memory_space<vmem>>, %arg13: memref<256x16xbf16, #tpu.memory_space<vmem>>, %arg14: memref<1x16xf32, #tpu.memory_space<vmem>>, %arg15: memref<1x16xf32, #tpu.memory_space<vmem>>, %arg16: memref<1x2x16xf32, #tpu.memory_space<vmem>>, %arg17: memref<2x1024xf32, #tpu.memory_space<vmem>>) attributes {dimension_semantics = [#tpu.dimension_semantics<parallel>, #tpu.dimension_semantics<arbitrary>], iteration_bounds = array<i64: 2, 2>, scalar_prefetch = 0 : i64, scratch_operands = 1 : i64, tpu.core_type = #tpu.core_type<tc>, window_params = [{transform_indices = @transform_0, window_bounds = array<i64: 2, 4, 128>}, {pipeline_mode = #tpu.pipeline_mode<synchronous>, transform_indices = @transform_1, window_bounds = array<i64: 4, 64>}, {pipeline_mode = #tpu.pipeline_mode<synchronous>, transform_indices = @transform_2, window_bounds = array<i64: 1, 64>}, {pipeline_mode = #tpu.pipeline_mode<synchronous>, transform_indices = @transform_3, window_bounds = array<i64: 64, 128>}, {pipeline_mode = #tpu.pipeline_mode<synchronous>, transform_indices = @transform_4, window_bounds = array<i64: 1, 128>}, {pipeline_mode = #tpu.pipeline_mode<synchronous>, transform_indices = @transform_5, window_bounds = array<i64: 128, 1024>}, {pipeline_mode = #tpu.pipeline_mode<synchronous>, transform_indices = @transform_6, window_bounds = array<i64: 1, 1024>}, {pipeline_mode = #tpu.pipeline_mode<synchronous>, transform_indices = @transform_7, window_bounds = array<i64: 1024, 512>}, {pipeline_mode = #tpu.pipeline_mode<synchronous>, transform_indices = @transform_8, window_bounds = array<i64: 1, 512>}, {pipeline_mode = #tpu.pipeline_mode<synchronous>, transform_indices = @transform_9, window_bounds = array<i64: 512, 256>}, {pipeline_mode = #tpu.pipeline_mode<synchronous>, transform_indices = @transform_10, window_bounds = array<i64: 1, 256>}, {pipeline_mode = #tpu.pipeline_mode<synchronous>, transform_indices = @transform_11, window_bounds = array<i64: 256, 16>}, {pipeline_mode = #tpu.pipeline_mode<synchronous>, transform_indices = @transform_12, window_bounds = array<i64: 1, 16>}, {pipeline_mode = #tpu.pipeline_mode<synchronous>, transform_indices = @transform_13, window_bounds = array<i64: 1, 16>}, {transform_indices = @transform_14, window_bounds = array<i64: 1, 2, 16>}]} {
    %c0 = arith.constant 0 : index
    %c0_0 = arith.constant 0 : index
    %c0_1 = arith.constant 0 : index
    %0 = vector.load %arg2[%c0, %c0_0, %c0_1] : memref<2x4x128xf32, #tpu.memory_space<vmem>>, vector<1x4x128xf32>
    %1 = vector.shape_cast %0 : vector<1x4x128xf32> to vector<4x128xf32>
    %2 = tpu.transpose %1, [1, 0] : vector<4x128xf32> -> vector<128x4xf32>
    %c1 = arith.constant 1 : index
    %c0_2 = arith.constant 0 : index
    %c0_3 = arith.constant 0 : index
    %3 = vector.load %arg2[%c1, %c0_2, %c0_3] : memref<2x4x128xf32, #tpu.memory_space<vmem>>, vector<1x4x128xf32>
    %4 = vector.shape_cast %3 : vector<1x4x128xf32> to vector<4x128xf32>
    %5 = tpu.transpose %4, [1, 0] : vector<4x128xf32> -> vector<128x4xf32>
    %6 = tpu.concatenate %2, %5 in 0 : vector<128x4xf32>, vector<128x4xf32> -> vector<256x4xf32>
    %7 = arith.truncf %6 : vector<256x4xf32> to vector<256x4xbf16>
    %c0_4 = arith.constant 0 : index
    %c0_5 = arith.constant 0 : index
    %8 = vector.load %arg3[%c0_4, %c0_5] : memref<4x64xbf16, #tpu.memory_space<vmem>>, vector<4x64xbf16>
    %cst = arith.constant dense<0.000000e+00> : vector<256x64xf32>
    %9 = tpu.matmul %7, %8, %cst {dimension_numbers = #tpu.dot_dimension_numbers<[1], [0], [0], [1], [0, 0, 1, 1], [], []>} : vector<256x4xbf16>, vector<4x64xbf16>, vector<256x64xf32> -> vector<256x64xf32>
    %c0_6 = arith.constant 0 : index
    %c0_7 = arith.constant 0 : index
    %10 = vector.load %arg4[%c0_6, %c0_7] : memref<1x64xf32, #tpu.memory_space<vmem>>, vector<1x64xf32>
    %11 = vector.broadcast %10 : vector<1x64xf32> to vector<256x64xf32>
    %12 = arith.addf %9, %11 : vector<256x64xf32>
    %cst_8 = arith.constant 0.000000e+00 : f32
    %13 = vector.broadcast %cst_8 : f32 to vector<256x64xf32>
    %14 = arith.maximumf %12, %13 : vector<256x64xf32>
    %15 = arith.truncf %14 : vector<256x64xf32> to vector<256x64xbf16>
    %c0_9 = arith.constant 0 : index
    %c0_10 = arith.constant 0 : index
    %16 = vector.load %arg5[%c0_9, %c0_10] : memref<64x128xbf16, #tpu.memory_space<vmem>>, vector<64x128xbf16>
    %cst_11 = arith.constant dense<0.000000e+00> : vector<256x128xf32>
    %17 = tpu.matmul %15, %16, %cst_11 {dimension_numbers = #tpu.dot_dimension_numbers<[1], [0], [0], [1], [0, 0, 1, 1], [], []>} : vector<256x64xbf16>, vector<64x128xbf16>, vector<256x128xf32> -> vector<256x128xf32>
    %c0_12 = arith.constant 0 : index
    %c0_13 = arith.constant 0 : index
    %18 = vector.load %arg6[%c0_12, %c0_13] : memref<1x128xf32, #tpu.memory_space<vmem>>, vector<1x128xf32>
    %19 = vector.broadcast %18 : vector<1x128xf32> to vector<256x128xf32>
    %20 = arith.addf %17, %19 : vector<256x128xf32>
    %cst_14 = arith.constant 0.000000e+00 : f32
    %21 = vector.broadcast %cst_14 : f32 to vector<256x128xf32>
    %22 = arith.maximumf %20, %21 : vector<256x128xf32>
    %23 = arith.truncf %22 : vector<256x128xf32> to vector<256x128xbf16>
    %c0_15 = arith.constant 0 : index
    %c0_16 = arith.constant 0 : index
    %24 = vector.load %arg7[%c0_15, %c0_16] : memref<128x1024xbf16, #tpu.memory_space<vmem>>, vector<128x1024xbf16>
    %cst_17 = arith.constant dense<0.000000e+00> : vector<256x1024xf32>
    %25 = tpu.matmul %23, %24, %cst_17 {dimension_numbers = #tpu.dot_dimension_numbers<[1], [0], [0], [1], [0, 0, 1, 1], [], []>} : vector<256x128xbf16>, vector<128x1024xbf16>, vector<256x1024xf32> -> vector<256x1024xf32>
    %c0_18 = arith.constant 0 : index
    %c0_19 = arith.constant 0 : index
    %26 = vector.load %arg8[%c0_18, %c0_19] : memref<1x1024xf32, #tpu.memory_space<vmem>>, vector<1x1024xf32>
    %27 = vector.broadcast %26 : vector<1x1024xf32> to vector<256x1024xf32>
    %28 = arith.addf %25, %27 : vector<256x1024xf32>
    %29 = vector.extract_strided_slice %28 {offsets = [0, 0], sizes = [128, 1024], strides = [1, 1]} : vector<256x1024xf32> to vector<128x1024xf32>
    %cst_20 = arith.constant dense<0xFF800000> : vector<1024xf32>
    %30 = vector.multi_reduction <maximumf>, %29, %cst_20 [0] : vector<128x1024xf32> to vector<1024xf32>
    %31 = vector.shape_cast %30 : vector<1024xf32> to vector<1x1024xf32>
    %32 = vector.extract_strided_slice %28 {offsets = [128, 0], sizes = [128, 1024], strides = [1, 1]} : vector<256x1024xf32> to vector<128x1024xf32>
    %cst_21 = arith.constant dense<0xFF800000> : vector<1024xf32>
    %33 = vector.multi_reduction <maximumf>, %32, %cst_21 [0] : vector<128x1024xf32> to vector<1024xf32>
    %34 = vector.shape_cast %33 : vector<1024xf32> to vector<1x1024xf32>
    %35 = tpu.concatenate %31, %34 in 0 : vector<1x1024xf32>, vector<1x1024xf32> -> vector<2x1024xf32>
    %c0_i32 = arith.constant 0 : i32
    %36 = arith.cmpi eq, %arg1, %c0_i32 : i32
    %37 = arith.extui %36 : i1 to i32
    %c0_i32_22 = arith.constant 0 : i32
    %38 = arith.cmpi ne, %37, %c0_i32_22 : i32
    scf.if %38 {
      %cst_28 = arith.constant 0xFF800000 : f32
      %45 = vector.broadcast %cst_28 : f32 to vector<2x1024xf32>
      %c0_29 = arith.constant 0 : index
      %c0_30 = arith.constant 0 : index
      %46 = vector.load %arg17[%c0_29, %c0_30] : memref<2x1024xf32, #tpu.memory_space<vmem>>, vector<2x1024xf32>
      tpu.vector_store %arg17[%c0_29, %c0_30], %45 {strides = array<i32>} : memref<2x1024xf32, #tpu.memory_space<vmem>>, vector<2x1024xf32>,
    } else {
    }
    %c0_23 = arith.constant 0 : index
    %c0_24 = arith.constant 0 : index
    %39 = vector.load %arg17[%c0_23, %c0_24] : memref<2x1024xf32, #tpu.memory_space<vmem>>, vector<2x1024xf32>
    %40 = arith.maximumf %39, %35 : vector<2x1024xf32>
    %c0_25 = arith.constant 0 : index
    %c0_26 = arith.constant 0 : index
    %41 = vector.load %arg17[%c0_25, %c0_26] : memref<2x1024xf32, #tpu.memory_space<vmem>>, vector<2x1024xf32>
    tpu.vector_store %arg17[%c0_25, %c0_26], %40 {strides = array<i32>} : memref<2x1024xf32, #tpu.memory_space<vmem>>, vector<2x1024xf32>,
    %c1_i32 = arith.constant 1 : i32
    %42 = arith.cmpi eq, %arg1, %c1_i32 : i32
    %43 = arith.extui %42 : i1 to i32
    %c0_i32_27 = arith.constant 0 : i32
    %44 = arith.cmpi ne, %43, %c0_i32_27 : i32
    scf.if %44 {
      %c0_28 = arith.constant 0 : index
      %c0_29 = arith.constant 0 : index
      %45 = vector.load %arg17[%c0_28, %c0_29] : memref<2x1024xf32, #tpu.memory_space<vmem>>, vector<2x1024xf32>
      %46 = arith.truncf %45 : vector<2x1024xf32> to vector<2x1024xbf16>
      %c0_30 = arith.constant 0 : index
      %c0_31 = arith.constant 0 : index
      %47 = vector.load %arg9[%c0_30, %c0_31] : memref<1024x512xbf16, #tpu.memory_space<vmem>>, vector<1024x512xbf16>
      %cst_32 = arith.constant dense<0.000000e+00> : vector<2x512xf32>
      %48 = tpu.matmul %46, %47, %cst_32 {dimension_numbers = #tpu.dot_dimension_numbers<[1], [0], [0], [1], [0, 0, 1, 1], [], []>} : vector<2x1024xbf16>, vector<1024x512xbf16>, vector<2x512xf32> -> vector<2x512xf32>
      %c0_33 = arith.constant 0 : index
      %c0_34 = arith.constant 0 : index
      %49 = vector.load %arg10[%c0_33, %c0_34] : memref<1x512xf32, #tpu.memory_space<vmem>>, vector<1x512xf32>
      %50 = vector.broadcast %49 : vector<1x512xf32> to vector<2x512xf32>
      %51 = arith.addf %48, %50 : vector<2x512xf32>
      %cst_35 = arith.constant 0.000000e+00 : f32
      %52 = vector.broadcast %cst_35 : f32 to vector<2x512xf32>
      %53 = arith.maximumf %51, %52 : vector<2x512xf32>
      %54 = arith.truncf %53 : vector<2x512xf32> to vector<2x512xbf16>
      %c0_36 = arith.constant 0 : index
      %c0_37 = arith.constant 0 : index
      %55 = vector.load %arg11[%c0_36, %c0_37] : memref<512x256xbf16, #tpu.memory_space<vmem>>, vector<512x256xbf16>
      %cst_38 = arith.constant dense<0.000000e+00> : vector<2x256xf32>
      %56 = tpu.matmul %54, %55, %cst_38 {dimension_numbers = #tpu.dot_dimension_numbers<[1], [0], [0], [1], [0, 0, 1, 1], [], []>} : vector<2x512xbf16>, vector<512x256xbf16>, vector<2x256xf32> -> vector<2x256xf32>
      %c0_39 = arith.constant 0 : index
      %c0_40 = arith.constant 0 : index
      %57 = vector.load %arg12[%c0_39, %c0_40] : memref<1x256xf32, #tpu.memory_space<vmem>>, vector<1x256xf32>
      %58 = vector.broadcast %57 : vector<1x256xf32> to vector<2x256xf32>
      %59 = arith.addf %56, %58 : vector<2x256xf32>
      %cst_41 = arith.constant 0.000000e+00 : f32
      %60 = vector.broadcast %cst_41 : f32 to vector<2x256xf32>
      %61 = arith.maximumf %59, %60 : vector<2x256xf32>
      %62 = arith.truncf %61 : vector<2x256xf32> to vector<2x256xbf16>
      %c0_42 = arith.constant 0 : index
      %c0_43 = arith.constant 0 : index
      %63 = vector.load %arg13[%c0_42, %c0_43] : memref<256x16xbf16, #tpu.memory_space<vmem>>, vector<256x16xbf16>
      %cst_44 = arith.constant dense<0.000000e+00> : vector<2x16xf32>
      %64 = tpu.matmul %62, %63, %cst_44 {dimension_numbers = #tpu.dot_dimension_numbers<[1], [0], [0], [1], [0, 0, 1, 1], [], []>} : vector<2x256xbf16>, vector<256x16xbf16>, vector<2x16xf32> -> vector<2x16xf32>
      %c0_45 = arith.constant 0 : index
      %c0_46 = arith.constant 0 : index
      %65 = vector.load %arg14[%c0_45, %c0_46] : memref<1x16xf32, #tpu.memory_space<vmem>>, vector<1x16xf32>
      %66 = vector.broadcast %65 : vector<1x16xf32> to vector<2x16xf32>
      %67 = arith.addf %64, %66 : vector<2x16xf32>
      %c0_47 = arith.constant 0 : index
      %c0_48 = arith.constant 0 : index
      %68 = vector.load %arg15[%c0_47, %c0_48] : memref<1x16xf32, #tpu.memory_space<vmem>>, vector<1x16xf32>
      %69 = vector.broadcast %68 : vector<1x16xf32> to vector<2x16xf32>
      %70 = arith.addf %67, %69 : vector<2x16xf32>
      %c0_49 = arith.constant 0 : index
      %c0_50 = arith.constant 0 : index
      %c0_51 = arith.constant 0 : index
      %71 = vector.load %arg16[%c0_49, %c0_50, %c0_51] : memref<1x2x16xf32, #tpu.memory_space<vmem>>, vector<1x2x16xf32>
      %72 = vector.shape_cast %71 : vector<1x2x16xf32> to vector<2x16xf32>
      %73 = vector.shape_cast %70 : vector<2x16xf32> to vector<1x2x16xf32>
      tpu.vector_store %arg16[%c0_49, %c0_50, %c0_51], %73 {strides = array<i32>} : memref<1x2x16xf32, #tpu.memory_space<vmem>>, vector<1x2x16xf32>,
    } else {
    }
    return
  }
  func.func @transform_0(%arg0: i32, %arg1: i32) -> (i32, i32, i32) {
    %c0_i32 = arith.constant 0 : i32
    %c0_i32_0 = arith.constant 0 : i32
    return %arg0, %c0_i32, %arg1 : i32, i32, i32
  }
  func.func @transform_1(%arg0: i32, %arg1: i32) -> (i32, i32) {
    %c0_i32 = arith.constant 0 : i32
    %c0_i32_0 = arith.constant 0 : i32
    %c0_i32_1 = arith.constant 0 : i32
    return %c0_i32, %c0_i32_0 : i32, i32
  }
  func.func @transform_2(%arg0: i32, %arg1: i32) -> (i32, i32) {
    %c0_i32 = arith.constant 0 : i32
    %c0_i32_0 = arith.constant 0 : i32
    %c0_i32_1 = arith.constant 0 : i32
    return %c0_i32, %c0_i32_0 : i32, i32
  }
  func.func @transform_3(%arg0: i32, %arg1: i32) -> (i32, i32) {
    %c0_i32 = arith.constant 0 : i32
    %c0_i32_0 = arith.constant 0 : i32
    %c0_i32_1 = arith.constant 0 : i32
    return %c0_i32, %c0_i32_0 : i32, i32
  }
  func.func @transform_4(%arg0: i32, %arg1: i32) -> (i32, i32) {
    %c0_i32 = arith.constant 0 : i32
    %c0_i32_0 = arith.constant 0 : i32
    %c0_i32_1 = arith.constant 0 : i32
    return %c0_i32, %c0_i32_0 : i32, i32
  }
  func.func @transform_5(%arg0: i32, %arg1: i32) -> (i32, i32) {
    %c0_i32 = arith.constant 0 : i32
    %c0_i32_0 = arith.constant 0 : i32
    %c0_i32_1 = arith.constant 0 : i32
    return %c0_i32, %c0_i32_0 : i32, i32
  }
  func.func @transform_6(%arg0: i32, %arg1: i32) -> (i32, i32) {
    %c0_i32 = arith.constant 0 : i32
    %c0_i32_0 = arith.constant 0 : i32
    %c0_i32_1 = arith.constant 0 : i32
    return %c0_i32, %c0_i32_0 : i32, i32
  }
  func.func @transform_7(%arg0: i32, %arg1: i32) -> (i32, i32) {
    %c0_i32 = arith.constant 0 : i32
    %c0_i32_0 = arith.constant 0 : i32
    %c0_i32_1 = arith.constant 0 : i32
    return %c0_i32, %c0_i32_0 : i32, i32
  }
  func.func @transform_8(%arg0: i32, %arg1: i32) -> (i32, i32) {
    %c0_i32 = arith.constant 0 : i32
    %c0_i32_0 = arith.constant 0 : i32
    %c0_i32_1 = arith.constant 0 : i32
    return %c0_i32, %c0_i32_0 : i32, i32
  }
  func.func @transform_9(%arg0: i32, %arg1: i32) -> (i32, i32) {
    %c0_i32 = arith.constant 0 : i32
    %c0_i32_0 = arith.constant 0 : i32
    %c0_i32_1 = arith.constant 0 : i32
    return %c0_i32, %c0_i32_0 : i32, i32
  }
  func.func @transform_10(%arg0: i32, %arg1: i32) -> (i32, i32) {
    %c0_i32 = arith.constant 0 : i32
    %c0_i32_0 = arith.constant 0 : i32
    %c0_i32_1 = arith.constant 0 : i32
    return %c0_i32, %c0_i32_0 : i32, i32
  }
  func.func @transform_11(%arg0: i32, %arg1: i32) -> (i32, i32) {
    %c0_i32 = arith.constant 0 : i32
    %c0_i32_0 = arith.constant 0 : i32
    %c0_i32_1 = arith.constant 0 : i32
    return %c0_i32, %c0_i32_0 : i32, i32
  }
  func.func @transform_12(%arg0: i32, %arg1: i32) -> (i32, i32) {
    %c0_i32 = arith.constant 0 : i32
    %c0_i32_0 = arith.constant 0 : i32
    %c0_i32_1 = arith.constant 0 : i32
    return %c0_i32, %c0_i32_0 : i32, i32
  }
  func.func @transform_13(%arg0: i32, %arg1: i32) -> (i32, i32) {
    %c0_i32 = arith.constant 0 : i32
    %c0_i32_0 = arith.constant 0 : i32
    %c0_i32_1 = arith.constant 0 : i32
    return %c0_i32, %c0_i32_0 : i32, i32
  }
  func.func @transform_14(%arg0: i32, %arg1: i32) -> (i32, i32, i32) {
    %c0_i32 = arith.constant 0 : i32
    %c0_i32_0 = arith.constant 0 : i32
    %c0_i32_1 = arith.constant 0 : i32
    return %arg0, %c0_i32, %c0_i32_0 : i32, i32, i32
  }
}

</mosaic_0001>

<llo_original>
// kernel: tpu_custom_call.1
$region0: #{tpu_custom_call.1}
  #allocation0 [shape = 'u32[]', space=smem, size = 0x4, offset = 0x4, fixed_abs, tag = 'smem constant byte address 0x4 - core index']
  #allocation1 [shape = 'u32[144,128]{1,0:T(1,128)}', space=vmem, size = 0x12000, scoped, tag = 'internal scratch']
  #allocation2 [shape = 'f32[2,1024]{1,0:T(2,128)}', space=vmem, size = 0x2000, scoped, tag = 'scratch operand']
  %s0 = inlined_call_operand.vmem [shape: f32[4,4,256], index: 0, kind: input, shape index: {}]
  %s1 = inlined_call_operand.vmem [shape: bf16[4,64], index: 1, kind: input, shape index: {}]
  %s2 = inlined_call_operand.vmem [shape: f32[1,64], index: 2, kind: input, shape index: {}]
  %s3 = inlined_call_operand.vmem [shape: bf16[64,128], index: 3, kind: input, shape index: {}]
  %s4 = inlined_call_operand.vmem [shape: f32[1,128], index: 4, kind: input, shape index: {}]
  %s5 = inlined_call_operand.hbm [shape: bf16[128,1024], index: 5, kind: input, shape index: {}]
  %s6 = inlined_call_operand.vmem [shape: f32[1,1024], index: 6, kind: input, shape index: {}]
  %s7 = inlined_call_operand.hbm [shape: bf16[1024,512], index: 7, kind: input, shape index: {}]
  %s8 = inlined_call_operand.vmem [shape: f32[1,512], index: 8, kind: input, shape index: {}]
  %s9 = inlined_call_operand.hbm [shape: bf16[512,256], index: 9, kind: input, shape index: {}]
  %s10 = inlined_call_operand.vmem [shape: f32[1,256], index: 10, kind: input, shape index: {}]
  %s11 = inlined_call_operand.vmem [shape: bf16[256,16], index: 11, kind: input, shape index: {}]
  %s12 = inlined_call_operand.vmem [shape: f32[1,16], index: 12, kind: input, shape index: {}]
  %s13 = inlined_call_operand.vmem [shape: f32[1,16], index: 13, kind: input, shape index: {}]
  %s14 = inlined_call_operand.hbm [shape: f32[2,2,16], index: 14, kind: output, shape index: {}]
  %s15 = sld [smem:[#allocation0]]
  $region150: #{tpu_custom_call.1} parent=0
    _
  %s17 = ssub.s32 1, %s15
  %s18 = scalar_select 0, %s17, %s15
  $region1: #{tpu_custom_call.1} parent=0
    #allocation3 [shape = 'u8[8192]{0}', space=vmem, size = 0x2000, scoped, tag = 'input window, operand 0']
    #allocation4 [shape = 'u8[262144]{0}', space=vmem, size = 0x40000, scoped, tag = 'input window, operand 5, single buffered']
    #allocation5 [shape = 's32[2]{0}', space=sflag, size = 0x8, scoped, tag = 'scoped memory for tpu_custom_call.1']
    #allocation6 [shape = 's32[2]{0}', space=sflag, size = 0x8, scoped, tag = 'scoped memory for tpu_custom_call.1']
    #allocation7 [shape = 'u8[1048576]{0}', space=vmem, size = 0x100000, scoped, tag = 'input window, operand 7, single buffered']
    #allocation8 [shape = 's32[1]{0}', space=sflag, size = 0x4, scoped, tag = 'scoped memory for tpu_custom_call.1']
    #allocation9 [shape = 'u8[262144]{0}', space=vmem, size = 0x40000, scoped, tag = 'input window, operand 9, single buffered']
    #allocation10 [shape = 'u8[2048]{0}', space=vmem, size = 0x800, scoped, tag = 'output window, operand 0']
    %19 = vsyncpa [#allocation5], 0
    %20 = vsyncpa [#allocation8], 0
    %21 = vsyncpa [#allocation6], 0
    %s22 = scalar_lea.sflag [#allocation6], 1
    %23 = vsyncpa %s22, 0
    loop: start=0, step=1, limit=6
    $region2: #{tpu_custom_call.1} parent=1 // loop_pre_header
      _
    $region3: #{tpu_custom_call.1} parent=1 // loop_header
      %s25 = sphi 0, %s29
      %p26 = scmp.ge.s32.totalorder %s25, 6
      %s32 = sphi 0, %s44
      %s33 = sphi 0, %s40
      %s34 = sphi 0, %s32
      %s35 = sphi 0, %s33
      %s36 = sphi 0, %s34
      %s37 = sphi 0, %s35
      %s49 = sphi 0, %s51
      %s52 = sphi 0, %s49
      %s53 = sphi 0, %s52
      %s69 = sphi 0, %s53
      %s73 = sphi 0, %s73
      %s75 = sphi 0, %s73
      %s76 = sphi 0, %s75
      %s90 = sphi 0, %s76
      %s94 = sphi 0, %s94
      %s96 = sphi 0, %s94
      %s97 = sphi 0, %s96
      %s111 = sphi 0, %s97
      %s115 = sphi 0, %s115
      %s117 = sphi 0, %s115
      %s118 = sphi 0, %s117
      %s132 = sphi 0, %s118
      %s136 = sphi 0, %s136
      %s138 = sphi 0, %s136
      %s139 = sphi 0, %s138
      %s153 = sphi 0, %s139
      %s157 = sphi 0, %s157
      %s159 = sphi 0, %s157
      %s160 = sphi 0, %s159
      %s174 = sphi 0, %s160
      %s178 = sphi 0, %s178
      %s180 = sphi 0, %s178
      %s181 = sphi 0, %s180
      %s195 = sphi 0, %s181
      %s199 = sphi 0, %s199
      %s201 = sphi 0, %s199
      %s202 = sphi 0, %s201
      %s216 = sphi 0, %s202
      %s220 = sphi 0, %s220
      %s222 = sphi 0, %s220
      %s223 = sphi 0, %s222
      %s237 = sphi 0, %s223
      %s241 = sphi 0, %s241
      %s243 = sphi 0, %s241
      %s244 = sphi 0, %s243
      %s258 = sphi 0, %s244
      %s262 = sphi 0, %s262
      %s264 = sphi 0, %s262
      %s265 = sphi 0, %s264
      %s279 = sphi 0, %s265
      %s283 = sphi 0, %s283
      %s285 = sphi 0, %s283
      %s286 = sphi 0, %s285
      %s300 = sphi 0, %s286
      %s304 = sphi 0, %s304
      %s306 = sphi 0, %s304
      %s307 = sphi 0, %s306
      %s321 = sphi 0, %s307
      %s325 = sphi 0, %s325
      %s327 = sphi 0, %s325
      %s328 = sphi 0, %s327
      %s342 = sphi 0, %s328
      %s348 = sphi 0, %s350
      %s351 = sphi 0, %s348
      %s352 = sphi 0, %s351
      %s368 = sphi 0, %s352
    $region4: #{tpu_custom_call.1} parent=1 // loop_header_branch
      %28 = sbr.rel (%p26) target = $region8
    $region5: #{tpu_custom_call.1} parent=1 // loop_body
      %s30 = ssub.s32 %s25, 1
      %s31 = ssub.s32 %s25, 2
      %s38 = sadd.s32 1, %s33
      %p39 = scmp.ge.s32.totalorder %s38, 2
      %s40 = scalar_select %p39, 0, %s38
      %s41 = sadd.s32 1, %s32
      %s42 = scalar_select %p39, %s41, %s32
      %p43 = scmp.ge.s32.totalorder %s42, 2
      %s44 = scalar_select %p43, 0, %s42
      %s45 = ssub.s32 %s32, %s44
      %s46 = ssub.s32 %s33, %s40
      %s47 = sor.u32 %s45, %s46
      %p48 = scmp.eq.s32.totalorder %s47, 0
      %s50 = sadd.s32 %s49, 1
      %s51 = scalar_select %p48, %s49, %s50
      %p54 = pneg %p48
      %p55 = scmp.eq.s32.totalorder %s25, 3
      %p56 = por %p54, %p55
      %p57 = scmp.ne.s32.totalorder %s49, %s52
      %p58 = scmp.eq.s32.totalorder %s25, 0
      %p59 = por %p57, %p58
      %p60 = scmp.ne.s32.totalorder %s49, %s52
      %p61 = scmp.eq.s32.totalorder %s30, 3
      %p62 = por %p60, %p61
      %p63 = scmp.ne.s32.totalorder %s52, %s53
      %p64 = scmp.eq.s32.totalorder %s30, 0
      %p65 = por %p63, %p64
      %p66 = scmp.ne.s32.totalorder %s52, %s53
      %p67 = scmp.eq.s32.totalorder %s31, 3
      %p68 = por %p66, %p67
      %p70 = scmp.ne.s32.totalorder %s53, %s69
      %p71 = scmp.eq.s32.totalorder %s31, 0
      %p72 = por %p70, %p71
      %s74 = sadd.s32 %s73, 1
      %p77 = scmp.eq.s32.totalorder %s25, 3
      %p78 = scmp.ne.s32.totalorder %s73, %s75
      %p79 = scmp.eq.s32.totalorder %s25, 0
      %p80 = por %p78, %p79
      %p81 = scmp.ne.s32.totalorder %s73, %s75
      %p82 = scmp.eq.s32.totalorder %s30, 3
      %p83 = por %p81, %p82
      %p84 = scmp.ne.s32.totalorder %s75, %s76
      %p85 = scmp.eq.s32.totalorder %s30, 0
      %p86 = por %p84, %p85
      %p87 = scmp.ne.s32.totalorder %s75, %s76
      %p88 = scmp.eq.s32.totalorder %s31, 3
      %p89 = por %p87, %p88
      %p91 = scmp.ne.s32.totalorder %s76, %s90
      %p92 = scmp.eq.s32.totalorder %s31, 0
      %p93 = por %p91, %p92
      %s95 = sadd.s32 %s94, 1
      %p98 = scmp.eq.s32.totalorder %s25, 3
      %p99 = scmp.ne.s32.totalorder %s94, %s96
      %p100 = scmp.eq.s32.totalorder %s25, 0
      %p101 = por %p99, %p100
      %p102 = scmp.ne.s32.totalorder %s94, %s96
      %p103 = scmp.eq.s32.totalorder %s30, 3
      %p104 = por %p102, %p103
      %p105 = scmp.ne.s32.totalorder %s96, %s97
      %p106 = scmp.eq.s32.totalorder %s30, 0
      %p107 = por %p105, %p106
      %p108 = scmp.ne.s32.totalorder %s96, %s97
      %p109 = scmp.eq.s32.totalorder %s31, 3
      %p110 = por %p108, %p109
      %p112 = scmp.ne.s32.totalorder %s97, %s111
      %p113 = scmp.eq.s32.totalorder %s31, 0
      %p114 = por %p112, %p113
      %s116 = sadd.s32 %s115, 1
      %p119 = scmp.eq.s32.totalorder %s25, 3
      %p120 = scmp.ne.s32.totalorder %s115, %s117
      %p121 = scmp.eq.s32.totalorder %s25, 0
      %p122 = por %p120, %p121
      %p123 = scmp.ne.s32.totalorder %s115, %s117
      %p124 = scmp.eq.s32.totalorder %s30, 3
      %p125 = por %p123, %p124
      %p126 = scmp.ne.s32.totalorder %s117, %s118
      %p127 = scmp.eq.s32.totalorder %s30, 0
      %p128 = por %p126, %p127
      %p129 = scmp.ne.s32.totalorder %s117, %s118
      %p130 = scmp.eq.s32.totalorder %s31, 3
      %p131 = por %p129, %p130
      %p133 = scmp.ne.s32.totalorder %s118, %s132
      %p134 = scmp.eq.s32.totalorder %s31, 0
      %p135 = por %p133, %p134
      %s137 = sadd.s32 %s136, 1
      %p140 = scmp.eq.s32.totalorder %s25, 3
      %p141 = scmp.ne.s32.totalorder %s136, %s138
      %p142 = scmp.eq.s32.totalorder %s25, 0
      %p143 = por %p141, %p142
      %p144 = scmp.ne.s32.totalorder %s136, %s138
      %p145 = scmp.eq.s32.totalorder %s30, 3
      %p146 = por %p144, %p145
      %p147 = scmp.ne.s32.totalorder %s138, %s139
      %p148 = scmp.eq.s32.totalorder %s30, 0
      %p149 = por %p147, %p148
      %p150 = scmp.ne.s32.totalorder %s138, %s139
      %p151 = scmp.eq.s32.totalorder %s31, 3
      %p152 = por %p150, %p151
      %p154 = scmp.ne.s32.totalorder %s139, %s153
      %p155 = scmp.eq.s32.totalorder %s31, 0
      %p156 = por %p154, %p155
      %s158 = sadd.s32 %s157, 1
      %p161 = scmp.eq.s32.totalorder %s25, 3
      %p162 = scmp.ne.s32.totalorder %s157, %s159
      %p163 = scmp.eq.s32.totalorder %s25, 0
      %p164 = por %p162, %p163
      %p165 = scmp.ne.s32.totalorder %s157, %s159
      %p166 = scmp.eq.s32.totalorder %s30, 3
      %p167 = por %p165, %p166
      %p168 = scmp.ne.s32.totalorder %s159, %s160
      %p169 = scmp.eq.s32.totalorder %s30, 0
      %p170 = por %p168, %p169
      %p171 = scmp.ne.s32.totalorder %s159, %s160
      %p172 = scmp.eq.s32.totalorder %s31, 3
      %p173 = por %p171, %p172
      %p175 = scmp.ne.s32.totalorder %s160, %s174
      %p176 = scmp.eq.s32.totalorder %s31, 0
      %p177 = por %p175, %p176
      %s179 = sadd.s32 %s178, 1
      %p182 = scmp.eq.s32.totalorder %s25, 3
      %p183 = scmp.ne.s32.totalorder %s178, %s180
      %p184 = scmp.eq.s32.totalorder %s25, 0
      %p185 = por %p183, %p184
      %p186 = scmp.ne.s32.totalorder %s178, %s180
      %p187 = scmp.eq.s32.totalorder %s30, 3
      %p188 = por %p186, %p187
      %p189 = scmp.ne.s32.totalorder %s180, %s181
      %p190 = scmp.eq.s32.totalorder %s30, 0
      %p191 = por %p189, %p190
      %p192 = scmp.ne.s32.totalorder %s180, %s181
      %p193 = scmp.eq.s32.totalorder %s31, 3
      %p194 = por %p192, %p193
      %p196 = scmp.ne.s32.totalorder %s181, %s195
      %p197 = scmp.eq.s32.totalorder %s31, 0
      %p198 = por %p196, %p197
      %s200 = sadd.s32 %s199, 1
      %p203 = scmp.eq.s32.totalorder %s25, 3
      %p204 = scmp.ne.s32.totalorder %s199, %s201
      %p205 = scmp.eq.s32.totalorder %s25, 0
      %p206 = por %p204, %p205
      %p207 = scmp.ne.s32.totalorder %s199, %s201
      %p208 = scmp.eq.s32.totalorder %s30, 3
      %p209 = por %p207, %p208
      %p210 = scmp.ne.s32.totalorder %s201, %s202
      %p211 = scmp.eq.s32.totalorder %s30, 0
      %p212 = por %p210, %p211
      %p213 = scmp.ne.s32.totalorder %s201, %s202
      %p214 = scmp.eq.s32.totalorder %s31, 3
      %p215 = por %p213, %p214
      %p217 = scmp.ne.s32.totalorder %s202, %s216
      %p218 = scmp.eq.s32.totalorder %s31, 0
      %p219 = por %p217, %p218
      %s221 = sadd.s32 %s220, 1
      %p224 = scmp.eq.s32.totalorder %s25, 3
      %p225 = scmp.ne.s32.totalorder %s220, %s222
      %p226 = scmp.eq.s32.totalorder %s25, 0
      %p227 = por %p225, %p226
      %p228 = scmp.ne.s32.totalorder %s220, %s222
      %p229 = scmp.eq.s32.totalorder %s30, 3
      %p230 = por %p228, %p229
      %p231 = scmp.ne.s32.totalorder %s222, %s223
      %p232 = scmp.eq.s32.totalorder %s30, 0
      %p233 = por %p231, %p232
      %p234 = scmp.ne.s32.totalorder %s222, %s223
      %p235 = scmp.eq.s32.totalorder %s31, 3
      %p236 = por %p234, %p235
      %p238 = scmp.ne.s32.totalorder %s223, %s237
      %p239 = scmp.eq.s32.totalorder %s31, 0
      %p240 = por %p238, %p239
      %s242 = sadd.s32 %s241, 1
      %p245 = scmp.eq.s32.totalorder %s25, 3
      %p246 = scmp.ne.s32.totalorder %s241, %s243
      %p247 = scmp.eq.s32.totalorder %s25, 0
      %p248 = por %p246, %p247
      %p249 = scmp.ne.s32.totalorder %s241, %s243
      %p250 = scmp.eq.s32.totalorder %s30, 3
      %p251 = por %p249, %p250
      %p252 = scmp.ne.s32.totalorder %s243, %s244
      %p253 = scmp.eq.s32.totalorder %s30, 0
      %p254 = por %p252, %p253
      %p255 = scmp.ne.s32.totalorder %s243, %s244
      %p256 = scmp.eq.s32.totalorder %s31, 3
      %p257 = por %p255, %p256
      %p259 = scmp.ne.s32.totalorder %s244, %s258
      %p260 = scmp.eq.s32.totalorder %s31, 0
      %p261 = por %p259, %p260
      %s263 = sadd.s32 %s262, 1
      %p266 = scmp.eq.s32.totalorder %s25, 3
      %p267 = scmp.ne.s32.totalorder %s262, %s264
      %p268 = scmp.eq.s32.totalorder %s25, 0
      %p269 = por %p267, %p268
      %p270 = scmp.ne.s32.totalorder %s262, %s264
      %p271 = scmp.eq.s32.totalorder %s30, 3
      %p272 = por %p270, %p271
      %p273 = scmp.ne.s32.totalorder %s264, %s265
      %p274 = scmp.eq.s32.totalorder %s30, 0
      %p275 = por %p273, %p274
      %p276 = scmp.ne.s32.totalorder %s264, %s265
      %p277 = scmp.eq.s32.totalorder %s31, 3
      %p278 = por %p276, %p277
      %p280 = scmp.ne.s32.totalorder %s265, %s279
      %p281 = scmp.eq.s32.totalorder %s31, 0
      %p282 = por %p280, %p281
      %s284 = sadd.s32 %s283, 1
      %p287 = scmp.eq.s32.totalorder %s25, 3
      %p288 = scmp.ne.s32.totalorder %s283, %s285
      %p289 = scmp.eq.s32.totalorder %s25, 0
      %p290 = por %p288, %p289
      %p291 = scmp.ne.s32.totalorder %s283, %s285
      %p292 = scmp.eq.s32.totalorder %s30, 3
      %p293 = por %p291, %p292
      %p294 = scmp.ne.s32.totalorder %s285, %s286
      %p295 = scmp.eq.s32.totalorder %s30, 0
      %p296 = por %p294, %p295
      %p297 = scmp.ne.s32.totalorder %s285, %s286
      %p298 = scmp.eq.s32.totalorder %s31, 3
      %p299 = por %p297, %p298
      %p301 = scmp.ne.s32.totalorder %s286, %s300
      %p302 = scmp.eq.s32.totalorder %s31, 0
      %p303 = por %p301, %p302
      %s305 = sadd.s32 %s304, 1
      %p308 = scmp.eq.s32.totalorder %s25, 3
      %p309 = scmp.ne.s32.totalorder %s304, %s306
      %p310 = scmp.eq.s32.totalorder %s25, 0
      %p311 = por %p309, %p310
      %p312 = scmp.ne.s32.totalorder %s304, %s306
      %p313 = scmp.eq.s32.totalorder %s30, 3
      %p314 = por %p312, %p313
      %p315 = scmp.ne.s32.totalorder %s306, %s307
      %p316 = scmp.eq.s32.totalorder %s30, 0
      %p317 = por %p315, %p316
      %p318 = scmp.ne.s32.totalorder %s306, %s307
      %p319 = scmp.eq.s32.totalorder %s31, 3
      %p320 = por %p318, %p319
      %p322 = scmp.ne.s32.totalorder %s307, %s321
      %p323 = scmp.eq.s32.totalorder %s31, 0
      %p324 = por %p322, %p323
      %s326 = sadd.s32 %s325, 1
      %p329 = scmp.eq.s32.totalorder %s25, 3
      %p330 = scmp.ne.s32.totalorder %s325, %s327
      %p331 = scmp.eq.s32.totalorder %s25, 0
      %p332 = por %p330, %p331
      %p333 = scmp.ne.s32.totalorder %s325, %s327
      %p334 = scmp.eq.s32.totalorder %s30, 3
      %p335 = por %p333, %p334
      %p336 = scmp.ne.s32.totalorder %s327, %s328
      %p337 = scmp.eq.s32.totalorder %s30, 0
      %p338 = por %p336, %p337
      %p339 = scmp.ne.s32.totalorder %s327, %s328
      %p340 = scmp.eq.s32.totalorder %s31, 3
      %p341 = por %p339, %p340
      %p343 = scmp.ne.s32.totalorder %s328, %s342
      %p344 = scmp.eq.s32.totalorder %s31, 0
      %p345 = por %p343, %p344
      %s346 = ssub.s32 %s32, %s44
      %p347 = scmp.eq.s32.totalorder %s346, 0
      %s349 = sadd.s32 %s348, 1
      %s350 = scalar_select %p347, %s348, %s349
      %p353 = pneg %p347
      %p354 = scmp.eq.s32.totalorder %s25, 3
      %p355 = por %p353, %p354
      %p356 = scmp.ne.s32.totalorder %s348, %s351
      %p357 = scmp.eq.s32.totalorder %s25, 0
      %p358 = por %p356, %p357
      %p359 = scmp.ne.s32.totalorder %s348, %s351
      %p360 = scmp.eq.s32.totalorder %s30, 3
      %p361 = por %p359, %p360
      %p362 = scmp.ne.s32.totalorder %s351, %s352
      %p363 = scmp.eq.s32.totalorder %s30, 0
      %p364 = por %p362, %p363
      %p365 = scmp.ne.s32.totalorder %s351, %s352
      %p366 = scmp.eq.s32.totalorder %s31, 3
      %p367 = por %p365, %p366
      %p369 = scmp.ne.s32.totalorder %s352, %s368
      %p370 = scmp.eq.s32.totalorder %s31, 0
      %p371 = por %p369, %p370
      %p372 = scmp.le.s32.totalorder 1, %s25
      %p373 = scmp.lt.s32.totalorder %s25, 5
      %p374 = pnand %p372, %p373
      %p375 = pneg %p374
      // Predicated region
      $region9: #{tpu_custom_call.1} parent=5 // pred_check
        _
      $region10: #{tpu_custom_call.1} parent=5 // pred_check_branch
        %377 = sbr.rel (%p374) target = $region12
      $region11: #{tpu_custom_call.1} parent=5 // pred_region
        %s378 = ssub.s32 %s25, 1
        // Predicated region
        $region13: #{tpu_custom_call.1} parent=11 // pred_check
          %p379 = pneg %p86
        $region14: #{tpu_custom_call.1} parent=11 // pred_check_branch
          %381 = sbr.rel (%p379) target = $region16
        $region15: #{tpu_custom_call.1} parent=11 // pred_region
          _
        $region16: #{tpu_custom_call.1} parent=11 // pred_fallthru
          _
        // Predicated region
        $region17: #{tpu_custom_call.1} parent=11 // pred_check
          %p382 = pneg %p107
        $region18: #{tpu_custom_call.1} parent=11 // pred_check_branch
          %384 = sbr.rel (%p382) target = $region20
        $region19: #{tpu_custom_call.1} parent=11 // pred_region
          _
        $region20: #{tpu_custom_call.1} parent=11 // pred_fallthru
          _
        // Predicated region
        $region21: #{tpu_custom_call.1} parent=11 // pred_check
          %p385 = pneg %p128
        $region22: #{tpu_custom_call.1} parent=11 // pred_check_branch
          %387 = sbr.rel (%p385) target = $region24
        $region23: #{tpu_custom_call.1} parent=11 // pred_region
          _
        $region24: #{tpu_custom_call.1} parent=11 // pred_fallthru
          _
        // Predicated region
        $region25: #{tpu_custom_call.1} parent=11 // pred_check
          %p388 = pneg %p149
        $region26: #{tpu_custom_call.1} parent=11 // pred_check_branch
          %390 = sbr.rel (%p388) target = $region28
        $region27: #{tpu_custom_call.1} parent=11 // pred_region
          _
        $region28: #{tpu_custom_call.1} parent=11 // pred_fallthru
          _
        // Predicated region
        $region29: #{tpu_custom_call.1} parent=11 // pred_check
          %p391 = pneg %p170
        $region30: #{tpu_custom_call.1} parent=11 // pred_check_branch
          %393 = sbr.rel (%p391) target = $region32
        $region31: #{tpu_custom_call.1} parent=11 // pred_region
          %s395 = ssub.s32 8192, 8192
          %396 = vsyncadd [#allocation5], %s395
          %s397 = sshll.u32 [#allocation4], 4
          %s398 = int_to_ptr.vmem [resolvable:$true] %s397
          %403 = dma.hbm_to_vmem [thread:$0]  %s5, 8192, %s398, [#allocation5], 512, 512, 32
        $region32: #{tpu_custom_call.1} parent=11 // pred_fallthru
          _
        // Predicated region
        $region33: #{tpu_custom_call.1} parent=11 // pred_check
          %p404 = pneg %p191
        $region34: #{tpu_custom_call.1} parent=11 // pred_check_branch
          %406 = sbr.rel (%p404) target = $region36
        $region35: #{tpu_custom_call.1} parent=11 // pred_region
          _
        $region36: #{tpu_custom_call.1} parent=11 // pred_fallthru
          _
        // Predicated region
        $region37: #{tpu_custom_call.1} parent=11 // pred_check
          %p407 = pneg %p212
        $region38: #{tpu_custom_call.1} parent=11 // pred_check_branch
          %409 = sbr.rel (%p407) target = $region40
        $region39: #{tpu_custom_call.1} parent=11 // pred_region
          %s411 = ssub.s32 32768, 32768
          %412 = vsyncadd [#allocation8], %s411
          %s413 = sshll.u32 [#allocation7], 4
          %s414 = int_to_ptr.vmem [resolvable:$true] %s413
          %419 = dma.hbm_to_vmem [thread:$0]  %s7, 32768, %s414, [#allocation8], 256, 256, 16
        $region40: #{tpu_custom_call.1} parent=11 // pred_fallthru
          _
        // Predicated region
        $region41: #{tpu_custom_call.1} parent=11 // pred_check
          %p420 = pneg %p233
        $region42: #{tpu_custom_call.1} parent=11 // pred_check_branch
          %422 = sbr.rel (%p420) target = $region44
        $region43: #{tpu_custom_call.1} parent=11 // pred_region
          _
        $region44: #{tpu_custom_call.1} parent=11 // pred_fallthru
          _
        // Predicated region
        $region45: #{tpu_custom_call.1} parent=11 // pred_check
          %p423 = pneg %p254
        $region46: #{tpu_custom_call.1} parent=11 // pred_check_branch
          %425 = sbr.rel (%p423) target = $region48
        $region47: #{tpu_custom_call.1} parent=11 // pred_region
          %s427 = ssub.s32 8192, 8192
          %428 = vsyncadd [#allocation8], %s427
          %s429 = sshll.u32 [#allocation9], 4
          %s430 = int_to_ptr.vmem [resolvable:$true] %s429
          %435 = dma.hbm_to_vmem [thread:$0]  %s9, 8192, %s430, [#allocation8], 128, 128, 8
        $region48: #{tpu_custom_call.1} parent=11 // pred_fallthru
          _
        // Predicated region
        $region49: #{tpu_custom_call.1} parent=11 // pred_check
          %p436 = pneg %p275
        $region50: #{tpu_custom_call.1} parent=11 // pred_check_branch
          %438 = sbr.rel (%p436) target = $region52
        $region51: #{tpu_custom_call.1} parent=11 // pred_region
          _
        $region52: #{tpu_custom_call.1} parent=11 // pred_fallthru
          _
        // Predicated region
        $region53: #{tpu_custom_call.1} parent=11 // pred_check
          %p439 = pneg %p296
        $region54: #{tpu_custom_call.1} parent=11 // pred_check_branch
          %441 = sbr.rel (%p439) target = $region56
        $region55: #{tpu_custom_call.1} parent=11 // pred_region
          _
        $region56: #{tpu_custom_call.1} parent=11 // pred_fallthru
          _
        // Predicated region
        $region57: #{tpu_custom_call.1} parent=11 // pred_check
          %p442 = pneg %p317
        $region58: #{tpu_custom_call.1} parent=11 // pred_check_branch
          %444 = sbr.rel (%p442) target = $region60
        $region59: #{tpu_custom_call.1} parent=11 // pred_region
          _
        $region60: #{tpu_custom_call.1} parent=11 // pred_fallthru
          _
        // Predicated region
        $region61: #{tpu_custom_call.1} parent=11 // pred_check
          %p445 = pneg %p338
        $region62: #{tpu_custom_call.1} parent=11 // pred_check_branch
          %447 = sbr.rel (%p445) target = $region64
        $region63: #{tpu_custom_call.1} parent=11 // pred_region
          _
        $region64: #{tpu_custom_call.1} parent=11 // pred_fallthru
          _
      $region12: #{tpu_custom_call.1} parent=5 // pred_fallthru
        _
      %p448 = scmp.lt.s32.totalorder %s25, 4
      // Predicated region
      $region65: #{tpu_custom_call.1} parent=5 // pred_check
        %p449 = pneg %p448
      $region66: #{tpu_custom_call.1} parent=5 // pred_check_branch
        %451 = sbr.rel (%p449) target = $region68
      $region67: #{tpu_custom_call.1} parent=5 // pred_region
        // Predicated region
        $region69: #{tpu_custom_call.1} parent=67 // pred_check
          %p452 = pneg %p59
        $region70: #{tpu_custom_call.1} parent=67 // pred_check_branch
          %454 = sbr.rel (%p452) target = $region72
        $region71: #{tpu_custom_call.1} parent=67 // pred_region
          %s455 = sand.u32 %s49, 1
          %s456 = sand.u32 %s49, 1
          %s457 = smul.addr %s456, 8
          %s458 = scalar_lea.vmem [#allocation3], %s457
          %s459 = smul.u32 2, %s32
          %s460 = smul.addr %s459, 2
          %s461 = sadd.s32 %s33, %s460
          %s462 = smul.addr %s461, 4
          %s463 = scalar_lea.vmem %s0, %s462
          // Predicated region
          $region73: #{tpu_custom_call.1} parent=71 // pred_check
            _
          $region74: #{tpu_custom_call.1} parent=71 // pred_check_branch
            %465 = sbr.rel (0) target = $region76
          $region75: #{tpu_custom_call.1} parent=71 // pred_region
            // Predicated region
            $region77: #{tpu_custom_call.1} parent=75 // pred_check
              _
            $region78: #{tpu_custom_call.1} parent=75 // pred_check_branch
              %467 = sbr.rel target = $region80
            $region79: #{tpu_custom_call.1} parent=75 // pred_region
              // Predicated region
              $region92: #{tpu_custom_call.1} parent=79 // pred_check
                _
              $region93: #{tpu_custom_call.1} parent=79 // pred_check_branch
                %485 = sbr.rel (0) target = $region95
              $region94: #{tpu_custom_call.1} parent=79 // pred_region
                loop: start=0, step=1, limit=1
                $region96: #{tpu_custom_call.1} parent=94 // loop_pre_header
                  _
                $region97: #{tpu_custom_call.1} parent=94 // loop_header
                  %s487 = sphi 0, %s491
                  %p488 = scmp.ge.s32.totalorder %s487, 1
                  %s492 = sphi %s463, %s463
                  %s493 = sphi %s458, %s458
                $region98: #{tpu_custom_call.1} parent=94 // loop_header_branch
                  %490 = sbr.rel (%p488) target = $region102
                $region99: #{tpu_custom_call.1} parent=94 // loop_body
                  _
                $region100: #{tpu_custom_call.1} parent=94 // loop_footer
                  %s491 = sadd.s32 1, %s487
                $region101: #{tpu_custom_call.1} parent=94 // loop_footer_branch
                  %486 = sbr.rel target = $region97
                $region102: #{tpu_custom_call.1} parent=94 // loop_exit
                  _
                %s495 = ssub.s32 16, 1
                loop: start=0, step=1, limit=1
                $region103: #{tpu_custom_call.1} parent=94 // loop_pre_header
                  _
                $region104: #{tpu_custom_call.1} parent=94 // loop_header
                  %s497 = sphi 0, %s501
                  %p498 = scmp.ge.s32.totalorder %s497, 1
                  %s502 = sphi %s463, %s463
                  %s503 = sphi %s458, %s458
                $region105: #{tpu_custom_call.1} parent=94 // loop_header_branch
                  %500 = sbr.rel (%p498) target = $region109
                $region106: #{tpu_custom_call.1} parent=94 // loop_body
                  %v504 = vld [vmem:[%s502] sm:%s495]
                  %505 = vst [vmem:[%s503] sm:%s495] %v504
                  %v506 = vld [vmem:[%s502 + $0x8] sm:%s495]
                  %507 = vst [vmem:[%s503 + $0x4] sm:%s495] %v506
                $region107: #{tpu_custom_call.1} parent=94 // loop_footer
                  %s501 = sadd.s32 1, %s497
                $region108: #{tpu_custom_call.1} parent=94 // loop_footer_branch
                  %496 = sbr.rel target = $region104
                $region109: #{tpu_custom_call.1} parent=94 // loop_exit
                  _
              $region95: #{tpu_custom_call.1} parent=79 // pred_fallthru
                _
            $region80: #{tpu_custom_call.1} parent=75 // pred_fallthru
              _
            // Predicated region
            $region81: #{tpu_custom_call.1} parent=75 // pred_check
              _
            $region82: #{tpu_custom_call.1} parent=75 // pred_check_branch
              %469 = sbr.rel (0) target = $region84
            $region83: #{tpu_custom_call.1} parent=75 // pred_region
              %s471 = ssub.s32 16, 1
              loop: start=0, step=1, limit=1
              $region85: #{tpu_custom_call.1} parent=83 // loop_pre_header
                _
              $region86: #{tpu_custom_call.1} parent=83 // loop_header
                %s473 = sphi 0, %s477
                %p474 = scmp.ge.s32.totalorder %s473, 1
                %s478 = sphi %s463, %s463
                %s479 = sphi %s458, %s458
              $region87: #{tpu_custom_call.1} parent=83 // loop_header_branch
                %476 = sbr.rel (%p474) target = $region91
              $region88: #{tpu_custom_call.1} parent=83 // loop_body
                %v480 = vld [vmem:[%s478] sm:%s471]
                %481 = vst [vmem:[%s479] sm:%s471] %v480
                %v482 = vld [vmem:[%s478 + $0x8] sm:%s471]
                %483 = vst [vmem:[%s479 + $0x4] sm:%s471] %v482
              $region89: #{tpu_custom_call.1} parent=83 // loop_footer
                %s477 = sadd.s32 1, %s473
              $region90: #{tpu_custom_call.1} parent=83 // loop_footer_branch
                %472 = sbr.rel target = $region86
              $region91: #{tpu_custom_call.1} parent=83 // loop_exit
                _
            $region84: #{tpu_custom_call.1} parent=75 // pred_fallthru
              _
          $region76: #{tpu_custom_call.1} parent=71 // pred_fallthru
            _
          %508 = vnop
        $region72: #{tpu_custom_call.1} parent=67 // pred_fallthru
          _
      $region68: #{tpu_custom_call.1} parent=5 // pred_fallthru
        _
      %p509 = scmp.le.s32.totalorder 1, %s25
      %p510 = scmp.lt.s32.totalorder %s25, 5
      %p511 = pnand %p509, %p510
      %p512 = pneg %p511
      // Predicated region
      $region110: #{tpu_custom_call.1} parent=5 // pred_check
        _
      $region111: #{tpu_custom_call.1} parent=5 // pred_check_branch
        %514 = sbr.rel (%p511) target = $region113
      $region112: #{tpu_custom_call.1} parent=5 // pred_region
        %s515 = ssub.s32 %s25, 1
        %s516 = sand.u32 %s52, 1
        %s517 = sand.u32 %s52, 1
        %s518 = smul.addr %s517, 8
        %s519 = scalar_lea.vmem [#allocation3], %s518
        // Predicated region
        $region114: #{tpu_custom_call.1} parent=112 // pred_check
          %p520 = pneg %p65
        $region115: #{tpu_custom_call.1} parent=112 // pred_check_branch
          %522 = sbr.rel (%p520) target = $region117
        $region116: #{tpu_custom_call.1} parent=112 // pred_region
          _
        $region117: #{tpu_custom_call.1} parent=112 // pred_fallthru
          _
        // Predicated region
        $region118: #{tpu_custom_call.1} parent=112 // pred_check
          %p523 = pneg %p170
        $region119: #{tpu_custom_call.1} parent=112 // pred_check_branch
          %525 = sbr.rel (%p523) target = $region121
        $region120: #{tpu_custom_call.1} parent=112 // pred_region
          %526 = dma.done [#allocation5], 8192
        $region121: #{tpu_custom_call.1} parent=112 // pred_fallthru
          _
        // Predicated region
        $region122: #{tpu_custom_call.1} parent=112 // pred_check
          %p527 = pneg %p212
        $region123: #{tpu_custom_call.1} parent=112 // pred_check_branch
          %529 = sbr.rel (%p527) target = $region125
        $region124: #{tpu_custom_call.1} parent=112 // pred_region
          %530 = dma.done [#allocation8], 32768
        $region125: #{tpu_custom_call.1} parent=112 // pred_fallthru
          _
        // Predicated region
        $region126: #{tpu_custom_call.1} parent=112 // pred_check
          %p531 = pneg %p254
        $region127: #{tpu_custom_call.1} parent=112 // pred_check_branch
          %533 = sbr.rel (%p531) target = $region129
        $region128: #{tpu_custom_call.1} parent=112 // pred_region
          %534 = dma.done [#allocation8], 8192
        $region129: #{tpu_custom_call.1} parent=112 // pred_fallthru
          _
        %s535 = sand.u32 %s52, 1
        %s536 = sand.u32 %s52, 1
        %s537 = smul.addr %s536, 8
        %s538 = scalar_lea.vmem [#allocation3], %s537
        %p539 = pneg %p65
        %p540 = pneg %p62
        %p541 = pneg %p86
        %p542 = pneg %p83
        %p543 = pneg %p107
        %p544 = pneg %p104
        %p545 = pneg %p128
        %p546 = pneg %p125
        %p547 = pneg %p149
        %p548 = pneg %p146
        %p549 = pneg %p170
        %p550 = pneg %p167
        %p551 = pneg %p191
        %p552 = pneg %p188
        %p553 = pneg %p212
        %p554 = pneg %p209
        %p555 = pneg %p233
        %p556 = pneg %p230
        %p557 = pneg %p254
        %p558 = pneg %p251
        %p559 = pneg %p275
        %p560 = pneg %p272
        %p561 = pneg %p296
        %p562 = pneg %p293
        %p563 = pneg %p317
        %p564 = pneg %p314
        %p565 = pneg %p338
        %p566 = pneg %p335
        %p567 = pneg %p364
        %p568 = pneg %p361
        %s569 = sand.u32 %s351, 1
        %s570 = scalar_lea.sflag [#allocation6], %s569
        %s571 = sand.u32 %s351, 1
        %s572 = smul.addr %s571, 2
        %s573 = scalar_lea.vmem [#allocation10], %s572
        %s574 = smul.u32 2, %s34
        %v576 = vld [vmem:[%s519] sm:$0xf]
        %577 = vxpose.xlu0.b32.start [1/16] %v576, 128
        %578 = vxpose.xlu0.b32.cont [2/16] 0.0, 128
        %579 = vxpose.xlu0.b32.cont [3/16] 0.0, 128
        %580 = vxpose.xlu0.b32.cont [4/16] 0.0, 128
        %581 = vxpose.xlu0.b32.cont [5/16] 0.0, 128
        %582 = vxpose.xlu0.b32.cont [6/16] 0.0, 128
        %583 = vxpose.xlu0.b32.cont [7/16] 0.0, 128
        %584 = vxpose.xlu0.b32.cont [8/16] 0.0, 128
        %585 = vxpose.xlu0.b32.cont [9/16] 0.0, 128
        %586 = vxpose.xlu0.b32.cont [10/16] 0.0, 128
        %587 = vxpose.xlu0.b32.cont [11/16] 0.0, 128
        %588 = vxpose.xlu0.b32.cont [12/16] 0.0, 128
        %589 = vxpose.xlu0.b32.cont [13/16] 0.0, 128
        %590 = vxpose.xlu0.b32.cont [14/16] 0.0, 128
        %591 = vxpose.xlu0.b32.cont [15/16] 0.0, 128
        %592 = vxpose.xlu0.b32.end [16/16] 0.0, 128
        %v593 = vpop.trf.xlu0
        %v594 = vpop.trf.xlu0
        %v595 = vpop.trf.xlu0
        %v596 = vpop.trf.xlu0
        %v597 = vpop.trf.xlu0
        %v598 = vpop.trf.xlu0
        %v599 = vpop.trf.xlu0
        %v600 = vpop.trf.xlu0
        %v601 = vpop.trf.xlu0
        %v602 = vpop.trf.xlu0
        %v603 = vpop.trf.xlu0
        %v604 = vpop.trf.xlu0
        %v605 = vpop.trf.xlu0
        %v606 = vpop.trf.xlu0
        %v607 = vpop.trf.xlu0
        %v608 = vpop.trf.xlu0
        %s609 = scalar_lea.vmem %s519, 4 [#allocation3]
        %v610 = vld [vmem:[%s609] sm:$0xf]
        %611 = vxpose.xlu0.b32.start [1/16] %v610, 128
        %612 = vxpose.xlu0.b32.cont [2/16] 0.0, 128
        %613 = vxpose.xlu0.b32.cont [3/16] 0.0, 128
        %614 = vxpose.xlu0.b32.cont [4/16] 0.0, 128
        %615 = vxpose.xlu0.b32.cont [5/16] 0.0, 128
        %616 = vxpose.xlu0.b32.cont [6/16] 0.0, 128
        %617 = vxpose.xlu0.b32.cont [7/16] 0.0, 128
        %618 = vxpose.xlu0.b32.cont [8/16] 0.0, 128
        %619 = vxpose.xlu0.b32.cont [9/16] 0.0, 128
        %620 = vxpose.xlu0.b32.cont [10/16] 0.0, 128
        %621 = vxpose.xlu0.b32.cont [11/16] 0.0, 128
        %622 = vxpose.xlu0.b32.cont [12/16] 0.0, 128
        %623 = vxpose.xlu0.b32.cont [13/16] 0.0, 128
        %624 = vxpose.xlu0.b32.cont [14/16] 0.0, 128
        %625 = vxpose.xlu0.b32.cont [15/16] 0.0, 128
        %626 = vxpose.xlu0.b32.end [16/16] 0.0, 128
        %v627 = vpop.trf.xlu0
        %v628 = vpop.trf.xlu0
        %v629 = vpop.trf.xlu0
        %v630 = vpop.trf.xlu0
        %v631 = vpop.trf.xlu0
        %v632 = vpop.trf.xlu0
        %v633 = vpop.trf.xlu0
        %v634 = vpop.trf.xlu0
        %v635 = vpop.trf.xlu0
        %v636 = vpop.trf.xlu0
        %v637 = vpop.trf.xlu0
        %v638 = vpop.trf.xlu0
        %v639 = vpop.trf.xlu0
        %v640 = vpop.trf.xlu0
        %v641 = vpop.trf.xlu0
        %v642 = vpop.trf.xlu0
        %v643 = vpack.c.bf16 %v594, %v593
        %v644 = vpack.c.bf16 %v596, %v595
        %v645 = vpack.c.bf16 %v598, %v597
        %v646 = vpack.c.bf16 %v600, %v599
        %v647 = vpack.c.bf16 %v602, %v601
        %v648 = vpack.c.bf16 %v604, %v603
        %v649 = vpack.c.bf16 %v606, %v605
        %v650 = vpack.c.bf16 %v608, %v607
        %v651 = vpack.c.bf16 %v628, %v627
        %v652 = vpack.c.bf16 %v630, %v629
        %v653 = vpack.c.bf16 %v632, %v631
        %v654 = vpack.c.bf16 %v634, %v633
        %v655 = vpack.c.bf16 %v636, %v635
        %v656 = vpack.c.bf16 %v638, %v637
        %v657 = vpack.c.bf16 %v640, %v639
        %v658 = vpack.c.bf16 %v642, %v641
        %v659 = vld [vmem:[%s1] sm:$0x3]
        %v660 = vld [vmem:[%s2] sm:$0x1]
        %v662 = vlaneseq
        %v663 = vshrl.u32 %v662, 7
        %v664 = vsub.s32 0, %v663
        %v665 = vrot.slane %v660, %v664
        %vm667 = vcmask 31744
        %v669 = vsel %vm667, %v643, 0
        %v672 = vsel %vm667, %v644, 0
        %v675 = vsel %vm667, %v645, 0
        %v678 = vsel %vm667, %v646, 0
        %v681 = vsel %vm667, %v647, 0
        %v684 = vsel %vm667, %v648, 0
        %v687 = vsel %vm667, %v649, 0
        %v690 = vsel %vm667, %v650, 0
        %v693 = vsel %vm667, %v651, 0
        %v696 = vsel %vm667, %v652, 0
        %v699 = vsel %vm667, %v653, 0
        %v702 = vsel %vm667, %v654, 0
        %v705 = vsel %vm667, %v655, 0
        %v708 = vsel %vm667, %v656, 0
        %v711 = vsel %vm667, %v657, 0
        %v714 = vsel %vm667, %v658, 0
        %vm716 = vcmask 1041408
        %v718 = vsel %vm716, %v659, 0
        %720 = vmatprep.subr.bf16.mxu0 0
        %721 = vmatpush1.bf16.msra.mxu0 0
        %722 = vmatprep.subr.bf16.mxu0 0
        %723 = vmatpush1.bf16.msra.mxu0 0
        %724 = vmatprep.subr.bf16.mxu0 0
        %725 = vmatpush1.bf16.msra.mxu0 0
        %726 = vmatprep.subr.bf16.mxu0 0
        %727 = vmatpush1.bf16.msra.mxu0 0
        %728 = vmatprep.subr.bf16.mxu0 0
        %729 = vmatpush1.bf16.msra.mxu0 0
        %730 = vmatprep.subr.bf16.mxu0 0
        %731 = vmatpush1.bf16.msra.mxu0 0
        %732 = vmatprep.subr.bf16.mxu0 0
        %733 = vmatpush1.bf16.msra.mxu0 0
        %734 = vmatprep.subr.bf16.mxu0 0
        %735 = vmatpush1.bf16.msra.mxu0 %v718
        %736 = vmatprep.subr.bf16.mxu0 0
        %737 = vmatpush2.bf16.msra.mxu0 0
        %738 = vmatprep.subr.bf16.mxu0 0
        %739 = vmatpush2.bf16.msra.mxu0 0
        %740 = vmatprep.subr.bf16.mxu0 0
        %741 = vmatpush2.bf16.msra.mxu0 0
        %742 = vmatprep.subr.bf16.mxu0 0
        %743 = vmatpush2.bf16.msra.mxu0 0
        %744 = vmatprep.subr.bf16.mxu0 0
        %745 = vmatpush2.bf16.msra.mxu0 0
        %746 = vmatprep.subr.bf16.mxu0 0
        %747 = vmatpush2.bf16.msra.mxu0 0
        %748 = vmatprep.subr.bf16.mxu0 0
        %749 = vmatpush2.bf16.msra.mxu0 0
        %750 = vmatprep.subr.bf16.mxu0 0
        %751 = vmatpush2.bf16.msra.mxu0 0
        %752 = vmatprep.mubr.bf16.mxu0 0
        %753 = vmatmul.mubr.bf16.gmra.mxu0 %v669
        %v754 = vpop.f32.mrf.mxu0
        %v755 = vadd.f32 %v665, %v754
        %v756 = vpop.f32.mrf.mxu0
        %v757 = vpop.f32.mrf.mxu0
        %v758 = vadd.f32 %v665, %v757
        %v759 = vpop.f32.mrf.mxu0
        %760 = vmatprep.mubr.bf16.mxu0 0
        %761 = vmatmul.mubr.bf16.gmra.mxu0 %v672
        %v762 = vpop.f32.mrf.mxu0
        %v763 = vadd.f32 %v665, %v762
        %v764 = vpop.f32.mrf.mxu0
        %v765 = vpop.f32.mrf.mxu0
        %v766 = vadd.f32 %v665, %v765
        %v767 = vpop.f32.mrf.mxu0
        %768 = vmatprep.mubr.bf16.mxu0 0
        %769 = vmatmul.mubr.bf16.gmra.mxu0 %v675
        %v770 = vpop.f32.mrf.mxu0
        %v771 = vadd.f32 %v665, %v770
        %v772 = vpop.f32.mrf.mxu0
        %v773 = vpop.f32.mrf.mxu0
        %v774 = vadd.f32 %v665, %v773
        %v775 = vpop.f32.mrf.mxu0
        %776 = vmatprep.mubr.bf16.mxu0 0
        %777 = vmatmul.mubr.bf16.gmra.mxu0 %v678
        %v778 = vpop.f32.mrf.mxu0
        %v779 = vadd.f32 %v665, %v778
        %v780 = vpop.f32.mrf.mxu0
        %v781 = vpop.f32.mrf.mxu0
        %v782 = vadd.f32 %v665, %v781
        %v783 = vpop.f32.mrf.mxu0
        %784 = vmatprep.mubr.bf16.mxu0 0
        %785 = vmatmul.mubr.bf16.gmra.mxu0 %v681
        %v786 = vpop.f32.mrf.mxu0
        %v787 = vadd.f32 %v665, %v786
        %v788 = vpop.f32.mrf.mxu0
        %v789 = vpop.f32.mrf.mxu0
        %v790 = vadd.f32 %v665, %v789
        %v791 = vpop.f32.mrf.mxu0
        %792 = vmatprep.mubr.bf16.mxu0 0
        %793 = vmatmul.mubr.bf16.gmra.mxu0 %v684
        %v794 = vpop.f32.mrf.mxu0
        %v795 = vadd.f32 %v665, %v794
        %v796 = vpop.f32.mrf.mxu0
        %v797 = vpop.f32.mrf.mxu0
        %v798 = vadd.f32 %v665, %v797
        %v799 = vpop.f32.mrf.mxu0
        %800 = vmatprep.mubr.bf16.mxu0 0
        %801 = vmatmul.mubr.bf16.gmra.mxu0 %v687
        %v802 = vpop.f32.mrf.mxu0
        %v803 = vadd.f32 %v665, %v802
        %v804 = vpop.f32.mrf.mxu0
        %v805 = vpop.f32.mrf.mxu0
        %v806 = vadd.f32 %v665, %v805
        %v807 = vpop.f32.mrf.mxu0
        %808 = vmatprep.mubr.bf16.mxu0 0
        %809 = vmatmul.mubr.bf16.gmra.mxu0 %v690
        %v810 = vpop.f32.mrf.mxu0
        %v811 = vadd.f32 %v665, %v810
        %v812 = vpop.f32.mrf.mxu0
        %v813 = vpop.f32.mrf.mxu0
        %v814 = vadd.f32 %v665, %v813
        %v815 = vpop.f32.mrf.mxu0
        %816 = vmatprep.mubr.bf16.mxu0 0
        %817 = vmatmul.mubr.bf16.gmra.mxu0 %v693
        %v818 = vpop.f32.mrf.mxu0
        %v819 = vadd.f32 %v665, %v818
        %v820 = vpop.f32.mrf.mxu0
        %v821 = vpop.f32.mrf.mxu0
        %v822 = vadd.f32 %v665, %v821
        %v823 = vpop.f32.mrf.mxu0
        %824 = vmatprep.mubr.bf16.mxu0 0
        %825 = vmatmul.mubr.bf16.gmra.mxu0 %v696
        %v826 = vpop.f32.mrf.mxu0
        %v827 = vadd.f32 %v665, %v826
        %v828 = vpop.f32.mrf.mxu0
        %v829 = vpop.f32.mrf.mxu0
        %v830 = vadd.f32 %v665, %v829
        %v831 = vpop.f32.mrf.mxu0
        %832 = vmatprep.mubr.bf16.mxu0 0
        %833 = vmatmul.mubr.bf16.gmra.mxu0 %v699
        %v834 = vpop.f32.mrf.mxu0
        %v835 = vadd.f32 %v665, %v834
        %v836 = vpop.f32.mrf.mxu0
        %v837 = vpop.f32.mrf.mxu0
        %v838 = vadd.f32 %v665, %v837
        %v839 = vpop.f32.mrf.mxu0
        %840 = vmatprep.mubr.bf16.mxu0 0
        %841 = vmatmul.mubr.bf16.gmra.mxu0 %v702
        %v842 = vpop.f32.mrf.mxu0
        %v843 = vadd.f32 %v665, %v842
        %v844 = vpop.f32.mrf.mxu0
        %v845 = vpop.f32.mrf.mxu0
        %v846 = vadd.f32 %v665, %v845
        %v847 = vpop.f32.mrf.mxu0
        %848 = vmatprep.mubr.bf16.mxu0 0
        %849 = vmatmul.mubr.bf16.gmra.mxu0 %v705
        %v850 = vpop.f32.mrf.mxu0
        %v851 = vadd.f32 %v665, %v850
        %v852 = vpop.f32.mrf.mxu0
        %v853 = vpop.f32.mrf.mxu0
        %v854 = vadd.f32 %v665, %v853
        %v855 = vpop.f32.mrf.mxu0
        %856 = vmatprep.mubr.bf16.mxu0 0
        %857 = vmatmul.mubr.bf16.gmra.mxu0 %v708
        %v858 = vpop.f32.mrf.mxu0
        %v859 = vadd.f32 %v665, %v858
        %v860 = vpop.f32.mrf.mxu0
        %v861 = vpop.f32.mrf.mxu0
        %v862 = vadd.f32 %v665, %v861
        %v863 = vpop.f32.mrf.mxu0
        %864 = vmatprep.mubr.bf16.mxu0 0
        %865 = vmatmul.mubr.bf16.gmra.mxu0 %v711
        %v866 = vpop.f32.mrf.mxu0
        %v867 = vadd.f32 %v665, %v866
        %v868 = vpop.f32.mrf.mxu0
        %v869 = vpop.f32.mrf.mxu0
        %v870 = vadd.f32 %v665, %v869
        %v871 = vpop.f32.mrf.mxu0
        %872 = vmatprep.mubr.bf16.mxu0 0
        %873 = vmatmul.mubr.bf16.gmra.mxu0 %v714
        %v874 = vpop.f32.mrf.mxu0
        %v875 = vadd.f32 %v665, %v874
        %v876 = vpop.f32.mrf.mxu0
        %v877 = vpop.f32.mrf.mxu0
        %v878 = vadd.f32 %v665, %v877
        %v879 = vpop.f32.mrf.mxu0
        %880 = vdwg.mxu0
        %v881 = vmax.f32 %v755, 0.0
        %v882 = vmax.f32 %v758, 0.0
        %v883 = vmax.f32 %v763, 0.0
        %v884 = vmax.f32 %v766, 0.0
        %v885 = vmax.f32 %v771, 0.0
        %v886 = vmax.f32 %v774, 0.0
        %v887 = vmax.f32 %v779, 0.0
        %v888 = vmax.f32 %v782, 0.0
        %v889 = vmax.f32 %v787, 0.0
        %v890 = vmax.f32 %v790, 0.0
        %v891 = vmax.f32 %v795, 0.0
        %v892 = vmax.f32 %v798, 0.0
        %v893 = vmax.f32 %v803, 0.0
        %v894 = vmax.f32 %v806, 0.0
        %v895 = vmax.f32 %v811, 0.0
        %v896 = vmax.f32 %v814, 0.0
        %v897 = vmax.f32 %v819, 0.0
        %v898 = vmax.f32 %v822, 0.0
        %v899 = vmax.f32 %v827, 0.0
        %v900 = vmax.f32 %v830, 0.0
        %v901 = vmax.f32 %v835, 0.0
        %v902 = vmax.f32 %v838, 0.0
        %v903 = vmax.f32 %v843, 0.0
        %v904 = vmax.f32 %v846, 0.0
        %v905 = vmax.f32 %v851, 0.0
        %v906 = vmax.f32 %v854, 0.0
        %v907 = vmax.f32 %v859, 0.0
        %v908 = vmax.f32 %v862, 0.0
        %v909 = vmax.f32 %v867, 0.0
        %v910 = vmax.f32 %v870, 0.0
        %v911 = vmax.f32 %v875, 0.0
        %v912 = vmax.f32 %v878, 0.0
        %v913 = vpack.c.bf16 %v882, %v881
        %v914 = vpack.c.bf16 %v884, %v883
        %v915 = vpack.c.bf16 %v886, %v885
        %v916 = vpack.c.bf16 %v888, %v887
        %v917 = vpack.c.bf16 %v890, %v889
        %v918 = vpack.c.bf16 %v892, %v891
        %v919 = vpack.c.bf16 %v894, %v893
        %v920 = vpack.c.bf16 %v896, %v895
        %v921 = vpack.c.bf16 %v898, %v897
        %v922 = vpack.c.bf16 %v900, %v899
        %v923 = vpack.c.bf16 %v902, %v901
        %v924 = vpack.c.bf16 %v904, %v903
        %v925 = vpack.c.bf16 %v906, %v905
        %v926 = vpack.c.bf16 %v908, %v907
        %v927 = vpack.c.bf16 %v910, %v909
        %v928 = vpack.c.bf16 %v912, %v911
        %v929 = vld [vmem:[%s3] sm:$0xf]
        %v930 = vld [vmem:[%s3 + $0x4] sm:$0xf]
        %v931 = vld [vmem:[%s3 + $0x8] sm:$0xf]
        %v932 = vld [vmem:[%s3 + $0xc] sm:$0xf]
        %v933 = vld [vmem:[%s3 + $0x10] sm:$0xf]
        %v934 = vld [vmem:[%s3 + $0x14] sm:$0xf]
        %v935 = vld [vmem:[%s3 + $0x18] sm:$0xf]
        %v936 = vld [vmem:[%s3 + $0x1c] sm:$0xf]
        %v937 = vld [vmem:[%s4] sm:$0x1]
        %v939 = vlaneseq
        %v940 = vshrl.u32 %v939, 7
        %v941 = vsub.s32 0, %v940
        %v942 = vrot.slane %v937, %v941
        %v952 = vunpack.c.l.b16 %v929
        %v953 = vunpack.c.l.b16 %v930
        %v954 = vunpack.c.l.b16 %v931
        %v955 = vunpack.c.l.b16 %v932
        %v956 = vunpack.c.l.b16 %v933
        %v957 = vunpack.c.l.b16 %v934
        %v958 = vunpack.c.l.b16 %v935
        %v959 = vunpack.c.l.b16 %v936
        %v960 = vpack.c.b16 %v953, %v952
        %v961 = vpack.c.b16 %v955, %v954
        %v962 = vpack.c.b16 %v957, %v956
        %v963 = vpack.c.b16 %v959, %v958
        %vm968 = vcmask 523264
        %v970 = vsel %vm968, %v913, 0
        %v973 = vsel %vm968, %v914, 0
        %v976 = vsel %vm968, %v915, 0
        %v979 = vsel %vm968, %v916, 0
        %v982 = vsel %vm968, %v917, 0
        %v985 = vsel %vm968, %v918, 0
        %v988 = vsel %vm968, %v919, 0
        %v991 = vsel %vm968, %v920, 0
        %v994 = vsel %vm968, %v921, 0
        %v997 = vsel %vm968, %v922, 0
        %v1000 = vsel %vm968, %v923, 0
        %v1003 = vsel %vm968, %v924, 0
        %v1006 = vsel %vm968, %v925, 0
        %v1009 = vsel %vm968, %v926, 0
        %v1012 = vsel %vm968, %v927, 0
        %v1015 = vsel %vm968, %v928, 0
        %1017 = vmatprep.subr.bf16.mxu0 0
        %1018 = vmatpush1.bf16.msra.mxu0 0
        %1019 = vmatprep.subr.bf16.mxu0 0
        %1020 = vmatpush1.bf16.msra.mxu0 0
        %1021 = vmatprep.subr.bf16.mxu0 0
        %1022 = vmatpush1.bf16.msra.mxu0 0
        %1023 = vmatprep.subr.bf16.mxu0 0
        %1024 = vmatpush1.bf16.msra.mxu0 0
        %1025 = vmatprep.subr.bf16.mxu0 0
        %1026 = vmatpush1.bf16.msra.mxu0 %v963
        %1027 = vmatprep.subr.bf16.mxu0 0
        %1028 = vmatpush1.bf16.msra.mxu0 %v962
        %1029 = vmatprep.subr.bf16.mxu0 0
        %1030 = vmatpush1.bf16.msra.mxu0 %v961
        %1031 = vmatprep.subr.bf16.mxu0 0
        %1032 = vmatpush1.bf16.msra.mxu0 %v960
        %1033 = vmatprep.subr.bf16.mxu0 0
        %1034 = vmatpush2.bf16.msra.mxu0 0
        %1035 = vmatprep.subr.bf16.mxu0 0
        %1036 = vmatpush2.bf16.msra.mxu0 0
        %1037 = vmatprep.subr.bf16.mxu0 0
        %1038 = vmatpush2.bf16.msra.mxu0 0
        %1039 = vmatprep.subr.bf16.mxu0 0
        %1040 = vmatpush2.bf16.msra.mxu0 0
        %1041 = vmatprep.subr.bf16.mxu0 0
        %1042 = vmatpush2.bf16.msra.mxu0 0
        %1043 = vmatprep.subr.bf16.mxu0 0
        %1044 = vmatpush2.bf16.msra.mxu0 0
        %1045 = vmatprep.subr.bf16.mxu0 0
        %1046 = vmatpush2.bf16.msra.mxu0 0
        %1047 = vmatprep.subr.bf16.mxu0 0
        %1048 = vmatpush2.bf16.msra.mxu0 0
        %1049 = vmatprep.mubr.bf16.mxu0 0
        %1050 = vmatmul.mubr.bf16.gmra.mxu0 %v970
        %v1051 = vpop.f32.mrf.mxu0
        %v1052 = vadd.f32 %v942, %v1051
        %v1053 = vpop.f32.mrf.mxu0
        %v1054 = vpop.f32.mrf.mxu0
        %v1055 = vadd.f32 %v942, %v1054
        %v1056 = vpop.f32.mrf.mxu0
        %1057 = vmatprep.mubr.bf16.mxu0 0
        %1058 = vmatmul.mubr.bf16.gmra.mxu0 %v973
        %v1059 = vpop.f32.mrf.mxu0
        %v1060 = vadd.f32 %v942, %v1059
        %v1061 = vpop.f32.mrf.mxu0
        %v1062 = vpop.f32.mrf.mxu0
        %v1063 = vadd.f32 %v942, %v1062
        %v1064 = vpop.f32.mrf.mxu0
        %1065 = vmatprep.mubr.bf16.mxu0 0
        %1066 = vmatmul.mubr.bf16.gmra.mxu0 %v976
        %v1067 = vpop.f32.mrf.mxu0
        %v1068 = vadd.f32 %v942, %v1067
        %v1069 = vpop.f32.mrf.mxu0
        %v1070 = vpop.f32.mrf.mxu0
        %v1071 = vadd.f32 %v942, %v1070
        %v1072 = vpop.f32.mrf.mxu0
        %1073 = vmatprep.mubr.bf16.mxu0 0
        %1074 = vmatmul.mubr.bf16.gmra.mxu0 %v979
        %v1075 = vpop.f32.mrf.mxu0
        %v1076 = vadd.f32 %v942, %v1075
        %v1077 = vpop.f32.mrf.mxu0
        %v1078 = vpop.f32.mrf.mxu0
        %v1079 = vadd.f32 %v942, %v1078
        %v1080 = vpop.f32.mrf.mxu0
        %1081 = vmatprep.mubr.bf16.mxu0 0
        %1082 = vmatmul.mubr.bf16.gmra.mxu0 %v982
        %v1083 = vpop.f32.mrf.mxu0
        %v1084 = vadd.f32 %v942, %v1083
        %v1085 = vpop.f32.mrf.mxu0
        %v1086 = vpop.f32.mrf.mxu0
        %v1087 = vadd.f32 %v942, %v1086
        %v1088 = vpop.f32.mrf.mxu0
        %1089 = vmatprep.mubr.bf16.mxu0 0
        %1090 = vmatmul.mubr.bf16.gmra.mxu0 %v985
        %v1091 = vpop.f32.mrf.mxu0
        %v1092 = vadd.f32 %v942, %v1091
        %v1093 = vpop.f32.mrf.mxu0
        %v1094 = vpop.f32.mrf.mxu0
        %v1095 = vadd.f32 %v942, %v1094
        %v1096 = vpop.f32.mrf.mxu0
        %1097 = vmatprep.mubr.bf16.mxu0 0
        %1098 = vmatmul.mubr.bf16.gmra.mxu0 %v988
        %v1099 = vpop.f32.mrf.mxu0
        %v1100 = vadd.f32 %v942, %v1099
        %v1101 = vpop.f32.mrf.mxu0
        %v1102 = vpop.f32.mrf.mxu0
        %v1103 = vadd.f32 %v942, %v1102
        %v1104 = vpop.f32.mrf.mxu0
        %1105 = vmatprep.mubr.bf16.mxu0 0
        %1106 = vmatmul.mubr.bf16.gmra.mxu0 %v991
        %v1107 = vpop.f32.mrf.mxu0
        %v1108 = vadd.f32 %v942, %v1107
        %v1109 = vpop.f32.mrf.mxu0
        %v1110 = vpop.f32.mrf.mxu0
        %v1111 = vadd.f32 %v942, %v1110
        %v1112 = vpop.f32.mrf.mxu0
        %1113 = vmatprep.mubr.bf16.mxu0 0
        %1114 = vmatmul.mubr.bf16.gmra.mxu0 %v994
        %v1115 = vpop.f32.mrf.mxu0
        %v1116 = vadd.f32 %v942, %v1115
        %v1117 = vpop.f32.mrf.mxu0
        %v1118 = vpop.f32.mrf.mxu0
        %v1119 = vadd.f32 %v942, %v1118
        %v1120 = vpop.f32.mrf.mxu0
        %1121 = vmatprep.mubr.bf16.mxu0 0
        %1122 = vmatmul.mubr.bf16.gmra.mxu0 %v997
        %v1123 = vpop.f32.mrf.mxu0
        %v1124 = vadd.f32 %v942, %v1123
        %v1125 = vpop.f32.mrf.mxu0
        %v1126 = vpop.f32.mrf.mxu0
        %v1127 = vadd.f32 %v942, %v1126
        %v1128 = vpop.f32.mrf.mxu0
        %1129 = vmatprep.mubr.bf16.mxu0 0
        %1130 = vmatmul.mubr.bf16.gmra.mxu0 %v1000
        %v1131 = vpop.f32.mrf.mxu0
        %v1132 = vadd.f32 %v942, %v1131
        %v1133 = vpop.f32.mrf.mxu0
        %v1134 = vpop.f32.mrf.mxu0
        %v1135 = vadd.f32 %v942, %v1134
        %v1136 = vpop.f32.mrf.mxu0
        %1137 = vmatprep.mubr.bf16.mxu0 0
        %1138 = vmatmul.mubr.bf16.gmra.mxu0 %v1003
        %v1139 = vpop.f32.mrf.mxu0
        %v1140 = vadd.f32 %v942, %v1139
        %v1141 = vpop.f32.mrf.mxu0
        %v1142 = vpop.f32.mrf.mxu0
        %v1143 = vadd.f32 %v942, %v1142
        %v1144 = vpop.f32.mrf.mxu0
        %1145 = vmatprep.mubr.bf16.mxu0 0
        %1146 = vmatmul.mubr.bf16.gmra.mxu0 %v1006
        %v1147 = vpop.f32.mrf.mxu0
        %v1148 = vadd.f32 %v942, %v1147
        %v1149 = vpop.f32.mrf.mxu0
        %v1150 = vpop.f32.mrf.mxu0
        %v1151 = vadd.f32 %v942, %v1150
        %v1152 = vpop.f32.mrf.mxu0
        %1153 = vmatprep.mubr.bf16.mxu0 0
        %1154 = vmatmul.mubr.bf16.gmra.mxu0 %v1009
        %v1155 = vpop.f32.mrf.mxu0
        %v1156 = vadd.f32 %v942, %v1155
        %v1157 = vpop.f32.mrf.mxu0
        %v1158 = vpop.f32.mrf.mxu0
        %v1159 = vadd.f32 %v942, %v1158
        %v1160 = vpop.f32.mrf.mxu0
        %1161 = vmatprep.mubr.bf16.mxu0 0
        %1162 = vmatmul.mubr.bf16.gmra.mxu0 %v1012
        %v1163 = vpop.f32.mrf.mxu0
        %v1164 = vadd.f32 %v942, %v1163
        %v1165 = vpop.f32.mrf.mxu0
        %v1166 = vpop.f32.mrf.mxu0
        %v1167 = vadd.f32 %v942, %v1166
        %v1168 = vpop.f32.mrf.mxu0
        %1169 = vmatprep.mubr.bf16.mxu0 0
        %1170 = vmatmul.mubr.bf16.gmra.mxu0 %v1015
        %v1171 = vpop.f32.mrf.mxu0
        %v1172 = vadd.f32 %v942, %v1171
        %v1173 = vpop.f32.mrf.mxu0
        %v1174 = vpop.f32.mrf.mxu0
        %v1175 = vadd.f32 %v942, %v1174
        %v1176 = vpop.f32.mrf.mxu0
        %1177 = vdwg.mxu0
        %v1178 = vmax.f32 %v1052, 0.0
        %v1179 = vmax.f32 %v1055, 0.0
        %v1180 = vmax.f32 %v1060, 0.0
        %v1181 = vmax.f32 %v1063, 0.0
        %v1182 = vmax.f32 %v1068, 0.0
        %v1183 = vmax.f32 %v1071, 0.0
        %v1184 = vmax.f32 %v1076, 0.0
        %v1185 = vmax.f32 %v1079, 0.0
        %v1186 = vmax.f32 %v1084, 0.0
        %v1187 = vmax.f32 %v1087, 0.0
        %v1188 = vmax.f32 %v1092, 0.0
        %v1189 = vmax.f32 %v1095, 0.0
        %v1190 = vmax.f32 %v1100, 0.0
        %v1191 = vmax.f32 %v1103, 0.0
        %v1192 = vmax.f32 %v1108, 0.0
        %v1193 = vmax.f32 %v1111, 0.0
        %v1194 = vmax.f32 %v1116, 0.0
        %v1195 = vmax.f32 %v1119, 0.0
        %v1196 = vmax.f32 %v1124, 0.0
        %v1197 = vmax.f32 %v1127, 0.0
        %v1198 = vmax.f32 %v1132, 0.0
        %v1199 = vmax.f32 %v1135, 0.0
        %v1200 = vmax.f32 %v1140, 0.0
        %v1201 = vmax.f32 %v1143, 0.0
        %v1202 = vmax.f32 %v1148, 0.0
        %v1203 = vmax.f32 %v1151, 0.0
        %v1204 = vmax.f32 %v1156, 0.0
        %v1205 = vmax.f32 %v1159, 0.0
        %v1206 = vmax.f32 %v1164, 0.0
        %v1207 = vmax.f32 %v1167, 0.0
        %v1208 = vmax.f32 %v1172, 0.0
        %v1209 = vmax.f32 %v1175, 0.0
        %v1210 = vpack.c.bf16 %v1179, %v1178
        %v1211 = vpack.c.bf16 %v1181, %v1180
        %v1212 = vpack.c.bf16 %v1183, %v1182
        %v1213 = vpack.c.bf16 %v1185, %v1184
        %v1214 = vpack.c.bf16 %v1187, %v1186
        %v1215 = vpack.c.bf16 %v1189, %v1188
        %v1216 = vpack.c.bf16 %v1191, %v1190
        %v1217 = vpack.c.bf16 %v1193, %v1192
        %v1218 = vpack.c.bf16 %v1195, %v1194
        %v1219 = vpack.c.bf16 %v1197, %v1196
        %v1220 = vpack.c.bf16 %v1199, %v1198
        %v1221 = vpack.c.bf16 %v1201, %v1200
        %v1222 = vpack.c.bf16 %v1203, %v1202
        %v1223 = vpack.c.bf16 %v1205, %v1204
        %v1224 = vpack.c.bf16 %v1207, %v1206
        %v1225 = vpack.c.bf16 %v1209, %v1208
        %v1226 = vld [vmem:[#allocation4] sm:$0xff]
        %v1227 = vld [vmem:[#allocation4 + $0x8] sm:$0xff]
        %v1228 = vld [vmem:[#allocation4 + $0x10] sm:$0xff]
        %v1229 = vld [vmem:[#allocation4 + $0x18] sm:$0xff]
        %v1230 = vld [vmem:[#allocation4 + $0x20] sm:$0xff]
        %v1231 = vld [vmem:[#allocation4 + $0x28] sm:$0xff]
        %v1232 = vld [vmem:[#allocation4 + $0x30] sm:$0xff]
        %v1233 = vld [vmem:[#allocation4 + $0x38] sm:$0xff]
        %v1234 = vld [vmem:[#allocation4 + $0x40] sm:$0xff]
        %v1235 = vld [vmem:[#allocation4 + $0x48] sm:$0xff]
        %v1236 = vld [vmem:[#allocation4 + $0x50] sm:$0xff]
        %v1237 = vld [vmem:[#allocation4 + $0x58] sm:$0xff]
        %v1238 = vld [vmem:[#allocation4 + $0x60] sm:$0xff]
        %v1239 = vld [vmem:[#allocation4 + $0x68] sm:$0xff]
        %v1240 = vld [vmem:[#allocation4 + $0x70] sm:$0xff]
        %v1241 = vld [vmem:[#allocation4 + $0x78] sm:$0xff]
        %v1242 = vld [vmem:[#allocation4 + $0x80] sm:$0xff]
        %v1243 = vld [vmem:[#allocation4 + $0x88] sm:$0xff]
        %v1244 = vld [vmem:[#allocation4 + $0x90] sm:$0xff]
        %v1245 = vld [vmem:[#allocation4 + $0x98] sm:$0xff]
        %v1246 = vld [vmem:[#allocation4 + $0xa0] sm:$0xff]
        %v1247 = vld [vmem:[#allocation4 + $0xa8] sm:$0xff]
        %v1248 = vld [vmem:[#allocation4 + $0xb0] sm:$0xff]
        %v1249 = vld [vmem:[#allocation4 + $0xb8] sm:$0xff]
        %v1250 = vld [vmem:[#allocation4 + $0xc0] sm:$0xff]
        %v1251 = vld [vmem:[#allocation4 + $0xc8] sm:$0xff]
        %v1252 = vld [vmem:[#allocation4 + $0xd0] sm:$0xff]
        %v1253 = vld [vmem:[#allocation4 + $0xd8] sm:$0xff]
        %v1254 = vld [vmem:[#allocation4 + $0xe0] sm:$0xff]
        %v1255 = vld [vmem:[#allocation4 + $0xe8] sm:$0xff]
        %v1256 = vld [vmem:[#allocation4 + $0xf0] sm:$0xff]
        %v1257 = vld [vmem:[#allocation4 + $0xf8] sm:$0xff]
        %v1258 = vld [vmem:[#allocation4 + $0x100] sm:$0xff]
        %v1259 = vld [vmem:[#allocation4 + $0x108] sm:$0xff]
        %v1260 = vld [vmem:[#allocation4 + $0x110] sm:$0xff]
        %v1261 = vld [vmem:[#allocation4 + $0x118] sm:$0xff]
        %v1262 = vld [vmem:[#allocation4 + $0x120] sm:$0xff]
        %v1263 = vld [vmem:[#allocation4 + $0x128] sm:$0xff]
        %v1264 = vld [vmem:[#allocation4 + $0x130] sm:$0xff]
        %v1265 = vld [vmem:[#allocation4 + $0x138] sm:$0xff]
        %v1266 = vld [vmem:[#allocation4 + $0x140] sm:$0xff]
        %v1267 = vld [vmem:[#allocation4 + $0x148] sm:$0xff]
        %v1268 = vld [vmem:[#allocation4 + $0x150] sm:$0xff]
        %v1269 = vld [vmem:[#allocation4 + $0x158] sm:$0xff]
        %v1270 = vld [vmem:[#allocation4 + $0x160] sm:$0xff]
        %v1271 = vld [vmem:[#allocation4 + $0x168] sm:$0xff]
        %v1272 = vld [vmem:[#allocation4 + $0x170] sm:$0xff]
        %v1273 = vld [vmem:[#allocation4 + $0x178] sm:$0xff]
        %v1274 = vld [vmem:[#allocation4 + $0x180] sm:$0xff]
        %v1275 = vld [vmem:[#allocation4 + $0x188] sm:$0xff]
        %v1276 = vld [vmem:[#allocation4 + $0x190] sm:$0xff]
        %v1277 = vld [vmem:[#allocation4 + $0x198] sm:$0xff]
        %v1278 = vld [vmem:[#allocation4 + $0x1a0] sm:$0xff]
        %v1279 = vld [vmem:[#allocation4 + $0x1a8] sm:$0xff]
        %v1280 = vld [vmem:[#allocation4 + $0x1b0] sm:$0xff]
        %v1281 = vld [vmem:[#allocation4 + $0x1b8] sm:$0xff]
        %v1282 = vld [vmem:[#allocation4 + $0x1c0] sm:$0xff]
        %v1283 = vld [vmem:[#allocation4 + $0x1c8] sm:$0xff]
        %v1284 = vld [vmem:[#allocation4 + $0x1d0] sm:$0xff]
        %v1285 = vld [vmem:[#allocation4 + $0x1d8] sm:$0xff]
        %v1286 = vld [vmem:[#allocation4 + $0x1e0] sm:$0xff]
        %v1287 = vld [vmem:[#allocation4 + $0x1e8] sm:$0xff]
        %v1288 = vld [vmem:[#allocation4 + $0x1f0] sm:$0xff]
        %v1289 = vld [vmem:[#allocation4 + $0x1f8] sm:$0xff]
        %v1290 = vld [vmem:[%s6] sm:$0xff]
        %v1292 = vlaneseq
        %v1293 = vshrl.u32 %v1292, 7
        %v1294 = vsub.s32 0, %v1293
        %v1295 = vrot.slane %v1290, %v1294
        %v1296 = vlaneseq
        %v1297 = vshrl.u32 %v1296, 7
        %v1298 = vsub.s32 1, %v1297
        %v1299 = vrot.slane %v1290, %v1298
        %v1300 = vlaneseq
        %v1301 = vshrl.u32 %v1300, 7
        %v1302 = vsub.s32 2, %v1301
        %v1303 = vrot.slane %v1290, %v1302
        %v1304 = vlaneseq
        %v1305 = vshrl.u32 %v1304, 7
        %v1306 = vsub.s32 3, %v1305
        %v1307 = vrot.slane %v1290, %v1306
        %v1308 = vlaneseq
        %v1309 = vshrl.u32 %v1308, 7
        %v1310 = vsub.s32 4, %v1309
        %v1311 = vrot.slane %v1290, %v1310
        %v1312 = vlaneseq
        %v1313 = vshrl.u32 %v1312, 7
        %v1314 = vsub.s32 5, %v1313
        %v1315 = vrot.slane %v1290, %v1314
        %v1316 = vlaneseq
        %v1317 = vshrl.u32 %v1316, 7
        %v1318 = vsub.s32 6, %v1317
        %v1319 = vrot.slane %v1290, %v1318
        %v1320 = vlaneseq
        %v1321 = vshrl.u32 %v1320, 7
        %v1322 = vsub.s32 7, %v1321
        %v1323 = vrot.slane %v1290, %v1322
        %v1396 = vunpack.c.l.b16 %v1226
        %v1397 = vunpack.c.h.b16 %v1226
        %v1398 = vunpack.c.l.b16 %v1227
        %v1399 = vunpack.c.h.b16 %v1227
        %v1400 = vunpack.c.l.b16 %v1228
        %v1401 = vunpack.c.h.b16 %v1228
        %v1402 = vunpack.c.l.b16 %v1229
        %v1403 = vunpack.c.h.b16 %v1229
        %v1404 = vunpack.c.l.b16 %v1230
        %v1405 = vunpack.c.h.b16 %v1230
        %v1406 = vunpack.c.l.b16 %v1231
        %v1407 = vunpack.c.h.b16 %v1231
        %v1408 = vunpack.c.l.b16 %v1232
        %v1409 = vunpack.c.h.b16 %v1232
        %v1410 = vunpack.c.l.b16 %v1233
        %v1411 = vunpack.c.h.b16 %v1233
        %v1412 = vunpack.c.l.b16 %v1234
        %v1413 = vunpack.c.h.b16 %v1234
        %v1414 = vunpack.c.l.b16 %v1235
        %v1415 = vunpack.c.h.b16 %v1235
        %v1416 = vunpack.c.l.b16 %v1236
        %v1417 = vunpack.c.h.b16 %v1236
        %v1418 = vunpack.c.l.b16 %v1237
        %v1419 = vunpack.c.h.b16 %v1237
        %v1420 = vunpack.c.l.b16 %v1238
        %v1421 = vunpack.c.h.b16 %v1238
        %v1422 = vunpack.c.l.b16 %v1239
        %v1423 = vunpack.c.h.b16 %v1239
        %v1424 = vunpack.c.l.b16 %v1240
        %v1425 = vunpack.c.h.b16 %v1240
        %v1426 = vunpack.c.l.b16 %v1241
        %v1427 = vunpack.c.h.b16 %v1241
        %v1428 = vunpack.c.l.b16 %v1242
        %v1429 = vunpack.c.h.b16 %v1242
        %v1430 = vunpack.c.l.b16 %v1243
        %v1431 = vunpack.c.h.b16 %v1243
        %v1432 = vunpack.c.l.b16 %v1244
        %v1433 = vunpack.c.h.b16 %v1244
        %v1434 = vunpack.c.l.b16 %v1245
        %v1435 = vunpack.c.h.b16 %v1245
        %v1436 = vunpack.c.l.b16 %v1246
        %v1437 = vunpack.c.h.b16 %v1246
        %v1438 = vunpack.c.l.b16 %v1247
        %v1439 = vunpack.c.h.b16 %v1247
        %v1440 = vunpack.c.l.b16 %v1248
        %v1441 = vunpack.c.h.b16 %v1248
        %v1442 = vunpack.c.l.b16 %v1249
        %v1443 = vunpack.c.h.b16 %v1249
        %v1444 = vunpack.c.l.b16 %v1250
        %v1445 = vunpack.c.h.b16 %v1250
        %v1446 = vunpack.c.l.b16 %v1251
        %v1447 = vunpack.c.h.b16 %v1251
        %v1448 = vunpack.c.l.b16 %v1252
        %v1449 = vunpack.c.h.b16 %v1252
        %v1450 = vunpack.c.l.b16 %v1253
        %v1451 = vunpack.c.h.b16 %v1253
        %v1452 = vunpack.c.l.b16 %v1254
        %v1453 = vunpack.c.h.b16 %v1254
        %v1454 = vunpack.c.l.b16 %v1255
        %v1455 = vunpack.c.h.b16 %v1255
        %v1456 = vunpack.c.l.b16 %v1256
        %v1457 = vunpack.c.h.b16 %v1256
        %v1458 = vunpack.c.l.b16 %v1257
        %v1459 = vunpack.c.h.b16 %v1257
        %v1460 = vunpack.c.l.b16 %v1258
        %v1461 = vunpack.c.h.b16 %v1258
        %v1462 = vunpack.c.l.b16 %v1259
        %v1463 = vunpack.c.h.b16 %v1259
        %v1464 = vunpack.c.l.b16 %v1260
        %v1465 = vunpack.c.h.b16 %v1260
        %v1466 = vunpack.c.l.b16 %v1261
        %v1467 = vunpack.c.h.b16 %v1261
        %v1468 = vunpack.c.l.b16 %v1262
        %v1469 = vunpack.c.h.b16 %v1262
        %v1470 = vunpack.c.l.b16 %v1263
        %v1471 = vunpack.c.h.b16 %v1263
        %v1472 = vunpack.c.l.b16 %v1264
        %v1473 = vunpack.c.h.b16 %v1264
        %v1474 = vunpack.c.l.b16 %v1265
        %v1475 = vunpack.c.h.b16 %v1265
        %v1476 = vunpack.c.l.b16 %v1266
        %v1477 = vunpack.c.h.b16 %v1266
        %v1478 = vunpack.c.l.b16 %v1267
        %v1479 = vunpack.c.h.b16 %v1267
        %v1480 = vunpack.c.l.b16 %v1268
        %v1481 = vunpack.c.h.b16 %v1268
        %v1482 = vunpack.c.l.b16 %v1269
        %v1483 = vunpack.c.h.b16 %v1269
        %v1484 = vunpack.c.l.b16 %v1270
        %v1485 = vunpack.c.h.b16 %v1270
        %v1486 = vunpack.c.l.b16 %v1271
        %v1487 = vunpack.c.h.b16 %v1271
        %v1488 = vunpack.c.l.b16 %v1272
        %v1489 = vunpack.c.h.b16 %v1272
        %v1490 = vunpack.c.l.b16 %v1273
        %v1491 = vunpack.c.h.b16 %v1273
        %v1492 = vunpack.c.l.b16 %v1274
        %v1493 = vunpack.c.h.b16 %v1274
        %v1494 = vunpack.c.l.b16 %v1275
        %v1495 = vunpack.c.h.b16 %v1275
        %v1496 = vunpack.c.l.b16 %v1276
        %v1497 = vunpack.c.h.b16 %v1276
        %v1498 = vunpack.c.l.b16 %v1277
        %v1499 = vunpack.c.h.b16 %v1277
        %v1500 = vunpack.c.l.b16 %v1278
        %v1501 = vunpack.c.h.b16 %v1278
        %v1502 = vunpack.c.l.b16 %v1279
        %v1503 = vunpack.c.h.b16 %v1279
        %v1504 = vunpack.c.l.b16 %v1280
        %v1505 = vunpack.c.h.b16 %v1280
        %v1506 = vunpack.c.l.b16 %v1281
        %v1507 = vunpack.c.h.b16 %v1281
        %v1508 = vunpack.c.l.b16 %v1282
        %v1509 = vunpack.c.h.b16 %v1282
        %v1510 = vunpack.c.l.b16 %v1283
        %v1511 = vunpack.c.h.b16 %v1283
        %v1512 = vunpack.c.l.b16 %v1284
        %v1513 = vunpack.c.h.b16 %v1284
        %v1514 = vunpack.c.l.b16 %v1285
        %v1515 = vunpack.c.h.b16 %v1285
        %v1516 = vunpack.c.l.b16 %v1286
        %v1517 = vunpack.c.h.b16 %v1286
        %v1518 = vunpack.c.l.b16 %v1287
        %v1519 = vunpack.c.h.b16 %v1287
        %v1520 = vunpack.c.l.b16 %v1288
        %v1521 = vunpack.c.h.b16 %v1288
        %v1522 = vunpack.c.l.b16 %v1289
        %v1523 = vunpack.c.h.b16 %v1289
        %v1524 = vpack.c.b16 %v1404, %v1396
        %v1525 = vpack.c.b16 %v1405, %v1397
        %v1526 = vpack.c.b16 %v1406, %v1398
        %v1527 = vpack.c.b16 %v1407, %v1399
        %v1528 = vpack.c.b16 %v1408, %v1400
        %v1529 = vpack.c.b16 %v1409, %v1401
        %v1530 = vpack.c.b16 %v1410, %v1402
        %v1531 = vpack.c.b16 %v1411, %v1403
        %v1532 = vpack.c.b16 %v1420, %v1412
        %v1533 = vpack.c.b16 %v1421, %v1413
        %v1534 = vpack.c.b16 %v1422, %v1414
        %v1535 = vpack.c.b16 %v1423, %v1415
        %v1536 = vpack.c.b16 %v1424, %v1416
        %v1537 = vpack.c.b16 %v1425, %v1417
        %v1538 = vpack.c.b16 %v1426, %v1418
        %v1539 = vpack.c.b16 %v1427, %v1419
        %v1540 = vpack.c.b16 %v1436, %v1428
        %v1541 = vpack.c.b16 %v1437, %v1429
        %v1542 = vpack.c.b16 %v1438, %v1430
        %v1543 = vpack.c.b16 %v1439, %v1431
        %v1544 = vpack.c.b16 %v1440, %v1432
        %v1545 = vpack.c.b16 %v1441, %v1433
        %v1546 = vpack.c.b16 %v1442, %v1434
        %v1547 = vpack.c.b16 %v1443, %v1435
        %v1548 = vpack.c.b16 %v1452, %v1444
        %v1549 = vpack.c.b16 %v1453, %v1445
        %v1550 = vpack.c.b16 %v1454, %v1446
        %v1551 = vpack.c.b16 %v1455, %v1447
        %v1552 = vpack.c.b16 %v1456, %v1448
        %v1553 = vpack.c.b16 %v1457, %v1449
        %v1554 = vpack.c.b16 %v1458, %v1450
        %v1555 = vpack.c.b16 %v1459, %v1451
        %v1556 = vpack.c.b16 %v1468, %v1460
        %v1557 = vpack.c.b16 %v1469, %v1461
        %v1558 = vpack.c.b16 %v1470, %v1462
        %v1559 = vpack.c.b16 %v1471, %v1463
        %v1560 = vpack.c.b16 %v1472, %v1464
        %v1561 = vpack.c.b16 %v1473, %v1465
        %v1562 = vpack.c.b16 %v1474, %v1466
        %v1563 = vpack.c.b16 %v1475, %v1467
        %v1564 = vpack.c.b16 %v1484, %v1476
        %v1565 = vpack.c.b16 %v1485, %v1477
        %v1566 = vpack.c.b16 %v1486, %v1478
        %v1567 = vpack.c.b16 %v1487, %v1479
        %v1568 = vpack.c.b16 %v1488, %v1480
        %v1569 = vpack.c.b16 %v1489, %v1481
        %v1570 = vpack.c.b16 %v1490, %v1482
        %v1571 = vpack.c.b16 %v1491, %v1483
        %v1572 = vpack.c.b16 %v1500, %v1492
        %v1573 = vpack.c.b16 %v1501, %v1493
        %v1574 = vpack.c.b16 %v1502, %v1494
        %v1575 = vpack.c.b16 %v1503, %v1495
        %v1576 = vpack.c.b16 %v1504, %v1496
        %v1577 = vpack.c.b16 %v1505, %v1497
        %v1578 = vpack.c.b16 %v1506, %v1498
        %v1579 = vpack.c.b16 %v1507, %v1499
        %v1580 = vpack.c.b16 %v1516, %v1508
        %v1581 = vpack.c.b16 %v1517, %v1509
        %v1582 = vpack.c.b16 %v1518, %v1510
        %v1583 = vpack.c.b16 %v1519, %v1511
        %v1584 = vpack.c.b16 %v1520, %v1512
        %v1585 = vpack.c.b16 %v1521, %v1513
        %v1586 = vpack.c.b16 %v1522, %v1514
        %v1587 = vpack.c.b16 %v1523, %v1515
        %1652 = vmatprep.subr.bf16.mxu0 %v1581
        %1653 = vmatpush1.bf16.msra.mxu0 %v1580
        %1654 = vmatprep.subr.bf16.mxu0 %v1573
        %1655 = vmatpush1.bf16.msra.mxu0 %v1572
        %1656 = vmatprep.subr.bf16.mxu0 %v1565
        %1657 = vmatpush1.bf16.msra.mxu0 %v1564
        %1658 = vmatprep.subr.bf16.mxu0 %v1557
        %1659 = vmatpush1.bf16.msra.mxu0 %v1556
        %1660 = vmatprep.subr.bf16.mxu0 %v1549
        %1661 = vmatpush1.bf16.msra.mxu0 %v1548
        %1662 = vmatprep.subr.bf16.mxu0 %v1541
        %1663 = vmatpush1.bf16.msra.mxu0 %v1540
        %1664 = vmatprep.subr.bf16.mxu0 %v1533
        %1665 = vmatpush1.bf16.msra.mxu0 %v1532
        %1666 = vmatprep.subr.bf16.mxu0 %v1525
        %1667 = vmatpush1.bf16.msra.mxu0 %v1524
        %1668 = vmatprep.subr.bf16.mxu0 0
        %1669 = vmatpush2.bf16.msra.mxu0 0
        %1670 = vmatprep.subr.bf16.mxu0 0
        %1671 = vmatpush2.bf16.msra.mxu0 0
        %1672 = vmatprep.subr.bf16.mxu0 0
        %1673 = vmatpush2.bf16.msra.mxu0 0
        %1674 = vmatprep.subr.bf16.mxu0 0
        %1675 = vmatpush2.bf16.msra.mxu0 0
        %1676 = vmatprep.subr.bf16.mxu0 0
        %1677 = vmatpush2.bf16.msra.mxu0 0
        %1678 = vmatprep.subr.bf16.mxu0 0
        %1679 = vmatpush2.bf16.msra.mxu0 0
        %1680 = vmatprep.subr.bf16.mxu0 0
        %1681 = vmatpush2.bf16.msra.mxu0 0
        %1682 = vmatprep.subr.bf16.mxu0 0
        %1683 = vmatpush2.bf16.msra.mxu0 0
        %1684 = vmatprep.mubr.bf16.mxu0 0
        %1685 = vmatmul.mubr.bf16.gmra.mxu0 %v1210
        %v1686 = vpop.f32.mrf.mxu0
        %v1687 = vadd.f32 %v1295, %v1686
        %v1688 = vpop.f32.mrf.mxu0
        %v1689 = vadd.f32 %v1299, %v1688
        %v1690 = vpop.f32.mrf.mxu0
        %v1691 = vadd.f32 %v1295, %v1690
        %v1692 = vpop.f32.mrf.mxu0
        %v1693 = vadd.f32 %v1299, %v1692
        %1694 = vmatprep.mubr.bf16.mxu0 0
        %1695 = vmatmul.mubr.bf16.gmra.mxu0 %v1211
        %v1696 = vpop.f32.mrf.mxu0
        %v1697 = vadd.f32 %v1295, %v1696
        %v1698 = vpop.f32.mrf.mxu0
        %v1699 = vadd.f32 %v1299, %v1698
        %v1700 = vpop.f32.mrf.mxu0
        %v1701 = vadd.f32 %v1295, %v1700
        %v1702 = vpop.f32.mrf.mxu0
        %v1703 = vadd.f32 %v1299, %v1702
        %1704 = vmatprep.mubr.bf16.mxu0 0
        %1705 = vmatmul.mubr.bf16.gmra.mxu0 %v1212
        %v1706 = vpop.f32.mrf.mxu0
        %v1707 = vadd.f32 %v1295, %v1706
        %v1708 = vpop.f32.mrf.mxu0
        %v1709 = vadd.f32 %v1299, %v1708
        %v1710 = vpop.f32.mrf.mxu0
        %v1711 = vadd.f32 %v1295, %v1710
        %v1712 = vpop.f32.mrf.mxu0
        %v1713 = vadd.f32 %v1299, %v1712
        %1714 = vmatprep.mubr.bf16.mxu0 0
        %1715 = vmatmul.mubr.bf16.gmra.mxu0 %v1213
        %v1716 = vpop.f32.mrf.mxu0
        %v1717 = vadd.f32 %v1295, %v1716
        %v1718 = vpop.f32.mrf.mxu0
        %v1719 = vadd.f32 %v1299, %v1718
        %v1720 = vpop.f32.mrf.mxu0
        %v1721 = vadd.f32 %v1295, %v1720
        %v1722 = vpop.f32.mrf.mxu0
        %v1723 = vadd.f32 %v1299, %v1722
        %1724 = vmatprep.mubr.bf16.mxu0 0
        %1725 = vmatmul.mubr.bf16.gmra.mxu0 %v1214
        %v1726 = vpop.f32.mrf.mxu0
        %v1727 = vadd.f32 %v1295, %v1726
        %v1728 = vpop.f32.mrf.mxu0
        %v1729 = vadd.f32 %v1299, %v1728
        %v1730 = vpop.f32.mrf.mxu0
        %v1731 = vadd.f32 %v1295, %v1730
        %v1732 = vpop.f32.mrf.mxu0
        %v1733 = vadd.f32 %v1299, %v1732
        %1734 = vmatprep.mubr.bf16.mxu0 0
        %1735 = vmatmul.mubr.bf16.gmra.mxu0 %v1215
        %v1736 = vpop.f32.mrf.mxu0
        %v1737 = vadd.f32 %v1295, %v1736
        %v1738 = vpop.f32.mrf.mxu0
        %v1739 = vadd.f32 %v1299, %v1738
        %v1740 = vpop.f32.mrf.mxu0
        %v1741 = vadd.f32 %v1295, %v1740
        %v1742 = vpop.f32.mrf.mxu0
        %v1743 = vadd.f32 %v1299, %v1742
        %1744 = vmatprep.mubr.bf16.mxu0 0
        %1745 = vmatmul.mubr.bf16.gmra.mxu0 %v1216
        %v1746 = vpop.f32.mrf.mxu0
        %v1747 = vadd.f32 %v1295, %v1746
        %v1748 = vpop.f32.mrf.mxu0
        %v1749 = vadd.f32 %v1299, %v1748
        %v1750 = vpop.f32.mrf.mxu0
        %v1751 = vadd.f32 %v1295, %v1750
        %v1752 = vpop.f32.mrf.mxu0
        %v1753 = vadd.f32 %v1299, %v1752
        %1754 = vmatprep.mubr.bf16.mxu0 0
        %1755 = vmatmul.mubr.bf16.gmra.mxu0 %v1217
        %v1756 = vpop.f32.mrf.mxu0
        %v1757 = vadd.f32 %v1295, %v1756
        %v1758 = vpop.f32.mrf.mxu0
        %v1759 = vadd.f32 %v1299, %v1758
        %v1760 = vpop.f32.mrf.mxu0
        %v1761 = vadd.f32 %v1295, %v1760
        %v1762 = vpop.f32.mrf.mxu0
        %v1763 = vadd.f32 %v1299, %v1762
        %1764 = vmatprep.mubr.bf16.mxu0 0
        %1765 = vmatmul.mubr.bf16.gmra.mxu0 %v1218
        %v1766 = vpop.f32.mrf.mxu0
        %v1767 = vadd.f32 %v1295, %v1766
        %v1768 = vpop.f32.mrf.mxu0
        %v1769 = vadd.f32 %v1299, %v1768
        %v1770 = vpop.f32.mrf.mxu0
        %v1771 = vadd.f32 %v1295, %v1770
        %v1772 = vpop.f32.mrf.mxu0
        %v1773 = vadd.f32 %v1299, %v1772
        %1774 = vmatprep.mubr.bf16.mxu0 0
        %1775 = vmatmul.mubr.bf16.gmra.mxu0 %v1219
        %v1776 = vpop.f32.mrf.mxu0
        %v1777 = vadd.f32 %v1295, %v1776
        %v1778 = vpop.f32.mrf.mxu0
        %v1779 = vadd.f32 %v1299, %v1778
        %v1780 = vpop.f32.mrf.mxu0
        %v1781 = vadd.f32 %v1295, %v1780
        %v1782 = vpop.f32.mrf.mxu0
        %v1783 = vadd.f32 %v1299, %v1782
        %1784 = vmatprep.mubr.bf16.mxu0 0
        %1785 = vmatmul.mubr.bf16.gmra.mxu0 %v1220
        %v1786 = vpop.f32.mrf.mxu0
        %v1787 = vadd.f32 %v1295, %v1786
        %v1788 = vpop.f32.mrf.mxu0
        %v1789 = vadd.f32 %v1299, %v1788
        %v1790 = vpop.f32.mrf.mxu0
        %v1791 = vadd.f32 %v1295, %v1790
        %v1792 = vpop.f32.mrf.mxu0
        %v1793 = vadd.f32 %v1299, %v1792
        %1794 = vmatprep.mubr.bf16.mxu0 0
        %1795 = vmatmul.mubr.bf16.gmra.mxu0 %v1221
        %v1796 = vpop.f32.mrf.mxu0
        %v1797 = vadd.f32 %v1295, %v1796
        %v1798 = vpop.f32.mrf.mxu0
        %v1799 = vadd.f32 %v1299, %v1798
        %v1800 = vpop.f32.mrf.mxu0
        %v1801 = vadd.f32 %v1295, %v1800
        %v1802 = vpop.f32.mrf.mxu0
        %v1803 = vadd.f32 %v1299, %v1802
        %1804 = vmatprep.mubr.bf16.mxu0 0
        %1805 = vmatmul.mubr.bf16.gmra.mxu0 %v1222
        %v1806 = vpop.f32.mrf.mxu0
        %v1807 = vadd.f32 %v1295, %v1806
        %v1808 = vpop.f32.mrf.mxu0
        %v1809 = vadd.f32 %v1299, %v1808
        %v1810 = vpop.f32.mrf.mxu0
        %v1811 = vadd.f32 %v1295, %v1810
        %v1812 = vpop.f32.mrf.mxu0
        %v1813 = vadd.f32 %v1299, %v1812
        %1814 = vmatprep.mubr.bf16.mxu0 0
        %1815 = vmatmul.mubr.bf16.gmra.mxu0 %v1223
        %v1816 = vpop.f32.mrf.mxu0
        %v1817 = vadd.f32 %v1295, %v1816
        %v1818 = vpop.f32.mrf.mxu0
        %v1819 = vadd.f32 %v1299, %v1818
        %v1820 = vpop.f32.mrf.mxu0
        %v1821 = vadd.f32 %v1295, %v1820
        %v1822 = vpop.f32.mrf.mxu0
        %v1823 = vadd.f32 %v1299, %v1822
        %1824 = vmatprep.mubr.bf16.mxu0 0
        %1825 = vmatmul.mubr.bf16.gmra.mxu0 %v1224
        %v1826 = vpop.f32.mrf.mxu0
        %v1827 = vadd.f32 %v1295, %v1826
        %v1828 = vpop.f32.mrf.mxu0
        %v1829 = vadd.f32 %v1299, %v1828
        %v1830 = vpop.f32.mrf.mxu0
        %v1831 = vadd.f32 %v1295, %v1830
        %v1832 = vpop.f32.mrf.mxu0
        %v1833 = vadd.f32 %v1299, %v1832
        %1834 = vmatprep.mubr.bf16.mxu0 0
        %1835 = vmatmul.mubr.bf16.gmra.mxu0 %v1225
        %v1836 = vpop.f32.mrf.mxu0
        %v1837 = vadd.f32 %v1295, %v1836
        %v1838 = vpop.f32.mrf.mxu0
        %v1839 = vadd.f32 %v1299, %v1838
        %v1840 = vpop.f32.mrf.mxu0
        %v1841 = vadd.f32 %v1295, %v1840
        %v1842 = vpop.f32.mrf.mxu0
        %v1843 = vadd.f32 %v1299, %v1842
        %1844 = vdwg.mxu0
        %1845 = vmatprep.subr.bf16.mxu0 %v1583
        %1846 = vmatpush1.bf16.msra.mxu0 %v1582
        %1847 = vmatprep.subr.bf16.mxu0 %v1575
        %1848 = vmatpush1.bf16.msra.mxu0 %v1574
        %1849 = vmatprep.subr.bf16.mxu0 %v1567
        %1850 = vmatpush1.bf16.msra.mxu0 %v1566
        %1851 = vmatprep.subr.bf16.mxu0 %v1559
        %1852 = vmatpush1.bf16.msra.mxu0 %v1558
        %1853 = vmatprep.subr.bf16.mxu0 %v1551
        %1854 = vmatpush1.bf16.msra.mxu0 %v1550
        %1855 = vmatprep.subr.bf16.mxu0 %v1543
        %1856 = vmatpush1.bf16.msra.mxu0 %v1542
        %1857 = vmatprep.subr.bf16.mxu0 %v1535
        %1858 = vmatpush1.bf16.msra.mxu0 %v1534
        %1859 = vmatprep.subr.bf16.mxu0 %v1527
        %1860 = vmatpush1.bf16.msra.mxu0 %v1526
        %1861 = vmatprep.subr.bf16.mxu0 0
        %1862 = vmatpush2.bf16.msra.mxu0 0
        %1863 = vmatprep.subr.bf16.mxu0 0
        %1864 = vmatpush2.bf16.msra.mxu0 0
        %1865 = vmatprep.subr.bf16.mxu0 0
        %1866 = vmatpush2.bf16.msra.mxu0 0
        %1867 = vmatprep.subr.bf16.mxu0 0
        %1868 = vmatpush2.bf16.msra.mxu0 0
        %1869 = vmatprep.subr.bf16.mxu0 0
        %1870 = vmatpush2.bf16.msra.mxu0 0
        %1871 = vmatprep.subr.bf16.mxu0 0
        %1872 = vmatpush2.bf16.msra.mxu0 0
        %1873 = vmatprep.subr.bf16.mxu0 0
        %1874 = vmatpush2.bf16.msra.mxu0 0
        %1875 = vmatprep.subr.bf16.mxu0 0
        %1876 = vmatpush2.bf16.msra.mxu0 0
        %1877 = vmatprep.mubr.bf16.mxu0 0
        %1878 = vmatmul.mubr.bf16.gmra.mxu0 %v1210
        %v1879 = vpop.f32.mrf.mxu0
        %v1880 = vadd.f32 %v1303, %v1879
        %v1881 = vpop.f32.mrf.mxu0
        %v1882 = vadd.f32 %v1307, %v1881
        %v1883 = vpop.f32.mrf.mxu0
        %v1884 = vadd.f32 %v1303, %v1883
        %v1885 = vpop.f32.mrf.mxu0
        %v1886 = vadd.f32 %v1307, %v1885
        %1887 = vmatprep.mubr.bf16.mxu0 0
        %1888 = vmatmul.mubr.bf16.gmra.mxu0 %v1211
        %v1889 = vpop.f32.mrf.mxu0
        %v1890 = vadd.f32 %v1303, %v1889
        %v1891 = vpop.f32.mrf.mxu0
        %v1892 = vadd.f32 %v1307, %v1891
        %v1893 = vpop.f32.mrf.mxu0
        %v1894 = vadd.f32 %v1303, %v1893
        %v1895 = vpop.f32.mrf.mxu0
        %v1896 = vadd.f32 %v1307, %v1895
        %1897 = vmatprep.mubr.bf16.mxu0 0
        %1898 = vmatmul.mubr.bf16.gmra.mxu0 %v1212
        %v1899 = vpop.f32.mrf.mxu0
        %v1900 = vadd.f32 %v1303, %v1899
        %v1901 = vpop.f32.mrf.mxu0
        %v1902 = vadd.f32 %v1307, %v1901
        %v1903 = vpop.f32.mrf.mxu0
        %v1904 = vadd.f32 %v1303, %v1903
        %v1905 = vpop.f32.mrf.mxu0
        %v1906 = vadd.f32 %v1307, %v1905
        %1907 = vmatprep.mubr.bf16.mxu0 0
        %1908 = vmatmul.mubr.bf16.gmra.mxu0 %v1213
        %v1909 = vpop.f32.mrf.mxu0
        %v1910 = vadd.f32 %v1303, %v1909
        %v1911 = vpop.f32.mrf.mxu0
        %v1912 = vadd.f32 %v1307, %v1911
        %v1913 = vpop.f32.mrf.mxu0
        %v1914 = vadd.f32 %v1303, %v1913
        %v1915 = vpop.f32.mrf.mxu0
        %v1916 = vadd.f32 %v1307, %v1915
        %1917 = vmatprep.mubr.bf16.mxu0 0
        %1918 = vmatmul.mubr.bf16.gmra.mxu0 %v1214
        %v1919 = vpop.f32.mrf.mxu0
        %v1920 = vadd.f32 %v1303, %v1919
        %v1921 = vpop.f32.mrf.mxu0
        %v1922 = vadd.f32 %v1307, %v1921
        %v1923 = vpop.f32.mrf.mxu0
        %v1924 = vadd.f32 %v1303, %v1923
        %v1925 = vpop.f32.mrf.mxu0
        %v1926 = vadd.f32 %v1307, %v1925
        %1927 = vmatprep.mubr.bf16.mxu0 0
        %1928 = vmatmul.mubr.bf16.gmra.mxu0 %v1215
        %v1929 = vpop.f32.mrf.mxu0
        %v1930 = vadd.f32 %v1303, %v1929
        %v1931 = vpop.f32.mrf.mxu0
        %v1932 = vadd.f32 %v1307, %v1931
        %v1933 = vpop.f32.mrf.mxu0
        %v1934 = vadd.f32 %v1303, %v1933
        %v1935 = vpop.f32.mrf.mxu0
        %v1936 = vadd.f32 %v1307, %v1935
        %1937 = vmatprep.mubr.bf16.mxu0 0
        %1938 = vmatmul.mubr.bf16.gmra.mxu0 %v1216
        %v1939 = vpop.f32.mrf.mxu0
        %v1940 = vadd.f32 %v1303, %v1939
        %v1941 = vpop.f32.mrf.mxu0
        %v1942 = vadd.f32 %v1307, %v1941
        %v1943 = vpop.f32.mrf.mxu0
        %v1944 = vadd.f32 %v1303, %v1943
        %v1945 = vpop.f32.mrf.mxu0
        %v1946 = vadd.f32 %v1307, %v1945
        %1947 = vmatprep.mubr.bf16.mxu0 0
        %1948 = vmatmul.mubr.bf16.gmra.mxu0 %v1217
        %v1949 = vpop.f32.mrf.mxu0
        %v1950 = vadd.f32 %v1303, %v1949
        %v1951 = vpop.f32.mrf.mxu0
        %v1952 = vadd.f32 %v1307, %v1951
        %v1953 = vpop.f32.mrf.mxu0
        %v1954 = vadd.f32 %v1303, %v1953
        %v1955 = vpop.f32.mrf.mxu0
        %v1956 = vadd.f32 %v1307, %v1955
        %1957 = vmatprep.mubr.bf16.mxu0 0
        %1958 = vmatmul.mubr.bf16.gmra.mxu0 %v1218
        %v1959 = vpop.f32.mrf.mxu0
        %v1960 = vadd.f32 %v1303, %v1959
        %v1961 = vpop.f32.mrf.mxu0
        %v1962 = vadd.f32 %v1307, %v1961
        %v1963 = vpop.f32.mrf.mxu0
        %v1964 = vadd.f32 %v1303, %v1963
        %v1965 = vpop.f32.mrf.mxu0
        %v1966 = vadd.f32 %v1307, %v1965
        %1967 = vmatprep.mubr.bf16.mxu0 0
        %1968 = vmatmul.mubr.bf16.gmra.mxu0 %v1219
        %v1969 = vpop.f32.mrf.mxu0
        %v1970 = vadd.f32 %v1303, %v1969
        %v1971 = vpop.f32.mrf.mxu0
        %v1972 = vadd.f32 %v1307, %v1971
        %v1973 = vpop.f32.mrf.mxu0
        %v1974 = vadd.f32 %v1303, %v1973
        %v1975 = vpop.f32.mrf.mxu0
        %v1976 = vadd.f32 %v1307, %v1975
        %1977 = vmatprep.mubr.bf16.mxu0 0
        %1978 = vmatmul.mubr.bf16.gmra.mxu0 %v1220
        %v1979 = vpop.f32.mrf.mxu0
        %v1980 = vadd.f32 %v1303, %v1979
        %v1981 = vpop.f32.mrf.mxu0
        %v1982 = vadd.f32 %v1307, %v1981
        %v1983 = vpop.f32.mrf.mxu0
        %v1984 = vadd.f32 %v1303, %v1983
        %v1985 = vpop.f32.mrf.mxu0
        %v1986 = vadd.f32 %v1307, %v1985
        %1987 = vmatprep.mubr.bf16.mxu0 0
        %1988 = vmatmul.mubr.bf16.gmra.mxu0 %v1221
        %v1989 = vpop.f32.mrf.mxu0
        %v1990 = vadd.f32 %v1303, %v1989
        %v1991 = vpop.f32.mrf.mxu0
        %v1992 = vadd.f32 %v1307, %v1991
        %v1993 = vpop.f32.mrf.mxu0
        %v1994 = vadd.f32 %v1303, %v1993
        %v1995 = vpop.f32.mrf.mxu0
        %v1996 = vadd.f32 %v1307, %v1995
        %1997 = vmatprep.mubr.bf16.mxu0 0
        %1998 = vmatmul.mubr.bf16.gmra.mxu0 %v1222
        %v1999 = vpop.f32.mrf.mxu0
        %v2000 = vadd.f32 %v1303, %v1999
        %v2001 = vpop.f32.mrf.mxu0
        %v2002 = vadd.f32 %v1307, %v2001
        %v2003 = vpop.f32.mrf.mxu0
        %v2004 = vadd.f32 %v1303, %v2003
        %v2005 = vpop.f32.mrf.mxu0
        %v2006 = vadd.f32 %v1307, %v2005
        %2007 = vmatprep.mubr.bf16.mxu0 0
        %2008 = vmatmul.mubr.bf16.gmra.mxu0 %v1223
        %v2009 = vpop.f32.mrf.mxu0
        %v2010 = vadd.f32 %v1303, %v2009
        %v2011 = vpop.f32.mrf.mxu0
        %v2012 = vadd.f32 %v1307, %v2011
        %v2013 = vpop.f32.mrf.mxu0
        %v2014 = vadd.f32 %v1303, %v2013
        %v2015 = vpop.f32.mrf.mxu0
        %v2016 = vadd.f32 %v1307, %v2015
        %2017 = vmatprep.mubr.bf16.mxu0 0
        %2018 = vmatmul.mubr.bf16.gmra.mxu0 %v1224
        %v2019 = vpop.f32.mrf.mxu0
        %v2020 = vadd.f32 %v1303, %v2019
        %v2021 = vpop.f32.mrf.mxu0
        %v2022 = vadd.f32 %v1307, %v2021
        %v2023 = vpop.f32.mrf.mxu0
        %v2024 = vadd.f32 %v1303, %v2023
        %v2025 = vpop.f32.mrf.mxu0
        %v2026 = vadd.f32 %v1307, %v2025
        %2027 = vmatprep.mubr.bf16.mxu0 0
        %2028 = vmatmul.mubr.bf16.gmra.mxu0 %v1225
        %v2029 = vpop.f32.mrf.mxu0
        %v2030 = vadd.f32 %v1303, %v2029
        %v2031 = vpop.f32.mrf.mxu0
        %v2032 = vadd.f32 %v1307, %v2031
        %v2033 = vpop.f32.mrf.mxu0
        %v2034 = vadd.f32 %v1303, %v2033
        %v2035 = vpop.f32.mrf.mxu0
        %v2036 = vadd.f32 %v1307, %v2035
        %2037 = vdwg.mxu0
        %2038 = vmatprep.subr.bf16.mxu0 %v1585
        %2039 = vmatpush1.bf16.msra.mxu0 %v1584
        %2040 = vmatprep.subr.bf16.mxu0 %v1577
        %2041 = vmatpush1.bf16.msra.mxu0 %v1576
        %2042 = vmatprep.subr.bf16.mxu0 %v1569
        %2043 = vmatpush1.bf16.msra.mxu0 %v1568
        %2044 = vmatprep.subr.bf16.mxu0 %v1561
        %2045 = vmatpush1.bf16.msra.mxu0 %v1560
        %2046 = vmatprep.subr.bf16.mxu0 %v1553
        %2047 = vmatpush1.bf16.msra.mxu0 %v1552
        %2048 = vmatprep.subr.bf16.mxu0 %v1545
        %2049 = vmatpush1.bf16.msra.mxu0 %v1544
        %2050 = vmatprep.subr.bf16.mxu0 %v1537
        %2051 = vmatpush1.bf16.msra.mxu0 %v1536
        %2052 = vmatprep.subr.bf16.mxu0 %v1529
        %2053 = vmatpush1.bf16.msra.mxu0 %v1528
        %2054 = vmatprep.subr.bf16.mxu0 0
        %2055 = vmatpush2.bf16.msra.mxu0 0
        %2056 = vmatprep.subr.bf16.mxu0 0
        %2057 = vmatpush2.bf16.msra.mxu0 0
        %2058 = vmatprep.subr.bf16.mxu0 0
        %2059 = vmatpush2.bf16.msra.mxu0 0
        %2060 = vmatprep.subr.bf16.mxu0 0
        %2061 = vmatpush2.bf16.msra.mxu0 0
        %2062 = vmatprep.subr.bf16.mxu0 0
        %2063 = vmatpush2.bf16.msra.mxu0 0
        %2064 = vmatprep.subr.bf16.mxu0 0
        %2065 = vmatpush2.bf16.msra.mxu0 0
        %2066 = vmatprep.subr.bf16.mxu0 0
        %2067 = vmatpush2.bf16.msra.mxu0 0
        %2068 = vmatprep.subr.bf16.mxu0 0
        %2069 = vmatpush2.bf16.msra.mxu0 0
        %2070 = vmatprep.mubr.bf16.mxu0 0
        %2071 = vmatmul.mubr.bf16.gmra.mxu0 %v1210
        %v2072 = vpop.f32.mrf.mxu0
        %v2073 = vadd.f32 %v1311, %v2072
        %v2074 = vpop.f32.mrf.mxu0
        %v2075 = vadd.f32 %v1315, %v2074
        %v2076 = vpop.f32.mrf.mxu0
        %v2077 = vadd.f32 %v1311, %v2076
        %v2078 = vpop.f32.mrf.mxu0
        %v2079 = vadd.f32 %v1315, %v2078
        %2080 = vmatprep.mubr.bf16.mxu0 0
        %2081 = vmatmul.mubr.bf16.gmra.mxu0 %v1211
        %v2082 = vpop.f32.mrf.mxu0
        %v2083 = vadd.f32 %v1311, %v2082
        %v2084 = vpop.f32.mrf.mxu0
        %v2085 = vadd.f32 %v1315, %v2084
        %v2086 = vpop.f32.mrf.mxu0
        %v2087 = vadd.f32 %v1311, %v2086
        %v2088 = vpop.f32.mrf.mxu0
        %v2089 = vadd.f32 %v1315, %v2088
        %2090 = vmatprep.mubr.bf16.mxu0 0
        %2091 = vmatmul.mubr.bf16.gmra.mxu0 %v1212
        %v2092 = vpop.f32.mrf.mxu0
        %v2093 = vadd.f32 %v1311, %v2092
        %v2094 = vpop.f32.mrf.mxu0
        %v2095 = vadd.f32 %v1315, %v2094
        %v2096 = vpop.f32.mrf.mxu0
        %v2097 = vadd.f32 %v1311, %v2096
        %v2098 = vpop.f32.mrf.mxu0
        %v2099 = vadd.f32 %v1315, %v2098
        %2100 = vmatprep.mubr.bf16.mxu0 0
        %2101 = vmatmul.mubr.bf16.gmra.mxu0 %v1213
        %v2102 = vpop.f32.mrf.mxu0
        %v2103 = vadd.f32 %v1311, %v2102
        %v2104 = vpop.f32.mrf.mxu0
        %v2105 = vadd.f32 %v1315, %v2104
        %v2106 = vpop.f32.mrf.mxu0
        %v2107 = vadd.f32 %v1311, %v2106
        %v2108 = vpop.f32.mrf.mxu0
        %v2109 = vadd.f32 %v1315, %v2108
        %2110 = vmatprep.mubr.bf16.mxu0 0
        %2111 = vmatmul.mubr.bf16.gmra.mxu0 %v1214
        %v2112 = vpop.f32.mrf.mxu0
        %v2113 = vadd.f32 %v1311, %v2112
        %v2114 = vpop.f32.mrf.mxu0
        %v2115 = vadd.f32 %v1315, %v2114
        %v2116 = vpop.f32.mrf.mxu0
        %v2117 = vadd.f32 %v1311, %v2116
        %v2118 = vpop.f32.mrf.mxu0
        %v2119 = vadd.f32 %v1315, %v2118
        %2120 = vmatprep.mubr.bf16.mxu0 0
        %2121 = vmatmul.mubr.bf16.gmra.mxu0 %v1215
        %v2122 = vpop.f32.mrf.mxu0
        %v2123 = vadd.f32 %v1311, %v2122
        %v2124 = vpop.f32.mrf.mxu0
        %v2125 = vadd.f32 %v1315, %v2124
        %v2126 = vpop.f32.mrf.mxu0
        %v2127 = vadd.f32 %v1311, %v2126
        %v2128 = vpop.f32.mrf.mxu0
        %v2129 = vadd.f32 %v1315, %v2128
        %2130 = vmatprep.mubr.bf16.mxu0 0
        %2131 = vmatmul.mubr.bf16.gmra.mxu0 %v1216
        %v2132 = vpop.f32.mrf.mxu0
        %v2133 = vadd.f32 %v1311, %v2132
        %v2134 = vpop.f32.mrf.mxu0
        %v2135 = vadd.f32 %v1315, %v2134
        %v2136 = vpop.f32.mrf.mxu0
        %v2137 = vadd.f32 %v1311, %v2136
        %v2138 = vpop.f32.mrf.mxu0
        %v2139 = vadd.f32 %v1315, %v2138
        %2140 = vmatprep.mubr.bf16.mxu0 0
        %2141 = vmatmul.mubr.bf16.gmra.mxu0 %v1217
        %v2142 = vpop.f32.mrf.mxu0
        %v2143 = vadd.f32 %v1311, %v2142
        %v2144 = vpop.f32.mrf.mxu0
        %v2145 = vadd.f32 %v1315, %v2144
        %v2146 = vpop.f32.mrf.mxu0
        %v2147 = vadd.f32 %v1311, %v2146
        %v2148 = vpop.f32.mrf.mxu0
        %v2149 = vadd.f32 %v1315, %v2148
        %2150 = vmatprep.mubr.bf16.mxu0 0
        %2151 = vmatmul.mubr.bf16.gmra.mxu0 %v1218
        %v2152 = vpop.f32.mrf.mxu0
        %v2153 = vadd.f32 %v1311, %v2152
        %v2154 = vpop.f32.mrf.mxu0
        %v2155 = vadd.f32 %v1315, %v2154
        %v2156 = vpop.f32.mrf.mxu0
        %v2157 = vadd.f32 %v1311, %v2156
        %v2158 = vpop.f32.mrf.mxu0
        %v2159 = vadd.f32 %v1315, %v2158
        %2160 = vmatprep.mubr.bf16.mxu0 0
        %2161 = vmatmul.mubr.bf16.gmra.mxu0 %v1219
        %v2162 = vpop.f32.mrf.mxu0
        %v2163 = vadd.f32 %v1311, %v2162
        %v2164 = vpop.f32.mrf.mxu0
        %v2165 = vadd.f32 %v1315, %v2164
        %v2166 = vpop.f32.mrf.mxu0
        %v2167 = vadd.f32 %v1311, %v2166
        %v2168 = vpop.f32.mrf.mxu0
        %v2169 = vadd.f32 %v1315, %v2168
        %2170 = vmatprep.mubr.bf16.mxu0 0
        %2171 = vmatmul.mubr.bf16.gmra.mxu0 %v1220
        %v2172 = vpop.f32.mrf.mxu0
        %v2173 = vadd.f32 %v1311, %v2172
        %v2174 = vpop.f32.mrf.mxu0
        %v2175 = vadd.f32 %v1315, %v2174
        %v2176 = vpop.f32.mrf.mxu0
        %v2177 = vadd.f32 %v1311, %v2176
        %v2178 = vpop.f32.mrf.mxu0
        %v2179 = vadd.f32 %v1315, %v2178
        %2180 = vmatprep.mubr.bf16.mxu0 0
        %2181 = vmatmul.mubr.bf16.gmra.mxu0 %v1221
        %v2182 = vpop.f32.mrf.mxu0
        %v2183 = vadd.f32 %v1311, %v2182
        %v2184 = vpop.f32.mrf.mxu0
        %v2185 = vadd.f32 %v1315, %v2184
        %v2186 = vpop.f32.mrf.mxu0
        %v2187 = vadd.f32 %v1311, %v2186
        %v2188 = vpop.f32.mrf.mxu0
        %v2189 = vadd.f32 %v1315, %v2188
        %2190 = vmatprep.mubr.bf16.mxu0 0
        %2191 = vmatmul.mubr.bf16.gmra.mxu0 %v1222
        %v2192 = vpop.f32.mrf.mxu0
        %v2193 = vadd.f32 %v1311, %v2192
        %v2194 = vpop.f32.mrf.mxu0
        %v2195 = vadd.f32 %v1315, %v2194
        %v2196 = vpop.f32.mrf.mxu0
        %v2197 = vadd.f32 %v1311, %v2196
        %v2198 = vpop.f32.mrf.mxu0
        %v2199 = vadd.f32 %v1315, %v2198
        %2200 = vmatprep.mubr.bf16.mxu0 0
        %2201 = vmatmul.mubr.bf16.gmra.mxu0 %v1223
        %v2202 = vpop.f32.mrf.mxu0
        %v2203 = vadd.f32 %v1311, %v2202
        %v2204 = vpop.f32.mrf.mxu0
        %v2205 = vadd.f32 %v1315, %v2204
        %v2206 = vpop.f32.mrf.mxu0
        %v2207 = vadd.f32 %v1311, %v2206
        %v2208 = vpop.f32.mrf.mxu0
        %v2209 = vadd.f32 %v1315, %v2208
        %2210 = vmatprep.mubr.bf16.mxu0 0
        %2211 = vmatmul.mubr.bf16.gmra.mxu0 %v1224
        %v2212 = vpop.f32.mrf.mxu0
        %v2213 = vadd.f32 %v1311, %v2212
        %v2214 = vpop.f32.mrf.mxu0
        %v2215 = vadd.f32 %v1315, %v2214
        %v2216 = vpop.f32.mrf.mxu0
        %v2217 = vadd.f32 %v1311, %v2216
        %v2218 = vpop.f32.mrf.mxu0
        %v2219 = vadd.f32 %v1315, %v2218
        %2220 = vmatprep.mubr.bf16.mxu0 0
        %2221 = vmatmul.mubr.bf16.gmra.mxu0 %v1225
        %v2222 = vpop.f32.mrf.mxu0
        %v2223 = vadd.f32 %v1311, %v2222
        %v2224 = vpop.f32.mrf.mxu0
        %v2225 = vadd.f32 %v1315, %v2224
        %v2226 = vpop.f32.mrf.mxu0
        %v2227 = vadd.f32 %v1311, %v2226
        %v2228 = vpop.f32.mrf.mxu0
        %v2229 = vadd.f32 %v1315, %v2228
        %2230 = vdwg.mxu0
        %2231 = vmatprep.subr.bf16.mxu0 %v1587
        %2232 = vmatpush1.bf16.msra.mxu0 %v1586
        %2233 = vmatprep.subr.bf16.mxu0 %v1579
        %2234 = vmatpush1.bf16.msra.mxu0 %v1578
        %2235 = vmatprep.subr.bf16.mxu0 %v1571
        %2236 = vmatpush1.bf16.msra.mxu0 %v1570
        %2237 = vmatprep.subr.bf16.mxu0 %v1563
        %2238 = vmatpush1.bf16.msra.mxu0 %v1562
        %2239 = vmatprep.subr.bf16.mxu0 %v1555
        %2240 = vmatpush1.bf16.msra.mxu0 %v1554
        %2241 = vmatprep.subr.bf16.mxu0 %v1547
        %2242 = vmatpush1.bf16.msra.mxu0 %v1546
        %2243 = vmatprep.subr.bf16.mxu0 %v1539
        %2244 = vmatpush1.bf16.msra.mxu0 %v1538
        %2245 = vmatprep.subr.bf16.mxu0 %v1531
        %2246 = vmatpush1.bf16.msra.mxu0 %v1530
        %2247 = vmatprep.subr.bf16.mxu0 0
        %2248 = vmatpush2.bf16.msra.mxu0 0
        %2249 = vmatprep.subr.bf16.mxu0 0
        %2250 = vmatpush2.bf16.msra.mxu0 0
        %2251 = vmatprep.subr.bf16.mxu0 0
        %2252 = vmatpush2.bf16.msra.mxu0 0
        %2253 = vmatprep.subr.bf16.mxu0 0
        %2254 = vmatpush2.bf16.msra.mxu0 0
        %2255 = vmatprep.subr.bf16.mxu0 0
        %2256 = vmatpush2.bf16.msra.mxu0 0
        %2257 = vmatprep.subr.bf16.mxu0 0
        %2258 = vmatpush2.bf16.msra.mxu0 0
        %2259 = vmatprep.subr.bf16.mxu0 0
        %2260 = vmatpush2.bf16.msra.mxu0 0
        %2261 = vmatprep.subr.bf16.mxu0 0
        %2262 = vmatpush2.bf16.msra.mxu0 0
        %2263 = vmatprep.mubr.bf16.mxu0 0
        %2264 = vmatmul.mubr.bf16.gmra.mxu0 %v1210
        %v2265 = vpop.f32.mrf.mxu0
        %v2266 = vadd.f32 %v1319, %v2265
        %v2267 = vpop.f32.mrf.mxu0
        %v2268 = vadd.f32 %v1323, %v2267
        %v2269 = vpop.f32.mrf.mxu0
        %v2270 = vadd.f32 %v1319, %v2269
        %v2271 = vpop.f32.mrf.mxu0
        %v2272 = vadd.f32 %v1323, %v2271
        %2273 = vmatprep.mubr.bf16.mxu0 0
        %2274 = vmatmul.mubr.bf16.gmra.mxu0 %v1211
        %v2275 = vpop.f32.mrf.mxu0
        %v2276 = vadd.f32 %v1319, %v2275
        %v2277 = vpop.f32.mrf.mxu0
        %v2278 = vadd.f32 %v1323, %v2277
        %v2279 = vpop.f32.mrf.mxu0
        %v2280 = vadd.f32 %v1319, %v2279
        %v2281 = vpop.f32.mrf.mxu0
        %v2282 = vadd.f32 %v1323, %v2281
        %2283 = vmatprep.mubr.bf16.mxu0 0
        %2284 = vmatmul.mubr.bf16.gmra.mxu0 %v1212
        %v2285 = vpop.f32.mrf.mxu0
        %v2286 = vadd.f32 %v1319, %v2285
        %v2287 = vpop.f32.mrf.mxu0
        %v2288 = vadd.f32 %v1323, %v2287
        %v2289 = vpop.f32.mrf.mxu0
        %v2290 = vadd.f32 %v1319, %v2289
        %v2291 = vpop.f32.mrf.mxu0
        %v2292 = vadd.f32 %v1323, %v2291
        %2293 = vmatprep.mubr.bf16.mxu0 0
        %2294 = vmatmul.mubr.bf16.gmra.mxu0 %v1213
        %v2295 = vpop.f32.mrf.mxu0
        %v2296 = vadd.f32 %v1319, %v2295
        %v2297 = vpop.f32.mrf.mxu0
        %v2298 = vadd.f32 %v1323, %v2297
        %v2299 = vpop.f32.mrf.mxu0
        %v2300 = vadd.f32 %v1319, %v2299
        %v2301 = vpop.f32.mrf.mxu0
        %v2302 = vadd.f32 %v1323, %v2301
        %2303 = vmatprep.mubr.bf16.mxu0 0
        %2304 = vmatmul.mubr.bf16.gmra.mxu0 %v1214
        %v2305 = vpop.f32.mrf.mxu0
        %v2306 = vadd.f32 %v1319, %v2305
        %v2307 = vpop.f32.mrf.mxu0
        %v2308 = vadd.f32 %v1323, %v2307
        %v2309 = vpop.f32.mrf.mxu0
        %v2310 = vadd.f32 %v1319, %v2309
        %v2311 = vpop.f32.mrf.mxu0
        %v2312 = vadd.f32 %v1323, %v2311
        %2313 = vmatprep.mubr.bf16.mxu0 0
        %2314 = vmatmul.mubr.bf16.gmra.mxu0 %v1215
        %v2315 = vpop.f32.mrf.mxu0
        %v2316 = vadd.f32 %v1319, %v2315
        %v2317 = vpop.f32.mrf.mxu0
        %v2318 = vadd.f32 %v1323, %v2317
        %v2319 = vpop.f32.mrf.mxu0
        %v2320 = vadd.f32 %v1319, %v2319
        %v2321 = vpop.f32.mrf.mxu0
        %v2322 = vadd.f32 %v1323, %v2321
        %2323 = vmatprep.mubr.bf16.mxu0 0
        %2324 = vmatmul.mubr.bf16.gmra.mxu0 %v1216
        %v2325 = vpop.f32.mrf.mxu0
        %v2326 = vadd.f32 %v1319, %v2325
        %v2327 = vpop.f32.mrf.mxu0
        %v2328 = vadd.f32 %v1323, %v2327
        %v2329 = vpop.f32.mrf.mxu0
        %v2330 = vadd.f32 %v1319, %v2329
        %v2331 = vpop.f32.mrf.mxu0
        %v2332 = vadd.f32 %v1323, %v2331
        %2333 = vmatprep.mubr.bf16.mxu0 0
        %2334 = vmatmul.mubr.bf16.gmra.mxu0 %v1217
        %v2335 = vpop.f32.mrf.mxu0
        %v2336 = vadd.f32 %v1319, %v2335
        %v2337 = vpop.f32.mrf.mxu0
        %v2338 = vadd.f32 %v1323, %v2337
        %v2339 = vpop.f32.mrf.mxu0
        %v2340 = vadd.f32 %v1319, %v2339
        %v2341 = vpop.f32.mrf.mxu0
        %v2342 = vadd.f32 %v1323, %v2341
        %2343 = vmatprep.mubr.bf16.mxu0 0
        %2344 = vmatmul.mubr.bf16.gmra.mxu0 %v1218
        %v2345 = vpop.f32.mrf.mxu0
        %v2346 = vadd.f32 %v1319, %v2345
        %v2347 = vpop.f32.mrf.mxu0
        %v2348 = vadd.f32 %v1323, %v2347
        %v2349 = vpop.f32.mrf.mxu0
        %v2350 = vadd.f32 %v1319, %v2349
        %v2351 = vpop.f32.mrf.mxu0
        %v2352 = vadd.f32 %v1323, %v2351
        %2353 = vmatprep.mubr.bf16.mxu0 0
        %2354 = vmatmul.mubr.bf16.gmra.mxu0 %v1219
        %v2355 = vpop.f32.mrf.mxu0
        %v2356 = vadd.f32 %v1319, %v2355
        %v2357 = vpop.f32.mrf.mxu0
        %v2358 = vadd.f32 %v1323, %v2357
        %v2359 = vpop.f32.mrf.mxu0
        %v2360 = vadd.f32 %v1319, %v2359
        %v2361 = vpop.f32.mrf.mxu0
        %v2362 = vadd.f32 %v1323, %v2361
        %2363 = vmatprep.mubr.bf16.mxu0 0
        %2364 = vmatmul.mubr.bf16.gmra.mxu0 %v1220
        %v2365 = vpop.f32.mrf.mxu0
        %v2366 = vadd.f32 %v1319, %v2365
        %v2367 = vpop.f32.mrf.mxu0
        %v2368 = vadd.f32 %v1323, %v2367
        %v2369 = vpop.f32.mrf.mxu0
        %v2370 = vadd.f32 %v1319, %v2369
        %v2371 = vpop.f32.mrf.mxu0
        %v2372 = vadd.f32 %v1323, %v2371
        %2373 = vmatprep.mubr.bf16.mxu0 0
        %2374 = vmatmul.mubr.bf16.gmra.mxu0 %v1221
        %v2375 = vpop.f32.mrf.mxu0
        %v2376 = vadd.f32 %v1319, %v2375
        %v2377 = vpop.f32.mrf.mxu0
        %v2378 = vadd.f32 %v1323, %v2377
        %v2379 = vpop.f32.mrf.mxu0
        %v2380 = vadd.f32 %v1319, %v2379
        %v2381 = vpop.f32.mrf.mxu0
        %v2382 = vadd.f32 %v1323, %v2381
        %2383 = vmatprep.mubr.bf16.mxu0 0
        %2384 = vmatmul.mubr.bf16.gmra.mxu0 %v1222
        %v2385 = vpop.f32.mrf.mxu0
        %v2386 = vadd.f32 %v1319, %v2385
        %v2387 = vpop.f32.mrf.mxu0
        %v2388 = vadd.f32 %v1323, %v2387
        %v2389 = vpop.f32.mrf.mxu0
        %v2390 = vadd.f32 %v1319, %v2389
        %v2391 = vpop.f32.mrf.mxu0
        %v2392 = vadd.f32 %v1323, %v2391
        %2393 = vmatprep.mubr.bf16.mxu0 0
        %2394 = vmatmul.mubr.bf16.gmra.mxu0 %v1223
        %v2395 = vpop.f32.mrf.mxu0
        %v2396 = vadd.f32 %v1319, %v2395
        %v2397 = vpop.f32.mrf.mxu0
        %v2398 = vadd.f32 %v1323, %v2397
        %v2399 = vpop.f32.mrf.mxu0
        %v2400 = vadd.f32 %v1319, %v2399
        %v2401 = vpop.f32.mrf.mxu0
        %v2402 = vadd.f32 %v1323, %v2401
        %2403 = vmatprep.mubr.bf16.mxu0 0
        %2404 = vmatmul.mubr.bf16.gmra.mxu0 %v1224
        %v2405 = vpop.f32.mrf.mxu0
        %v2406 = vadd.f32 %v1319, %v2405
        %v2407 = vpop.f32.mrf.mxu0
        %v2408 = vadd.f32 %v1323, %v2407
        %v2409 = vpop.f32.mrf.mxu0
        %v2410 = vadd.f32 %v1319, %v2409
        %v2411 = vpop.f32.mrf.mxu0
        %v2412 = vadd.f32 %v1323, %v2411
        %2413 = vmatprep.mubr.bf16.mxu0 0
        %2414 = vmatmul.mubr.bf16.gmra.mxu0 %v1225
        %v2415 = vpop.f32.mrf.mxu0
        %v2416 = vadd.f32 %v1319, %v2415
        %v2417 = vpop.f32.mrf.mxu0
        %v2418 = vadd.f32 %v1323, %v2417
        %v2419 = vpop.f32.mrf.mxu0
        %v2420 = vadd.f32 %v1319, %v2419
        %v2421 = vpop.f32.mrf.mxu0
        %v2422 = vadd.f32 %v1323, %v2421
        %2423 = vdwg.mxu0
        %v2424 = vmax.f32 %v1687, %v1691
        %v2425 = vmax.f32 %v2424, %v1697
        %v2426 = vmax.f32 %v2425, %v1701
        %v2427 = vmax.f32 %v2426, %v1707
        %v2428 = vmax.f32 %v2427, %v1711
        %v2429 = vmax.f32 %v2428, %v1717
        %v2430 = vmax.f32 %v2429, %v1721
        %v2431 = vmax.f32 %v2430, %v1727
        %v2432 = vmax.f32 %v2431, %v1731
        %v2433 = vmax.f32 %v2432, %v1737
        %v2434 = vmax.f32 %v2433, %v1741
        %v2435 = vmax.f32 %v2434, %v1747
        %v2436 = vmax.f32 %v2435, %v1751
        %v2437 = vmax.f32 %v2436, %v1757
        %v2438 = vmax.f32 %v2437, %v1761
        %v2439 = vrot.slane %v2438, 4
        %v2440 = vmax.f32 %v2438, %v2439
        %v2441 = vrot.slane %v2440, 2
        %v2442 = vmax.f32 %v2440, %v2441
        %v2443 = vrot.slane %v2442, 1
        %v2444 = vmax.f32 %v2442, %v2443
        %v2445 = vmax.f32 %v1689, %v1693
        %v2446 = vmax.f32 %v2445, %v1699
        %v2447 = vmax.f32 %v2446, %v1703
        %v2448 = vmax.f32 %v2447, %v1709
        %v2449 = vmax.f32 %v2448, %v1713
        %v2450 = vmax.f32 %v2449, %v1719
        %v2451 = vmax.f32 %v2450, %v1723
        %v2452 = vmax.f32 %v2451, %v1729
        %v2453 = vmax.f32 %v2452, %v1733
        %v2454 = vmax.f32 %v2453, %v1739
        %v2455 = vmax.f32 %v2454, %v1743
        %v2456 = vmax.f32 %v2455, %v1749
        %v2457 = vmax.f32 %v2456, %v1753
        %v2458 = vmax.f32 %v2457, %v1759
        %v2459 = vmax.f32 %v2458, %v1763
        %v2460 = vrot.slane %v2459, 4
        %v2461 = vmax.f32 %v2459, %v2460
        %v2462 = vrot.slane %v2461, 2
        %v2463 = vmax.f32 %v2461, %v2462
        %v2464 = vrot.slane %v2463, 1
        %v2465 = vmax.f32 %v2463, %v2464
        %v2466 = vmax.f32 %v1880, %v1884
        %v2467 = vmax.f32 %v2466, %v1890
        %v2468 = vmax.f32 %v2467, %v1894
        %v2469 = vmax.f32 %v2468, %v1900
        %v2470 = vmax.f32 %v2469, %v1904
        %v2471 = vmax.f32 %v2470, %v1910
        %v2472 = vmax.f32 %v2471, %v1914
        %v2473 = vmax.f32 %v2472, %v1920
        %v2474 = vmax.f32 %v2473, %v1924
        %v2475 = vmax.f32 %v2474, %v1930
        %v2476 = vmax.f32 %v2475, %v1934
        %v2477 = vmax.f32 %v2476, %v1940
        %v2478 = vmax.f32 %v2477, %v1944
        %v2479 = vmax.f32 %v2478, %v1950
        %v2480 = vmax.f32 %v2479, %v1954
        %v2481 = vrot.slane %v2480, 4
        %v2482 = vmax.f32 %v2480, %v2481
        %v2483 = vrot.slane %v2482, 2
        %v2484 = vmax.f32 %v2482, %v2483
        %v2485 = vrot.slane %v2484, 1
        %v2486 = vmax.f32 %v2484, %v2485
        %v2487 = vmax.f32 %v1882, %v1886
        %v2488 = vmax.f32 %v2487, %v1892
        %v2489 = vmax.f32 %v2488, %v1896
        %v2490 = vmax.f32 %v2489, %v1902
        %v2491 = vmax.f32 %v2490, %v1906
        %v2492 = vmax.f32 %v2491, %v1912
        %v2493 = vmax.f32 %v2492, %v1916
        %v2494 = vmax.f32 %v2493, %v1922
        %v2495 = vmax.f32 %v2494, %v1926
        %v2496 = vmax.f32 %v2495, %v1932
        %v2497 = vmax.f32 %v2496, %v1936
        %v2498 = vmax.f32 %v2497, %v1942
        %v2499 = vmax.f32 %v2498, %v1946
        %v2500 = vmax.f32 %v2499, %v1952
        %v2501 = vmax.f32 %v2500, %v1956
        %v2502 = vrot.slane %v2501, 4
        %v2503 = vmax.f32 %v2501, %v2502
        %v2504 = vrot.slane %v2503, 2
        %v2505 = vmax.f32 %v2503, %v2504
        %v2506 = vrot.slane %v2505, 1
        %v2507 = vmax.f32 %v2505, %v2506
        %v2508 = vmax.f32 %v2073, %v2077
        %v2509 = vmax.f32 %v2508, %v2083
        %v2510 = vmax.f32 %v2509, %v2087
        %v2511 = vmax.f32 %v2510, %v2093
        %v2512 = vmax.f32 %v2511, %v2097
        %v2513 = vmax.f32 %v2512, %v2103
        %v2514 = vmax.f32 %v2513, %v2107
        %v2515 = vmax.f32 %v2514, %v2113
        %v2516 = vmax.f32 %v2515, %v2117
        %v2517 = vmax.f32 %v2516, %v2123
        %v2518 = vmax.f32 %v2517, %v2127
        %v2519 = vmax.f32 %v2518, %v2133
        %v2520 = vmax.f32 %v2519, %v2137
        %v2521 = vmax.f32 %v2520, %v2143
        %v2522 = vmax.f32 %v2521, %v2147
        %v2523 = vrot.slane %v2522, 4
        %v2524 = vmax.f32 %v2522, %v2523
        %v2525 = vrot.slane %v2524, 2
        %v2526 = vmax.f32 %v2524, %v2525
        %v2527 = vrot.slane %v2526, 1
        %v2528 = vmax.f32 %v2526, %v2527
        %v2529 = vmax.f32 %v2075, %v2079
        %v2530 = vmax.f32 %v2529, %v2085
        %v2531 = vmax.f32 %v2530, %v2089
        %v2532 = vmax.f32 %v2531, %v2095
        %v2533 = vmax.f32 %v2532, %v2099
        %v2534 = vmax.f32 %v2533, %v2105
        %v2535 = vmax.f32 %v2534, %v2109
        %v2536 = vmax.f32 %v2535, %v2115
        %v2537 = vmax.f32 %v2536, %v2119
        %v2538 = vmax.f32 %v2537, %v2125
        %v2539 = vmax.f32 %v2538, %v2129
        %v2540 = vmax.f32 %v2539, %v2135
        %v2541 = vmax.f32 %v2540, %v2139
        %v2542 = vmax.f32 %v2541, %v2145
        %v2543 = vmax.f32 %v2542, %v2149
        %v2544 = vrot.slane %v2543, 4
        %v2545 = vmax.f32 %v2543, %v2544
        %v2546 = vrot.slane %v2545, 2
        %v2547 = vmax.f32 %v2545, %v2546
        %v2548 = vrot.slane %v2547, 1
        %v2549 = vmax.f32 %v2547, %v2548
        %v2550 = vmax.f32 %v2266, %v2270
        %v2551 = vmax.f32 %v2550, %v2276
        %v2552 = vmax.f32 %v2551, %v2280
        %v2553 = vmax.f32 %v2552, %v2286
        %v2554 = vmax.f32 %v2553, %v2290
        %v2555 = vmax.f32 %v2554, %v2296
        %v2556 = vmax.f32 %v2555, %v2300
        %v2557 = vmax.f32 %v2556, %v2306
        %v2558 = vmax.f32 %v2557, %v2310
        %v2559 = vmax.f32 %v2558, %v2316
        %v2560 = vmax.f32 %v2559, %v2320
        %v2561 = vmax.f32 %v2560, %v2326
        %v2562 = vmax.f32 %v2561, %v2330
        %v2563 = vmax.f32 %v2562, %v2336
        %v2564 = vmax.f32 %v2563, %v2340
        %v2565 = vrot.slane %v2564, 4
        %v2566 = vmax.f32 %v2564, %v2565
        %v2567 = vrot.slane %v2566, 2
        %v2568 = vmax.f32 %v2566, %v2567
        %v2569 = vrot.slane %v2568, 1
        %v2570 = vmax.f32 %v2568, %v2569
        %v2571 = vmax.f32 %v2268, %v2272
        %v2572 = vmax.f32 %v2571, %v2278
        %v2573 = vmax.f32 %v2572, %v2282
        %v2574 = vmax.f32 %v2573, %v2288
        %v2575 = vmax.f32 %v2574, %v2292
        %v2576 = vmax.f32 %v2575, %v2298
        %v2577 = vmax.f32 %v2576, %v2302
        %v2578 = vmax.f32 %v2577, %v2308
        %v2579 = vmax.f32 %v2578, %v2312
        %v2580 = vmax.f32 %v2579, %v2318
        %v2581 = vmax.f32 %v2580, %v2322
        %v2582 = vmax.f32 %v2581, %v2328
        %v2583 = vmax.f32 %v2582, %v2332
        %v2584 = vmax.f32 %v2583, %v2338
        %v2585 = vmax.f32 %v2584, %v2342
        %v2586 = vrot.slane %v2585, 4
        %v2587 = vmax.f32 %v2585, %v2586
        %v2588 = vrot.slane %v2587, 2
        %v2589 = vmax.f32 %v2587, %v2588
        %v2590 = vrot.slane %v2589, 1
        %v2591 = vmax.f32 %v2589, %v2590
        %v2592 = vmax.f32 %v1767, %v1771
        %v2593 = vmax.f32 %v2592, %v1777
        %v2594 = vmax.f32 %v2593, %v1781
        %v2595 = vmax.f32 %v2594, %v1787
        %v2596 = vmax.f32 %v2595, %v1791
        %v2597 = vmax.f32 %v2596, %v1797
        %v2598 = vmax.f32 %v2597, %v1801
        %v2599 = vmax.f32 %v2598, %v1807
        %v2600 = vmax.f32 %v2599, %v1811
        %v2601 = vmax.f32 %v2600, %v1817
        %v2602 = vmax.f32 %v2601, %v1821
        %v2603 = vmax.f32 %v2602, %v1827
        %v2604 = vmax.f32 %v2603, %v1831
        %v2605 = vmax.f32 %v2604, %v1837
        %v2606 = vmax.f32 %v2605, %v1841
        %v2607 = vrot.slane %v2606, 4
        %v2608 = vmax.f32 %v2606, %v2607
        %v2609 = vrot.slane %v2608, 2
        %v2610 = vmax.f32 %v2608, %v2609
        %v2611 = vrot.slane %v2610, 1
        %v2612 = vmax.f32 %v2610, %v2611
        %v2613 = vmax.f32 %v1769, %v1773
        %v2614 = vmax.f32 %v2613, %v1779
        %v2615 = vmax.f32 %v2614, %v1783
        %v2616 = vmax.f32 %v2615, %v1789
        %v2617 = vmax.f32 %v2616, %v1793
        %v2618 = vmax.f32 %v2617, %v1799
        %v2619 = vmax.f32 %v2618, %v1803
        %v2620 = vmax.f32 %v2619, %v1809
        %v2621 = vmax.f32 %v2620, %v1813
        %v2622 = vmax.f32 %v2621, %v1819
        %v2623 = vmax.f32 %v2622, %v1823
        %v2624 = vmax.f32 %v2623, %v1829
        %v2625 = vmax.f32 %v2624, %v1833
        %v2626 = vmax.f32 %v2625, %v1839
        %v2627 = vmax.f32 %v2626, %v1843
        %v2628 = vrot.slane %v2627, 4
        %v2629 = vmax.f32 %v2627, %v2628
        %v2630 = vrot.slane %v2629, 2
        %v2631 = vmax.f32 %v2629, %v2630
        %v2632 = vrot.slane %v2631, 1
        %v2633 = vmax.f32 %v2631, %v2632
        %v2634 = vmax.f32 %v1960, %v1964
        %v2635 = vmax.f32 %v2634, %v1970
        %v2636 = vmax.f32 %v2635, %v1974
        %v2637 = vmax.f32 %v2636, %v1980
        %v2638 = vmax.f32 %v2637, %v1984
        %v2639 = vmax.f32 %v2638, %v1990
        %v2640 = vmax.f32 %v2639, %v1994
        %v2641 = vmax.f32 %v2640, %v2000
        %v2642 = vmax.f32 %v2641, %v2004
        %v2643 = vmax.f32 %v2642, %v2010
        %v2644 = vmax.f32 %v2643, %v2014
        %v2645 = vmax.f32 %v2644, %v2020
        %v2646 = vmax.f32 %v2645, %v2024
        %v2647 = vmax.f32 %v2646, %v2030
        %v2648 = vmax.f32 %v2647, %v2034
        %v2649 = vrot.slane %v2648, 4
        %v2650 = vmax.f32 %v2648, %v2649
        %v2651 = vrot.slane %v2650, 2
        %v2652 = vmax.f32 %v2650, %v2651
        %v2653 = vrot.slane %v2652, 1
        %v2654 = vmax.f32 %v2652, %v2653
        %v2655 = vmax.f32 %v1962, %v1966
        %v2656 = vmax.f32 %v2655, %v1972
        %v2657 = vmax.f32 %v2656, %v1976
        %v2658 = vmax.f32 %v2657, %v1982
        %v2659 = vmax.f32 %v2658, %v1986
        %v2660 = vmax.f32 %v2659, %v1992
        %v2661 = vmax.f32 %v2660, %v1996
        %v2662 = vmax.f32 %v2661, %v2002
        %v2663 = vmax.f32 %v2662, %v2006
        %v2664 = vmax.f32 %v2663, %v2012
        %v2665 = vmax.f32 %v2664, %v2016
        %v2666 = vmax.f32 %v2665, %v2022
        %v2667 = vmax.f32 %v2666, %v2026
        %v2668 = vmax.f32 %v2667, %v2032
        %v2669 = vmax.f32 %v2668, %v2036
        %v2670 = vrot.slane %v2669, 4
        %v2671 = vmax.f32 %v2669, %v2670
        %v2672 = vrot.slane %v2671, 2
        %v2673 = vmax.f32 %v2671, %v2672
        %v2674 = vrot.slane %v2673, 1
        %v2675 = vmax.f32 %v2673, %v2674
        %v2676 = vmax.f32 %v2153, %v2157
        %v2677 = vmax.f32 %v2676, %v2163
        %v2678 = vmax.f32 %v2677, %v2167
        %v2679 = vmax.f32 %v2678, %v2173
        %v2680 = vmax.f32 %v2679, %v2177
        %v2681 = vmax.f32 %v2680, %v2183
        %v2682 = vmax.f32 %v2681, %v2187
        %v2683 = vmax.f32 %v2682, %v2193
        %v2684 = vmax.f32 %v2683, %v2197
        %v2685 = vmax.f32 %v2684, %v2203
        %v2686 = vmax.f32 %v2685, %v2207
        %v2687 = vmax.f32 %v2686, %v2213
        %v2688 = vmax.f32 %v2687, %v2217
        %v2689 = vmax.f32 %v2688, %v2223
        %v2690 = vmax.f32 %v2689, %v2227
        %v2691 = vrot.slane %v2690, 4
        %v2692 = vmax.f32 %v2690, %v2691
        %v2693 = vrot.slane %v2692, 2
        %v2694 = vmax.f32 %v2692, %v2693
        %v2695 = vrot.slane %v2694, 1
        %v2696 = vmax.f32 %v2694, %v2695
        %v2697 = vmax.f32 %v2155, %v2159
        %v2698 = vmax.f32 %v2697, %v2165
        %v2699 = vmax.f32 %v2698, %v2169
        %v2700 = vmax.f32 %v2699, %v2175
        %v2701 = vmax.f32 %v2700, %v2179
        %v2702 = vmax.f32 %v2701, %v2185
        %v2703 = vmax.f32 %v2702, %v2189
        %v2704 = vmax.f32 %v2703, %v2195
        %v2705 = vmax.f32 %v2704, %v2199
        %v2706 = vmax.f32 %v2705, %v2205
        %v2707 = vmax.f32 %v2706, %v2209
        %v2708 = vmax.f32 %v2707, %v2215
        %v2709 = vmax.f32 %v2708, %v2219
        %v2710 = vmax.f32 %v2709, %v2225
        %v2711 = vmax.f32 %v2710, %v2229
        %v2712 = vrot.slane %v2711, 4
        %v2713 = vmax.f32 %v2711, %v2712
        %v2714 = vrot.slane %v2713, 2
        %v2715 = vmax.f32 %v2713, %v2714
        %v2716 = vrot.slane %v2715, 1
        %v2717 = vmax.f32 %v2715, %v2716
        %v2718 = vmax.f32 %v2346, %v2350
        %v2719 = vmax.f32 %v2718, %v2356
        %v2720 = vmax.f32 %v2719, %v2360
        %v2721 = vmax.f32 %v2720, %v2366
        %v2722 = vmax.f32 %v2721, %v2370
        %v2723 = vmax.f32 %v2722, %v2376
        %v2724 = vmax.f32 %v2723, %v2380
        %v2725 = vmax.f32 %v2724, %v2386
        %v2726 = vmax.f32 %v2725, %v2390
        %v2727 = vmax.f32 %v2726, %v2396
        %v2728 = vmax.f32 %v2727, %v2400
        %v2729 = vmax.f32 %v2728, %v2406
        %v2730 = vmax.f32 %v2729, %v2410
        %v2731 = vmax.f32 %v2730, %v2416
        %v2732 = vmax.f32 %v2731, %v2420
        %v2733 = vrot.slane %v2732, 4
        %v2734 = vmax.f32 %v2732, %v2733
        %v2735 = vrot.slane %v2734, 2
        %v2736 = vmax.f32 %v2734, %v2735
        %v2737 = vrot.slane %v2736, 1
        %v2738 = vmax.f32 %v2736, %v2737
        %v2739 = vmax.f32 %v2348, %v2352
        %v2740 = vmax.f32 %v2739, %v2358
        %v2741 = vmax.f32 %v2740, %v2362
        %v2742 = vmax.f32 %v2741, %v2368
        %v2743 = vmax.f32 %v2742, %v2372
        %v2744 = vmax.f32 %v2743, %v2378
        %v2745 = vmax.f32 %v2744, %v2382
        %v2746 = vmax.f32 %v2745, %v2388
        %v2747 = vmax.f32 %v2746, %v2392
        %v2748 = vmax.f32 %v2747, %v2398
        %v2749 = vmax.f32 %v2748, %v2402
        %v2750 = vmax.f32 %v2749, %v2408
        %v2751 = vmax.f32 %v2750, %v2412
        %v2752 = vmax.f32 %v2751, %v2418
        %v2753 = vmax.f32 %v2752, %v2422
        %v2754 = vrot.slane %v2753, 4
        %v2755 = vmax.f32 %v2753, %v2754
        %v2756 = vrot.slane %v2755, 2
        %v2757 = vmax.f32 %v2755, %v2756
        %v2758 = vrot.slane %v2757, 1
        %v2759 = vmax.f32 %v2757, %v2758
        %vm2760 = vcmask 1040384
        %v2761 = vsel %vm2760, %v2444, %v2612
        %v2762 = vsel %vm2760, %v2465, %v2633
        %v2763 = vsel %vm2760, %v2486, %v2654
        %v2764 = vsel %vm2760, %v2507, %v2675
        %v2765 = vsel %vm2760, %v2528, %v2696
        %v2766 = vsel %vm2760, %v2549, %v2717
        %v2767 = vsel %vm2760, %v2570, %v2738
        %v2768 = vsel %vm2760, %v2591, %v2759
        %p2769 = scmp.eq.s32.totalorder %s35, 0
        // Predicated region
        $region130: #{tpu_custom_call.1} parent=112 // pred_check
          %p2770 = pneg %p2769
        $region131: #{tpu_custom_call.1} parent=112 // pred_check_branch
          %2772 = sbr.rel (%p2770) target = $region133
        $region132: #{tpu_custom_call.1} parent=112 // pred_region
          %2773 = vst [vmem:[#allocation2] sm:$0xff] -inf
          %2774 = vst [vmem:[#allocation2 + $0x8] sm:$0xff] -inf
        $region133: #{tpu_custom_call.1} parent=112 // pred_fallthru
          _
        %v2775 = vld [vmem:[#allocation2] sm:$0xff]
        %v2776 = vld [vmem:[#allocation2 + $0x8] sm:$0xff]
        %v2785 = vcombine.low %v2761, %v2762
        %v2786 = vcombine.low %v2763, %v2764
        %v2788 = vunpack.c.l.s4 1983009808
        %v2789 = vunpack.c.0.s8 %v2788
        %v2790 = vlaneseq
        %v2791 = vshrl.u32 %v2790, 7
        %v2792 = vsub.s32 %v2789, %v2791
        %v2793 = vrot.slane %v2785, %v2792
        %v2795 = vunpack.c.l.s4 1983009808
        %v2796 = vunpack.c.0.s8 %v2795
        %v2797 = vlaneseq
        %v2798 = vshrl.u32 %v2797, 7
        %v2799 = vsub.s32 %v2796, %v2798
        %v2800 = vrot.slane %v2786, %v2799
        %v2801 = vcombine.low %v2793, %v2800
        %v2802 = vcombine.low %v2765, %v2766
        %v2803 = vcombine.low %v2767, %v2768
        %v2805 = vunpack.c.l.s4 1983009808
        %v2806 = vunpack.c.0.s8 %v2805
        %v2807 = vlaneseq
        %v2808 = vshrl.u32 %v2807, 7
        %v2809 = vsub.s32 %v2806, %v2808
        %v2810 = vrot.slane %v2802, %v2809
        %v2812 = vunpack.c.l.s4 1983009808
        %v2813 = vunpack.c.0.s8 %v2812
        %v2814 = vlaneseq
        %v2815 = vshrl.u32 %v2814, 7
        %v2816 = vsub.s32 %v2813, %v2815
        %v2817 = vrot.slane %v2803, %v2816
        %v2818 = vcombine.low %v2810, %v2817
        %v2821 = vmax.f32 %v2775, %v2801
        %v2822 = vmax.f32 %v2776, %v2818
        %2823 = vst [vmem:[#allocation2] sm:$0xff] %v2821
        %2824 = vst [vmem:[#allocation2 + $0x8] sm:$0xff] %v2822
        %p2825 = scmp.eq.s32.totalorder %s35, 1
        // Predicated region
        $region134: #{tpu_custom_call.1} parent=112 // pred_check
          %p2826 = pneg %p2825
        $region135: #{tpu_custom_call.1} parent=112 // pred_check_branch
          %2828 = sbr.rel (%p2826) target = $region137
        $region136: #{tpu_custom_call.1} parent=112 // pred_region
          %v2829 = vld [vmem:[#allocation2] sm:$0xff]
          %v2830 = vld [vmem:[#allocation2 + $0x8] sm:$0xff]
          %v2833 = vcombine.high %v2829, %v2829
          %v2835 = vunpack.c.l.s4 1983009808
          %v2836 = vunpack.c.0.s8 %v2835
          %v2837 = vlaneseq
          %v2838 = vshrl.u32 %v2837, 7
          %v2839 = vsub.s32 %v2836, %v2838
          %v2840 = vrot.slane %v2829, %v2839
          %v2842 = vunpack.c.l.s4 1983009808
          %v2843 = vunpack.c.0.s8 %v2842
          %v2844 = vlaneseq
          %v2845 = vshrl.u32 %v2844, 7
          %v2846 = vsub.s32 %v2843, %v2845
          %v2847 = vrot.slane %v2833, %v2846
          %v2848 = vcombine.high %v2840, %v2840
          %v2849 = vcombine.high %v2847, %v2847
          %v2850 = vcombine.high %v2830, %v2830
          %v2852 = vunpack.c.l.s4 1983009808
          %v2853 = vunpack.c.0.s8 %v2852
          %v2854 = vlaneseq
          %v2855 = vshrl.u32 %v2854, 7
          %v2856 = vsub.s32 %v2853, %v2855
          %v2857 = vrot.slane %v2830, %v2856
          %v2859 = vunpack.c.l.s4 1983009808
          %v2860 = vunpack.c.0.s8 %v2859
          %v2861 = vlaneseq
          %v2862 = vshrl.u32 %v2861, 7
          %v2863 = vsub.s32 %v2860, %v2862
          %v2864 = vrot.slane %v2850, %v2863
          %v2865 = vcombine.high %v2857, %v2857
          %v2866 = vcombine.high %v2864, %v2864
          %v2875 = vpack.c.bf16 %v2840, %v2840
          %v2876 = vpack.c.bf16 %v2848, %v2848
          %v2877 = vpack.c.bf16 %v2847, %v2847
          %v2878 = vpack.c.bf16 %v2849, %v2849
          %v2879 = vpack.c.bf16 %v2857, %v2857
          %v2880 = vpack.c.bf16 %v2865, %v2865
          %v2881 = vpack.c.bf16 %v2864, %v2864
          %v2882 = vpack.c.bf16 %v2866, %v2866
          %v2883 = vld [vmem:[#allocation7] sm:$0xff]
          %v2884 = vld [vmem:[#allocation7 + $0x8] sm:$0xff]
          %v2885 = vld [vmem:[#allocation7 + $0x10] sm:$0xff]
          %v2886 = vld [vmem:[#allocation7 + $0x18] sm:$0xff]
          %v2887 = vld [vmem:[#allocation7 + $0x20] sm:$0xff]
          %v2888 = vld [vmem:[#allocation7 + $0x28] sm:$0xff]
          %v2889 = vld [vmem:[#allocation7 + $0x30] sm:$0xff]
          %v2890 = vld [vmem:[#allocation7 + $0x38] sm:$0xff]
          %v2891 = vld [vmem:[#allocation7 + $0x40] sm:$0xff]
          %v2892 = vld [vmem:[#allocation7 + $0x48] sm:$0xff]
          %v2893 = vld [vmem:[#allocation7 + $0x50] sm:$0xff]
          %v2894 = vld [vmem:[#allocation7 + $0x58] sm:$0xff]
          %v2895 = vld [vmem:[#allocation7 + $0x60] sm:$0xff]
          %v2896 = vld [vmem:[#allocation7 + $0x68] sm:$0xff]
          %v2897 = vld [vmem:[#allocation7 + $0x70] sm:$0xff]
          %v2898 = vld [vmem:[#allocation7 + $0x78] sm:$0xff]
          %v2899 = vld [vmem:[#allocation7 + $0x80] sm:$0xff]
          %v2900 = vld [vmem:[#allocation7 + $0x88] sm:$0xff]
          %v2901 = vld [vmem:[#allocation7 + $0x90] sm:$0xff]
          %v2902 = vld [vmem:[#allocation7 + $0x98] sm:$0xff]
          %v2903 = vld [vmem:[#allocation7 + $0xa0] sm:$0xff]
          %v2904 = vld [vmem:[#allocation7 + $0xa8] sm:$0xff]
          %v2905 = vld [vmem:[#allocation7 + $0xb0] sm:$0xff]
          %v2906 = vld [vmem:[#allocation7 + $0xb8] sm:$0xff]
          %v2907 = vld [vmem:[#allocation7 + $0xc0] sm:$0xff]
          %v2908 = vld [vmem:[#allocation7 + $0xc8] sm:$0xff]
          %v2909 = vld [vmem:[#allocation7 + $0xd0] sm:$0xff]
          %v2910 = vld [vmem:[#allocation7 + $0xd8] sm:$0xff]
          %v2911 = vld [vmem:[#allocation7 + $0xe0] sm:$0xff]
          %v2912 = vld [vmem:[#allocation7 + $0xe8] sm:$0xff]
          %v2913 = vld [vmem:[#allocation7 + $0xf0] sm:$0xff]
          %v2914 = vld [vmem:[#allocation7 + $0xf8] sm:$0xff]
          %v2915 = vld [vmem:[#allocation7 + $0x100] sm:$0xff]
          %v2916 = vld [vmem:[#allocation7 + $0x108] sm:$0xff]
          %v2917 = vld [vmem:[#allocation7 + $0x110] sm:$0xff]
          %v2918 = vld [vmem:[#allocation7 + $0x118] sm:$0xff]
          %v2919 = vld [vmem:[#allocation7 + $0x120] sm:$0xff]
          %v2920 = vld [vmem:[#allocation7 + $0x128] sm:$0xff]
          %v2921 = vld [vmem:[#allocation7 + $0x130] sm:$0xff]
          %v2922 = vld [vmem:[#allocation7 + $0x138] sm:$0xff]
          %v2923 = vld [vmem:[#allocation7 + $0x140] sm:$0xff]
          %v2924 = vld [vmem:[#allocation7 + $0x148] sm:$0xff]
          %v2925 = vld [vmem:[#allocation7 + $0x150] sm:$0xff]
          %v2926 = vld [vmem:[#allocation7 + $0x158] sm:$0xff]
          %v2927 = vld [vmem:[#allocation7 + $0x160] sm:$0xff]
          %v2928 = vld [vmem:[#allocation7 + $0x168] sm:$0xff]
          %v2929 = vld [vmem:[#allocation7 + $0x170] sm:$0xff]
          %v2930 = vld [vmem:[#allocation7 + $0x178] sm:$0xff]
          %v2931 = vld [vmem:[#allocation7 + $0x180] sm:$0xff]
          %v2932 = vld [vmem:[#allocation7 + $0x188] sm:$0xff]
          %v2933 = vld [vmem:[#allocation7 + $0x190] sm:$0xff]
          %v2934 = vld [vmem:[#allocation7 + $0x198] sm:$0xff]
          %v2935 = vld [vmem:[#allocation7 + $0x1a0] sm:$0xff]
          %v2936 = vld [vmem:[#allocation7 + $0x1a8] sm:$0xff]
          %v2937 = vld [vmem:[#allocation7 + $0x1b0] sm:$0xff]
          %v2938 = vld [vmem:[#allocation7 + $0x1b8] sm:$0xff]
          %v2939 = vld [vmem:[#allocation7 + $0x1c0] sm:$0xff]
          %v2940 = vld [vmem:[#allocation7 + $0x1c8] sm:$0xff]
          %v2941 = vld [vmem:[#allocation7 + $0x1d0] sm:$0xff]
          %v2942 = vld [vmem:[#allocation7 + $0x1d8] sm:$0xff]
          %v2943 = vld [vmem:[#allocation7 + $0x1e0] sm:$0xff]
          %v2944 = vld [vmem:[#allocation7 + $0x1e8] sm:$0xff]
          %v2945 = vld [vmem:[#allocation7 + $0x1f0] sm:$0xff]
          %v2946 = vld [vmem:[#allocation7 + $0x1f8] sm:$0xff]
          %v2947 = vld [vmem:[#allocation7 + $0x200] sm:$0xff]
          %v2948 = vld [vmem:[#allocation7 + $0x208] sm:$0xff]
          %v2949 = vld [vmem:[#allocation7 + $0x210] sm:$0xff]
          %v2950 = vld [vmem:[#allocation7 + $0x218] sm:$0xff]
          %v2951 = vld [vmem:[#allocation7 + $0x220] sm:$0xff]
          %v2952 = vld [vmem:[#allocation7 + $0x228] sm:$0xff]
          %v2953 = vld [vmem:[#allocation7 + $0x230] sm:$0xff]
          %v2954 = vld [vmem:[#allocation7 + $0x238] sm:$0xff]
          %v2955 = vld [vmem:[#allocation7 + $0x240] sm:$0xff]
          %v2956 = vld [vmem:[#allocation7 + $0x248] sm:$0xff]
          %v2957 = vld [vmem:[#allocation7 + $0x250] sm:$0xff]
          %v2958 = vld [vmem:[#allocation7 + $0x258] sm:$0xff]
          %v2959 = vld [vmem:[#allocation7 + $0x260] sm:$0xff]
          %v2960 = vld [vmem:[#allocation7 + $0x268] sm:$0xff]
          %v2961 = vld [vmem:[#allocation7 + $0x270] sm:$0xff]
          %v2962 = vld [vmem:[#allocation7 + $0x278] sm:$0xff]
          %v2963 = vld [vmem:[#allocation7 + $0x280] sm:$0xff]
          %v2964 = vld [vmem:[#allocation7 + $0x288] sm:$0xff]
          %v2965 = vld [vmem:[#allocation7 + $0x290] sm:$0xff]
          %v2966 = vld [vmem:[#allocation7 + $0x298] sm:$0xff]
          %v2967 = vld [vmem:[#allocation7 + $0x2a0] sm:$0xff]
          %v2968 = vld [vmem:[#allocation7 + $0x2a8] sm:$0xff]
          %v2969 = vld [vmem:[#allocation7 + $0x2b0] sm:$0xff]
          %v2970 = vld [vmem:[#allocation7 + $0x2b8] sm:$0xff]
          %v2971 = vld [vmem:[#allocation7 + $0x2c0] sm:$0xff]
          %v2972 = vld [vmem:[#allocation7 + $0x2c8] sm:$0xff]
          %v2973 = vld [vmem:[#allocation7 + $0x2d0] sm:$0xff]
          %v2974 = vld [vmem:[#allocation7 + $0x2d8] sm:$0xff]
          %v2975 = vld [vmem:[#allocation7 + $0x2e0] sm:$0xff]
          %v2976 = vld [vmem:[#allocation7 + $0x2e8] sm:$0xff]
          %v2977 = vld [vmem:[#allocation7 + $0x2f0] sm:$0xff]
          %v2978 = vld [vmem:[#allocation7 + $0x2f8] sm:$0xff]
          %v2979 = vld [vmem:[#allocation7 + $0x300] sm:$0xff]
          %v2980 = vld [vmem:[#allocation7 + $0x308] sm:$0xff]
          %v2981 = vld [vmem:[#allocation7 + $0x310] sm:$0xff]
          %v2982 = vld [vmem:[#allocation7 + $0x318] sm:$0xff]
          %v2983 = vld [vmem:[#allocation7 + $0x320] sm:$0xff]
          %v2984 = vld [vmem:[#allocation7 + $0x328] sm:$0xff]
          %v2985 = vld [vmem:[#allocation7 + $0x330] sm:$0xff]
          %v2986 = vld [vmem:[#allocation7 + $0x338] sm:$0xff]
          %v2987 = vld [vmem:[#allocation7 + $0x340] sm:$0xff]
          %v2988 = vld [vmem:[#allocation7 + $0x348] sm:$0xff]
          %v2989 = vld [vmem:[#allocation7 + $0x350] sm:$0xff]
          %v2990 = vld [vmem:[#allocation7 + $0x358] sm:$0xff]
          %v2991 = vld [vmem:[#allocation7 + $0x360] sm:$0xff]
          %v2992 = vld [vmem:[#allocation7 + $0x368] sm:$0xff]
          %v2993 = vld [vmem:[#allocation7 + $0x370] sm:$0xff]
          %v2994 = vld [vmem:[#allocation7 + $0x378] sm:$0xff]
          %v2995 = vld [vmem:[#allocation7 + $0x380] sm:$0xff]
          %v2996 = vld [vmem:[#allocation7 + $0x388] sm:$0xff]
          %v2997 = vld [vmem:[#allocation7 + $0x390] sm:$0xff]
          %v2998 = vld [vmem:[#allocation7 + $0x398] sm:$0xff]
          %v2999 = vld [vmem:[#allocation7 + $0x3a0] sm:$0xff]
          %v3000 = vld [vmem:[#allocation7 + $0x3a8] sm:$0xff]
          %v3001 = vld [vmem:[#allocation7 + $0x3b0] sm:$0xff]
          %v3002 = vld [vmem:[#allocation7 + $0x3b8] sm:$0xff]
          %v3003 = vld [vmem:[#allocation7 + $0x3c0] sm:$0xff]
          %v3004 = vld [vmem:[#allocation7 + $0x3c8] sm:$0xff]
          %v3005 = vld [vmem:[#allocation7 + $0x3d0] sm:$0xff]
          %v3006 = vld [vmem:[#allocation7 + $0x3d8] sm:$0xff]
          %v3007 = vld [vmem:[#allocation7 + $0x3e0] sm:$0xff]
          %v3008 = vld [vmem:[#allocation7 + $0x3e8] sm:$0xff]
          %v3009 = vld [vmem:[#allocation7 + $0x3f0] sm:$0xff]
          %v3010 = vld [vmem:[#allocation7 + $0x3f8] sm:$0xff]
          %v3011 = vld [vmem:[#allocation7 + $0x400] sm:$0xff]
          %v3012 = vld [vmem:[#allocation7 + $0x408] sm:$0xff]
          %v3013 = vld [vmem:[#allocation7 + $0x410] sm:$0xff]
          %v3014 = vld [vmem:[#allocation7 + $0x418] sm:$0xff]
          %v3015 = vld [vmem:[#allocation7 + $0x420] sm:$0xff]
          %v3016 = vld [vmem:[#allocation7 + $0x428] sm:$0xff]
          %v3017 = vld [vmem:[#allocation7 + $0x430] sm:$0xff]
          %v3018 = vld [vmem:[#allocation7 + $0x438] sm:$0xff]
          %v3019 = vld [vmem:[#allocation7 + $0x440] sm:$0xff]
          %v3020 = vld [vmem:[#allocation7 + $0x448] sm:$0xff]
          %v3021 = vld [vmem:[#allocation7 + $0x450] sm:$0xff]
          %v3022 = vld [vmem:[#allocation7 + $0x458] sm:$0xff]
          %v3023 = vld [vmem:[#allocation7 + $0x460] sm:$0xff]
          %v3024 = vld [vmem:[#allocation7 + $0x468] sm:$0xff]
          %v3025 = vld [vmem:[#allocation7 + $0x470] sm:$0xff]
          %v3026 = vld [vmem:[#allocation7 + $0x478] sm:$0xff]
          %v3027 = vld [vmem:[#allocation7 + $0x480] sm:$0xff]
          %v3028 = vld [vmem:[#allocation7 + $0x488] sm:$0xff]
          %v3029 = vld [vmem:[#allocation7 + $0x490] sm:$0xff]
          %v3030 = vld [vmem:[#allocation7 + $0x498] sm:$0xff]
          %v3031 = vld [vmem:[#allocation7 + $0x4a0] sm:$0xff]
          %v3032 = vld [vmem:[#allocation7 + $0x4a8] sm:$0xff]
          %v3033 = vld [vmem:[#allocation7 + $0x4b0] sm:$0xff]
          %v3034 = vld [vmem:[#allocation7 + $0x4b8] sm:$0xff]
          %v3035 = vld [vmem:[#allocation7 + $0x4c0] sm:$0xff]
          %v3036 = vld [vmem:[#allocation7 + $0x4c8] sm:$0xff]
          %v3037 = vld [vmem:[#allocation7 + $0x4d0] sm:$0xff]
          %v3038 = vld [vmem:[#allocation7 + $0x4d8] sm:$0xff]
          %v3039 = vld [vmem:[#allocation7 + $0x4e0] sm:$0xff]
          %v3040 = vld [vmem:[#allocation7 + $0x4e8] sm:$0xff]
          %v3041 = vld [vmem:[#allocation7 + $0x4f0] sm:$0xff]
          %v3042 = vld [vmem:[#allocation7 + $0x4f8] sm:$0xff]
          %v3043 = vld [vmem:[#allocation7 + $0x500] sm:$0xff]
          %v3044 = vld [vmem:[#allocation7 + $0x508] sm:$0xff]
          %v3045 = vld [vmem:[#allocation7 + $0x510] sm:$0xff]
          %v3046 = vld [vmem:[#allocation7 + $0x518] sm:$0xff]
          %v3047 = vld [vmem:[#allocation7 + $0x520] sm:$0xff]
          %v3048 = vld [vmem:[#allocation7 + $0x528] sm:$0xff]
          %v3049 = vld [vmem:[#allocation7 + $0x530] sm:$0xff]
          %v3050 = vld [vmem:[#allocation7 + $0x538] sm:$0xff]
          %v3051 = vld [vmem:[#allocation7 + $0x540] sm:$0xff]
          %v3052 = vld [vmem:[#allocation7 + $0x548] sm:$0xff]
          %v3053 = vld [vmem:[#allocation7 + $0x550] sm:$0xff]
          %v3054 = vld [vmem:[#allocation7 + $0x558] sm:$0xff]
          %v3055 = vld [vmem:[#allocation7 + $0x560] sm:$0xff]
          %v3056 = vld [vmem:[#allocation7 + $0x568] sm:$0xff]
          %v3057 = vld [vmem:[#allocation7 + $0x570] sm:$0xff]
          %v3058 = vld [vmem:[#allocation7 + $0x578] sm:$0xff]
          %v3059 = vld [vmem:[#allocation7 + $0x580] sm:$0xff]
          %v3060 = vld [vmem:[#allocation7 + $0x588] sm:$0xff]
          %v3061 = vld [vmem:[#allocation7 + $0x590] sm:$0xff]
          %v3062 = vld [vmem:[#allocation7 + $0x598] sm:$0xff]
          %v3063 = vld [vmem:[#allocation7 + $0x5a0] sm:$0xff]
          %v3064 = vld [vmem:[#allocation7 + $0x5a8] sm:$0xff]
          %v3065 = vld [vmem:[#allocation7 + $0x5b0] sm:$0xff]
          %v3066 = vld [vmem:[#allocation7 + $0x5b8] sm:$0xff]
          %v3067 = vld [vmem:[#allocation7 + $0x5c0] sm:$0xff]
          %v3068 = vld [vmem:[#allocation7 + $0x5c8] sm:$0xff]
          %v3069 = vld [vmem:[#allocation7 + $0x5d0] sm:$0xff]
          %v3070 = vld [vmem:[#allocation7 + $0x5d8] sm:$0xff]
          %v3071 = vld [vmem:[#allocation7 + $0x5e0] sm:$0xff]
          %v3072 = vld [vmem:[#allocation7 + $0x5e8] sm:$0xff]
          %v3073 = vld [vmem:[#allocation7 + $0x5f0] sm:$0xff]
          %v3074 = vld [vmem:[#allocation7 + $0x5f8] sm:$0xff]
          %v3075 = vld [vmem:[#allocation7 + $0x600] sm:$0xff]
          %v3076 = vld [vmem:[#allocation7 + $0x608] sm:$0xff]
          %v3077 = vld [vmem:[#allocation7 + $0x610] sm:$0xff]
          %v3078 = vld [vmem:[#allocation7 + $0x618] sm:$0xff]
          %v3079 = vld [vmem:[#allocation7 + $0x620] sm:$0xff]
          %v3080 = vld [vmem:[#allocation7 + $0x628] sm:$0xff]
          %v3081 = vld [vmem:[#allocation7 + $0x630] sm:$0xff]
          %v3082 = vld [vmem:[#allocation7 + $0x638] sm:$0xff]
          %v3083 = vld [vmem:[#allocation7 + $0x640] sm:$0xff]
          %v3084 = vld [vmem:[#allocation7 + $0x648] sm:$0xff]
          %v3085 = vld [vmem:[#allocation7 + $0x650] sm:$0xff]
          %v3086 = vld [vmem:[#allocation7 + $0x658] sm:$0xff]
          %v3087 = vld [vmem:[#allocation7 + $0x660] sm:$0xff]
          %v3088 = vld [vmem:[#allocation7 + $0x668] sm:$0xff]
          %v3089 = vld [vmem:[#allocation7 + $0x670] sm:$0xff]
          %v3090 = vld [vmem:[#allocation7 + $0x678] sm:$0xff]
          %v3091 = vld [vmem:[#allocation7 + $0x680] sm:$0xff]
          %v3092 = vld [vmem:[#allocation7 + $0x688] sm:$0xff]
          %v3093 = vld [vmem:[#allocation7 + $0x690] sm:$0xff]
          %v3094 = vld [vmem:[#allocation7 + $0x698] sm:$0xff]
          %v3095 = vld [vmem:[#allocation7 + $0x6a0] sm:$0xff]
          %v3096 = vld [vmem:[#allocation7 + $0x6a8] sm:$0xff]
          %v3097 = vld [vmem:[#allocation7 + $0x6b0] sm:$0xff]
          %v3098 = vld [vmem:[#allocation7 + $0x6b8] sm:$0xff]
          %v3099 = vld [vmem:[#allocation7 + $0x6c0] sm:$0xff]
          %v3100 = vld [vmem:[#allocation7 + $0x6c8] sm:$0xff]
          %v3101 = vld [vmem:[#allocation7 + $0x6d0] sm:$0xff]
          %v3102 = vld [vmem:[#allocation7 + $0x6d8] sm:$0xff]
          %v3103 = vld [vmem:[#allocation7 + $0x6e0] sm:$0xff]
          %v3104 = vld [vmem:[#allocation7 + $0x6e8] sm:$0xff]
          %v3105 = vld [vmem:[#allocation7 + $0x6f0] sm:$0xff]
          %v3106 = vld [vmem:[#allocation7 + $0x6f8] sm:$0xff]
          %v3107 = vld [vmem:[#allocation7 + $0x700] sm:$0xff]
          %v3108 = vld [vmem:[#allocation7 + $0x708] sm:$0xff]
          %v3109 = vld [vmem:[#allocation7 + $0x710] sm:$0xff]
          %v3110 = vld [vmem:[#allocation7 + $0x718] sm:$0xff]
          %v3111 = vld [vmem:[#allocation7 + $0x720] sm:$0xff]
          %v3112 = vld [vmem:[#allocation7 + $0x728] sm:$0xff]
          %v3113 = vld [vmem:[#allocation7 + $0x730] sm:$0xff]
          %v3114 = vld [vmem:[#allocation7 + $0x738] sm:$0xff]
          %v3115 = vld [vmem:[#allocation7 + $0x740] sm:$0xff]
          %v3116 = vld [vmem:[#allocation7 + $0x748] sm:$0xff]
          %v3117 = vld [vmem:[#allocation7 + $0x750] sm:$0xff]
          %v3118 = vld [vmem:[#allocation7 + $0x758] sm:$0xff]
          %v3119 = vld [vmem:[#allocation7 + $0x760] sm:$0xff]
          %v3120 = vld [vmem:[#allocation7 + $0x768] sm:$0xff]
          %v3121 = vld [vmem:[#allocation7 + $0x770] sm:$0xff]
          %v3122 = vld [vmem:[#allocation7 + $0x778] sm:$0xff]
          %v3123 = vld [vmem:[#allocation7 + $0x780] sm:$0xff]
          %v3124 = vld [vmem:[#allocation7 + $0x788] sm:$0xff]
          %v3125 = vld [vmem:[#allocation7 + $0x790] sm:$0xff]
          %v3126 = vld [vmem:[#allocation7 + $0x798] sm:$0xff]
          %v3127 = vld [vmem:[#allocation7 + $0x7a0] sm:$0xff]
          %v3128 = vld [vmem:[#allocation7 + $0x7a8] sm:$0xff]
          %v3129 = vld [vmem:[#allocation7 + $0x7b0] sm:$0xff]
          %v3130 = vld [vmem:[#allocation7 + $0x7b8] sm:$0xff]
          %v3131 = vld [vmem:[#allocation7 + $0x7c0] sm:$0xff]
          %v3132 = vld [vmem:[#allocation7 + $0x7c8] sm:$0xff]
          %v3133 = vld [vmem:[#allocation7 + $0x7d0] sm:$0xff]
          %v3134 = vld [vmem:[#allocation7 + $0x7d8] sm:$0xff]
          %v3135 = vld [vmem:[#allocation7 + $0x7e0] sm:$0xff]
          %v3136 = vld [vmem:[#allocation7 + $0x7e8] sm:$0xff]
          %v3137 = vld [vmem:[#allocation7 + $0x7f0] sm:$0xff]
          %v3138 = vld [vmem:[#allocation7 + $0x7f8] sm:$0xff]
          %v3139 = vld [vmem:[%s8] sm:$0xf]
          %v3141 = vlaneseq
          %v3142 = vshrl.u32 %v3141, 7
          %v3143 = vsub.s32 0, %v3142
          %v3144 = vrot.slane %v3139, %v3143
          %v3145 = vlaneseq
          %v3146 = vshrl.u32 %v3145, 7
          %v3147 = vsub.s32 1, %v3146
          %v3148 = vrot.slane %v3139, %v3147
          %v3149 = vlaneseq
          %v3150 = vshrl.u32 %v3149, 7
          %v3151 = vsub.s32 2, %v3150
          %v3152 = vrot.slane %v3139, %v3151
          %v3153 = vlaneseq
          %v3154 = vshrl.u32 %v3153, 7
          %v3155 = vsub.s32 3, %v3154
          %v3156 = vrot.slane %v3139, %v3155
          %v3417 = vunpack.c.l.b16 %v2883
          %v3418 = vunpack.c.h.b16 %v2883
          %v3419 = vunpack.c.l.b16 %v2884
          %v3420 = vunpack.c.h.b16 %v2884
          %v3421 = vunpack.c.l.b16 %v2885
          %v3422 = vunpack.c.h.b16 %v2885
          %v3423 = vunpack.c.l.b16 %v2886
          %v3424 = vunpack.c.h.b16 %v2886
          %v3425 = vunpack.c.l.b16 %v2887
          %v3426 = vunpack.c.h.b16 %v2887
          %v3427 = vunpack.c.l.b16 %v2888
          %v3428 = vunpack.c.h.b16 %v2888
          %v3429 = vunpack.c.l.b16 %v2889
          %v3430 = vunpack.c.h.b16 %v2889
          %v3431 = vunpack.c.l.b16 %v2890
          %v3432 = vunpack.c.h.b16 %v2890
          %v3433 = vunpack.c.l.b16 %v2891
          %v3434 = vunpack.c.h.b16 %v2891
          %v3435 = vunpack.c.l.b16 %v2892
          %v3436 = vunpack.c.h.b16 %v2892
          %v3437 = vunpack.c.l.b16 %v2893
          %v3438 = vunpack.c.h.b16 %v2893
          %v3439 = vunpack.c.l.b16 %v2894
          %v3440 = vunpack.c.h.b16 %v2894
          %v3441 = vunpack.c.l.b16 %v2895
          %v3442 = vunpack.c.h.b16 %v2895
          %v3443 = vunpack.c.l.b16 %v2896
          %v3444 = vunpack.c.h.b16 %v2896
          %v3445 = vunpack.c.l.b16 %v2897
          %v3446 = vunpack.c.h.b16 %v2897
          %v3447 = vunpack.c.l.b16 %v2898
          %v3448 = vunpack.c.h.b16 %v2898
          %v3449 = vunpack.c.l.b16 %v2899
          %v3450 = vunpack.c.h.b16 %v2899
          %v3451 = vunpack.c.l.b16 %v2900
          %v3452 = vunpack.c.h.b16 %v2900
          %v3453 = vunpack.c.l.b16 %v2901
          %v3454 = vunpack.c.h.b16 %v2901
          %v3455 = vunpack.c.l.b16 %v2902
          %v3456 = vunpack.c.h.b16 %v2902
          %v3457 = vunpack.c.l.b16 %v2903
          %v3458 = vunpack.c.h.b16 %v2903
          %v3459 = vunpack.c.l.b16 %v2904
          %v3460 = vunpack.c.h.b16 %v2904
          %v3461 = vunpack.c.l.b16 %v2905
          %v3462 = vunpack.c.h.b16 %v2905
          %v3463 = vunpack.c.l.b16 %v2906
          %v3464 = vunpack.c.h.b16 %v2906
          %v3465 = vunpack.c.l.b16 %v2907
          %v3466 = vunpack.c.h.b16 %v2907
          %v3467 = vunpack.c.l.b16 %v2908
          %v3468 = vunpack.c.h.b16 %v2908
          %v3469 = vunpack.c.l.b16 %v2909
          %v3470 = vunpack.c.h.b16 %v2909
          %v3471 = vunpack.c.l.b16 %v2910
          %v3472 = vunpack.c.h.b16 %v2910
          %v3473 = vunpack.c.l.b16 %v2911
          %v3474 = vunpack.c.h.b16 %v2911
          %v3475 = vunpack.c.l.b16 %v2912
          %v3476 = vunpack.c.h.b16 %v2912
          %v3477 = vunpack.c.l.b16 %v2913
          %v3478 = vunpack.c.h.b16 %v2913
          %v3479 = vunpack.c.l.b16 %v2914
          %v3480 = vunpack.c.h.b16 %v2914
          %v3481 = vunpack.c.l.b16 %v2915
          %v3482 = vunpack.c.h.b16 %v2915
          %v3483 = vunpack.c.l.b16 %v2916
          %v3484 = vunpack.c.h.b16 %v2916
          %v3485 = vunpack.c.l.b16 %v2917
          %v3486 = vunpack.c.h.b16 %v2917
          %v3487 = vunpack.c.l.b16 %v2918
          %v3488 = vunpack.c.h.b16 %v2918
          %v3489 = vunpack.c.l.b16 %v2919
          %v3490 = vunpack.c.h.b16 %v2919
          %v3491 = vunpack.c.l.b16 %v2920
          %v3492 = vunpack.c.h.b16 %v2920
          %v3493 = vunpack.c.l.b16 %v2921
          %v3494 = vunpack.c.h.b16 %v2921
          %v3495 = vunpack.c.l.b16 %v2922
          %v3496 = vunpack.c.h.b16 %v2922
          %v3497 = vunpack.c.l.b16 %v2923
          %v3498 = vunpack.c.h.b16 %v2923
          %v3499 = vunpack.c.l.b16 %v2924
          %v3500 = vunpack.c.h.b16 %v2924
          %v3501 = vunpack.c.l.b16 %v2925
          %v3502 = vunpack.c.h.b16 %v2925
          %v3503 = vunpack.c.l.b16 %v2926
          %v3504 = vunpack.c.h.b16 %v2926
          %v3505 = vunpack.c.l.b16 %v2927
          %v3506 = vunpack.c.h.b16 %v2927
          %v3507 = vunpack.c.l.b16 %v2928
          %v3508 = vunpack.c.h.b16 %v2928
          %v3509 = vunpack.c.l.b16 %v2929
          %v3510 = vunpack.c.h.b16 %v2929
          %v3511 = vunpack.c.l.b16 %v2930
          %v3512 = vunpack.c.h.b16 %v2930
          %v3513 = vunpack.c.l.b16 %v2931
          %v3514 = vunpack.c.h.b16 %v2931
          %v3515 = vunpack.c.l.b16 %v2932
          %v3516 = vunpack.c.h.b16 %v2932
          %v3517 = vunpack.c.l.b16 %v2933
          %v3518 = vunpack.c.h.b16 %v2933
          %v3519 = vunpack.c.l.b16 %v2934
          %v3520 = vunpack.c.h.b16 %v2934
          %v3521 = vunpack.c.l.b16 %v2935
          %v3522 = vunpack.c.h.b16 %v2935
          %v3523 = vunpack.c.l.b16 %v2936
          %v3524 = vunpack.c.h.b16 %v2936
          %v3525 = vunpack.c.l.b16 %v2937
          %v3526 = vunpack.c.h.b16 %v2937
          %v3527 = vunpack.c.l.b16 %v2938
          %v3528 = vunpack.c.h.b16 %v2938
          %v3529 = vunpack.c.l.b16 %v2939
          %v3530 = vunpack.c.h.b16 %v2939
          %v3531 = vunpack.c.l.b16 %v2940
          %v3532 = vunpack.c.h.b16 %v2940
          %v3533 = vunpack.c.l.b16 %v2941
          %v3534 = vunpack.c.h.b16 %v2941
          %v3535 = vunpack.c.l.b16 %v2942
          %v3536 = vunpack.c.h.b16 %v2942
          %v3537 = vunpack.c.l.b16 %v2943
          %v3538 = vunpack.c.h.b16 %v2943
          %v3539 = vunpack.c.l.b16 %v2944
          %v3540 = vunpack.c.h.b16 %v2944
          %v3541 = vunpack.c.l.b16 %v2945
          %v3542 = vunpack.c.h.b16 %v2945
          %v3543 = vunpack.c.l.b16 %v2946
          %v3544 = vunpack.c.h.b16 %v2946
          %v3545 = vunpack.c.l.b16 %v2947
          %v3546 = vunpack.c.h.b16 %v2947
          %v3547 = vunpack.c.l.b16 %v2948
          %v3548 = vunpack.c.h.b16 %v2948
          %v3549 = vunpack.c.l.b16 %v2949
          %v3550 = vunpack.c.h.b16 %v2949
          %v3551 = vunpack.c.l.b16 %v2950
          %v3552 = vunpack.c.h.b16 %v2950
          %v3553 = vunpack.c.l.b16 %v2951
          %v3554 = vunpack.c.h.b16 %v2951
          %v3555 = vunpack.c.l.b16 %v2952
          %v3556 = vunpack.c.h.b16 %v2952
          %v3557 = vunpack.c.l.b16 %v2953
          %v3558 = vunpack.c.h.b16 %v2953
          %v3559 = vunpack.c.l.b16 %v2954
          %v3560 = vunpack.c.h.b16 %v2954
          %v3561 = vunpack.c.l.b16 %v2955
          %v3562 = vunpack.c.h.b16 %v2955
          %v3563 = vunpack.c.l.b16 %v2956
          %v3564 = vunpack.c.h.b16 %v2956
          %v3565 = vunpack.c.l.b16 %v2957
          %v3566 = vunpack.c.h.b16 %v2957
          %v3567 = vunpack.c.l.b16 %v2958
          %v3568 = vunpack.c.h.b16 %v2958
          %v3569 = vunpack.c.l.b16 %v2959
          %v3570 = vunpack.c.h.b16 %v2959
          %v3571 = vunpack.c.l.b16 %v2960
          %v3572 = vunpack.c.h.b16 %v2960
          %v3573 = vunpack.c.l.b16 %v2961
          %v3574 = vunpack.c.h.b16 %v2961
          %v3575 = vunpack.c.l.b16 %v2962
          %v3576 = vunpack.c.h.b16 %v2962
          %v3577 = vunpack.c.l.b16 %v2963
          %v3578 = vunpack.c.h.b16 %v2963
          %v3579 = vunpack.c.l.b16 %v2964
          %v3580 = vunpack.c.h.b16 %v2964
          %v3581 = vunpack.c.l.b16 %v2965
          %v3582 = vunpack.c.h.b16 %v2965
          %v3583 = vunpack.c.l.b16 %v2966
          %v3584 = vunpack.c.h.b16 %v2966
          %v3585 = vunpack.c.l.b16 %v2967
          %v3586 = vunpack.c.h.b16 %v2967
          %v3587 = vunpack.c.l.b16 %v2968
          %v3588 = vunpack.c.h.b16 %v2968
          %v3589 = vunpack.c.l.b16 %v2969
          %v3590 = vunpack.c.h.b16 %v2969
          %v3591 = vunpack.c.l.b16 %v2970
          %v3592 = vunpack.c.h.b16 %v2970
          %v3593 = vunpack.c.l.b16 %v2971
          %v3594 = vunpack.c.h.b16 %v2971
          %v3595 = vunpack.c.l.b16 %v2972
          %v3596 = vunpack.c.h.b16 %v2972
          %v3597 = vunpack.c.l.b16 %v2973
          %v3598 = vunpack.c.h.b16 %v2973
          %v3599 = vunpack.c.l.b16 %v2974
          %v3600 = vunpack.c.h.b16 %v2974
          %v3601 = vunpack.c.l.b16 %v2975
          %v3602 = vunpack.c.h.b16 %v2975
          %v3603 = vunpack.c.l.b16 %v2976
          %v3604 = vunpack.c.h.b16 %v2976
          %v3605 = vunpack.c.l.b16 %v2977
          %v3606 = vunpack.c.h.b16 %v2977
          %v3607 = vunpack.c.l.b16 %v2978
          %v3608 = vunpack.c.h.b16 %v2978
          %v3609 = vunpack.c.l.b16 %v2979
          %v3610 = vunpack.c.h.b16 %v2979
          %v3611 = vunpack.c.l.b16 %v2980
          %v3612 = vunpack.c.h.b16 %v2980
          %v3613 = vunpack.c.l.b16 %v2981
          %v3614 = vunpack.c.h.b16 %v2981
          %v3615 = vunpack.c.l.b16 %v2982
          %v3616 = vunpack.c.h.b16 %v2982
          %v3617 = vunpack.c.l.b16 %v2983
          %v3618 = vunpack.c.h.b16 %v2983
          %v3619 = vunpack.c.l.b16 %v2984
          %v3620 = vunpack.c.h.b16 %v2984
          %v3621 = vunpack.c.l.b16 %v2985
          %v3622 = vunpack.c.h.b16 %v2985
          %v3623 = vunpack.c.l.b16 %v2986
          %v3624 = vunpack.c.h.b16 %v2986
          %v3625 = vunpack.c.l.b16 %v2987
          %v3626 = vunpack.c.h.b16 %v2987
          %v3627 = vunpack.c.l.b16 %v2988
          %v3628 = vunpack.c.h.b16 %v2988
          %v3629 = vunpack.c.l.b16 %v2989
          %v3630 = vunpack.c.h.b16 %v2989
          %v3631 = vunpack.c.l.b16 %v2990
          %v3632 = vunpack.c.h.b16 %v2990
          %v3633 = vunpack.c.l.b16 %v2991
          %v3634 = vunpack.c.h.b16 %v2991
          %v3635 = vunpack.c.l.b16 %v2992
          %v3636 = vunpack.c.h.b16 %v2992
          %v3637 = vunpack.c.l.b16 %v2993
          %v3638 = vunpack.c.h.b16 %v2993
          %v3639 = vunpack.c.l.b16 %v2994
          %v3640 = vunpack.c.h.b16 %v2994
          %v3641 = vunpack.c.l.b16 %v2995
          %v3642 = vunpack.c.h.b16 %v2995
          %v3643 = vunpack.c.l.b16 %v2996
          %v3644 = vunpack.c.h.b16 %v2996
          %v3645 = vunpack.c.l.b16 %v2997
          %v3646 = vunpack.c.h.b16 %v2997
          %v3647 = vunpack.c.l.b16 %v2998
          %v3648 = vunpack.c.h.b16 %v2998
          %v3649 = vunpack.c.l.b16 %v2999
          %v3650 = vunpack.c.h.b16 %v2999
          %v3651 = vunpack.c.l.b16 %v3000
          %v3652 = vunpack.c.h.b16 %v3000
          %v3653 = vunpack.c.l.b16 %v3001
          %v3654 = vunpack.c.h.b16 %v3001
          %v3655 = vunpack.c.l.b16 %v3002
          %v3656 = vunpack.c.h.b16 %v3002
          %v3657 = vunpack.c.l.b16 %v3003
          %v3658 = vunpack.c.h.b16 %v3003
          %v3659 = vunpack.c.l.b16 %v3004
          %v3660 = vunpack.c.h.b16 %v3004
          %v3661 = vunpack.c.l.b16 %v3005
          %v3662 = vunpack.c.h.b16 %v3005
          %v3663 = vunpack.c.l.b16 %v3006
          %v3664 = vunpack.c.h.b16 %v3006
          %v3665 = vunpack.c.l.b16 %v3007
          %v3666 = vunpack.c.h.b16 %v3007
          %v3667 = vunpack.c.l.b16 %v3008
          %v3668 = vunpack.c.h.b16 %v3008
          %v3669 = vunpack.c.l.b16 %v3009
          %v3670 = vunpack.c.h.b16 %v3009
          %v3671 = vunpack.c.l.b16 %v3010
          %v3672 = vunpack.c.h.b16 %v3010
          %v3673 = vunpack.c.l.b16 %v3011
          %v3674 = vunpack.c.h.b16 %v3011
          %v3675 = vunpack.c.l.b16 %v3012
          %v3676 = vunpack.c.h.b16 %v3012
          %v3677 = vunpack.c.l.b16 %v3013
          %v3678 = vunpack.c.h.b16 %v3013
          %v3679 = vunpack.c.l.b16 %v3014
          %v3680 = vunpack.c.h.b16 %v3014
          %v3681 = vunpack.c.l.b16 %v3015
          %v3682 = vunpack.c.h.b16 %v3015
          %v3683 = vunpack.c.l.b16 %v3016
          %v3684 = vunpack.c.h.b16 %v3016
          %v3685 = vunpack.c.l.b16 %v3017
          %v3686 = vunpack.c.h.b16 %v3017
          %v3687 = vunpack.c.l.b16 %v3018
          %v3688 = vunpack.c.h.b16 %v3018
          %v3689 = vunpack.c.l.b16 %v3019
          %v3690 = vunpack.c.h.b16 %v3019
          %v3691 = vunpack.c.l.b16 %v3020
          %v3692 = vunpack.c.h.b16 %v3020
          %v3693 = vunpack.c.l.b16 %v3021
          %v3694 = vunpack.c.h.b16 %v3021
          %v3695 = vunpack.c.l.b16 %v3022
          %v3696 = vunpack.c.h.b16 %v3022
          %v3697 = vunpack.c.l.b16 %v3023
          %v3698 = vunpack.c.h.b16 %v3023
          %v3699 = vunpack.c.l.b16 %v3024
          %v3700 = vunpack.c.h.b16 %v3024
          %v3701 = vunpack.c.l.b16 %v3025
          %v3702 = vunpack.c.h.b16 %v3025
          %v3703 = vunpack.c.l.b16 %v3026
          %v3704 = vunpack.c.h.b16 %v3026
          %v3705 = vunpack.c.l.b16 %v3027
          %v3706 = vunpack.c.h.b16 %v3027
          %v3707 = vunpack.c.l.b16 %v3028
          %v3708 = vunpack.c.h.b16 %v3028
          %v3709 = vunpack.c.l.b16 %v3029
          %v3710 = vunpack.c.h.b16 %v3029
          %v3711 = vunpack.c.l.b16 %v3030
          %v3712 = vunpack.c.h.b16 %v3030
          %v3713 = vunpack.c.l.b16 %v3031
          %v3714 = vunpack.c.h.b16 %v3031
          %v3715 = vunpack.c.l.b16 %v3032
          %v3716 = vunpack.c.h.b16 %v3032
          %v3717 = vunpack.c.l.b16 %v3033
          %v3718 = vunpack.c.h.b16 %v3033
          %v3719 = vunpack.c.l.b16 %v3034
          %v3720 = vunpack.c.h.b16 %v3034
          %v3721 = vunpack.c.l.b16 %v3035
          %v3722 = vunpack.c.h.b16 %v3035
          %v3723 = vunpack.c.l.b16 %v3036
          %v3724 = vunpack.c.h.b16 %v3036
          %v3725 = vunpack.c.l.b16 %v3037
          %v3726 = vunpack.c.h.b16 %v3037
          %v3727 = vunpack.c.l.b16 %v3038
          %v3728 = vunpack.c.h.b16 %v3038
          %v3729 = vunpack.c.l.b16 %v3039
          %v3730 = vunpack.c.h.b16 %v3039
          %v3731 = vunpack.c.l.b16 %v3040
          %v3732 = vunpack.c.h.b16 %v3040
          %v3733 = vunpack.c.l.b16 %v3041
          %v3734 = vunpack.c.h.b16 %v3041
          %v3735 = vunpack.c.l.b16 %v3042
          %v3736 = vunpack.c.h.b16 %v3042
          %v3737 = vunpack.c.l.b16 %v3043
          %v3738 = vunpack.c.h.b16 %v3043
          %v3739 = vunpack.c.l.b16 %v3044
          %v3740 = vunpack.c.h.b16 %v3044
          %v3741 = vunpack.c.l.b16 %v3045
          %v3742 = vunpack.c.h.b16 %v3045
          %v3743 = vunpack.c.l.b16 %v3046
          %v3744 = vunpack.c.h.b16 %v3046
          %v3745 = vunpack.c.l.b16 %v3047
          %v3746 = vunpack.c.h.b16 %v3047
          %v3747 = vunpack.c.l.b16 %v3048
          %v3748 = vunpack.c.h.b16 %v3048
          %v3749 = vunpack.c.l.b16 %v3049
          %v3750 = vunpack.c.h.b16 %v3049
          %v3751 = vunpack.c.l.b16 %v3050
          %v3752 = vunpack.c.h.b16 %v3050
          %v3753 = vunpack.c.l.b16 %v3051
          %v3754 = vunpack.c.h.b16 %v3051
          %v3755 = vunpack.c.l.b16 %v3052
          %v3756 = vunpack.c.h.b16 %v3052
          %v3757 = vunpack.c.l.b16 %v3053
          %v3758 = vunpack.c.h.b16 %v3053
          %v3759 = vunpack.c.l.b16 %v3054
          %v3760 = vunpack.c.h.b16 %v3054
          %v3761 = vunpack.c.l.b16 %v3055
          %v3762 = vunpack.c.h.b16 %v3055
          %v3763 = vunpack.c.l.b16 %v3056
          %v3764 = vunpack.c.h.b16 %v3056
          %v3765 = vunpack.c.l.b16 %v3057
          %v3766 = vunpack.c.h.b16 %v3057
          %v3767 = vunpack.c.l.b16 %v3058
          %v3768 = vunpack.c.h.b16 %v3058
          %v3769 = vunpack.c.l.b16 %v3059
          %v3770 = vunpack.c.h.b16 %v3059
          %v3771 = vunpack.c.l.b16 %v3060
          %v3772 = vunpack.c.h.b16 %v3060
          %v3773 = vunpack.c.l.b16 %v3061
          %v3774 = vunpack.c.h.b16 %v3061
          %v3775 = vunpack.c.l.b16 %v3062
          %v3776 = vunpack.c.h.b16 %v3062
          %v3777 = vunpack.c.l.b16 %v3063
          %v3778 = vunpack.c.h.b16 %v3063
          %v3779 = vunpack.c.l.b16 %v3064
          %v3780 = vunpack.c.h.b16 %v3064
          %v3781 = vunpack.c.l.b16 %v3065
          %v3782 = vunpack.c.h.b16 %v3065
          %v3783 = vunpack.c.l.b16 %v3066
          %v3784 = vunpack.c.h.b16 %v3066
          %v3785 = vunpack.c.l.b16 %v3067
          %v3786 = vunpack.c.h.b16 %v3067
          %v3787 = vunpack.c.l.b16 %v3068
          %v3788 = vunpack.c.h.b16 %v3068
          %v3789 = vunpack.c.l.b16 %v3069
          %v3790 = vunpack.c.h.b16 %v3069
          %v3791 = vunpack.c.l.b16 %v3070
          %v3792 = vunpack.c.h.b16 %v3070
          %v3793 = vunpack.c.l.b16 %v3071
          %v3794 = vunpack.c.h.b16 %v3071
          %v3795 = vunpack.c.l.b16 %v3072
          %v3796 = vunpack.c.h.b16 %v3072
          %v3797 = vunpack.c.l.b16 %v3073
          %v3798 = vunpack.c.h.b16 %v3073
          %v3799 = vunpack.c.l.b16 %v3074
          %v3800 = vunpack.c.h.b16 %v3074
          %v3801 = vunpack.c.l.b16 %v3075
          %v3802 = vunpack.c.h.b16 %v3075
          %v3803 = vunpack.c.l.b16 %v3076
          %v3804 = vunpack.c.h.b16 %v3076
          %v3805 = vunpack.c.l.b16 %v3077
          %v3806 = vunpack.c.h.b16 %v3077
          %v3807 = vunpack.c.l.b16 %v3078
          %v3808 = vunpack.c.h.b16 %v3078
          %v3809 = vunpack.c.l.b16 %v3079
          %v3810 = vunpack.c.h.b16 %v3079
          %v3811 = vunpack.c.l.b16 %v3080
          %v3812 = vunpack.c.h.b16 %v3080
          %v3813 = vunpack.c.l.b16 %v3081
          %v3814 = vunpack.c.h.b16 %v3081
          %v3815 = vunpack.c.l.b16 %v3082
          %v3816 = vunpack.c.h.b16 %v3082
          %v3817 = vunpack.c.l.b16 %v3083
          %v3818 = vunpack.c.h.b16 %v3083
          %v3819 = vunpack.c.l.b16 %v3084
          %v3820 = vunpack.c.h.b16 %v3084
          %v3821 = vunpack.c.l.b16 %v3085
          %v3822 = vunpack.c.h.b16 %v3085
          %v3823 = vunpack.c.l.b16 %v3086
          %v3824 = vunpack.c.h.b16 %v3086
          %v3825 = vunpack.c.l.b16 %v3087
          %v3826 = vunpack.c.h.b16 %v3087
          %v3827 = vunpack.c.l.b16 %v3088
          %v3828 = vunpack.c.h.b16 %v3088
          %v3829 = vunpack.c.l.b16 %v3089
          %v3830 = vunpack.c.h.b16 %v3089
          %v3831 = vunpack.c.l.b16 %v3090
          %v3832 = vunpack.c.h.b16 %v3090
          %v3833 = vunpack.c.l.b16 %v3091
          %v3834 = vunpack.c.h.b16 %v3091
          %v3835 = vunpack.c.l.b16 %v3092
          %v3836 = vunpack.c.h.b16 %v3092
          %v3837 = vunpack.c.l.b16 %v3093
          %v3838 = vunpack.c.h.b16 %v3093
          %v3839 = vunpack.c.l.b16 %v3094
          %v3840 = vunpack.c.h.b16 %v3094
          %v3841 = vunpack.c.l.b16 %v3095
          %v3842 = vunpack.c.h.b16 %v3095
          %v3843 = vunpack.c.l.b16 %v3096
          %v3844 = vunpack.c.h.b16 %v3096
          %v3845 = vunpack.c.l.b16 %v3097
          %v3846 = vunpack.c.h.b16 %v3097
          %v3847 = vunpack.c.l.b16 %v3098
          %v3848 = vunpack.c.h.b16 %v3098
          %v3849 = vunpack.c.l.b16 %v3099
          %v3850 = vunpack.c.h.b16 %v3099
          %v3851 = vunpack.c.l.b16 %v3100
          %v3852 = vunpack.c.h.b16 %v3100
          %v3853 = vunpack.c.l.b16 %v3101
          %v3854 = vunpack.c.h.b16 %v3101
          %v3855 = vunpack.c.l.b16 %v3102
          %v3856 = vunpack.c.h.b16 %v3102
          %v3857 = vunpack.c.l.b16 %v3103
          %v3858 = vunpack.c.h.b16 %v3103
          %v3859 = vunpack.c.l.b16 %v3104
          %v3860 = vunpack.c.h.b16 %v3104
          %v3861 = vunpack.c.l.b16 %v3105
          %v3862 = vunpack.c.h.b16 %v3105
          %v3863 = vunpack.c.l.b16 %v3106
          %v3864 = vunpack.c.h.b16 %v3106
          %v3865 = vunpack.c.l.b16 %v3107
          %v3866 = vunpack.c.h.b16 %v3107
          %v3867 = vunpack.c.l.b16 %v3108
          %v3868 = vunpack.c.h.b16 %v3108
          %v3869 = vunpack.c.l.b16 %v3109
          %v3870 = vunpack.c.h.b16 %v3109
          %v3871 = vunpack.c.l.b16 %v3110
          %v3872 = vunpack.c.h.b16 %v3110
          %v3873 = vunpack.c.l.b16 %v3111
          %v3874 = vunpack.c.h.b16 %v3111
          %v3875 = vunpack.c.l.b16 %v3112
          %v3876 = vunpack.c.h.b16 %v3112
          %v3877 = vunpack.c.l.b16 %v3113
          %v3878 = vunpack.c.h.b16 %v3113
          %v3879 = vunpack.c.l.b16 %v3114
          %v3880 = vunpack.c.h.b16 %v3114
          %v3881 = vunpack.c.l.b16 %v3115
          %v3882 = vunpack.c.h.b16 %v3115
          %v3883 = vunpack.c.l.b16 %v3116
          %v3884 = vunpack.c.h.b16 %v3116
          %v3885 = vunpack.c.l.b16 %v3117
          %v3886 = vunpack.c.h.b16 %v3117
          %v3887 = vunpack.c.l.b16 %v3118
          %v3888 = vunpack.c.h.b16 %v3118
          %v3889 = vunpack.c.l.b16 %v3119
          %v3890 = vunpack.c.h.b16 %v3119
          %v3891 = vunpack.c.l.b16 %v3120
          %v3892 = vunpack.c.h.b16 %v3120
          %v3893 = vunpack.c.l.b16 %v3121
          %v3894 = vunpack.c.h.b16 %v3121
          %v3895 = vunpack.c.l.b16 %v3122
          %v3896 = vunpack.c.h.b16 %v3122
          %v3897 = vunpack.c.l.b16 %v3123
          %v3898 = vunpack.c.h.b16 %v3123
          %v3899 = vunpack.c.l.b16 %v3124
          %v3900 = vunpack.c.h.b16 %v3124
          %v3901 = vunpack.c.l.b16 %v3125
          %v3902 = vunpack.c.h.b16 %v3125
          %v3903 = vunpack.c.l.b16 %v3126
          %v3904 = vunpack.c.h.b16 %v3126
          %v3905 = vunpack.c.l.b16 %v3127
          %v3906 = vunpack.c.h.b16 %v3127
          %v3907 = vunpack.c.l.b16 %v3128
          %v3908 = vunpack.c.h.b16 %v3128
          %v3909 = vunpack.c.l.b16 %v3129
          %v3910 = vunpack.c.h.b16 %v3129
          %v3911 = vunpack.c.l.b16 %v3130
          %v3912 = vunpack.c.h.b16 %v3130
          %v3913 = vunpack.c.l.b16 %v3131
          %v3914 = vunpack.c.h.b16 %v3131
          %v3915 = vunpack.c.l.b16 %v3132
          %v3916 = vunpack.c.h.b16 %v3132
          %v3917 = vunpack.c.l.b16 %v3133
          %v3918 = vunpack.c.h.b16 %v3133
          %v3919 = vunpack.c.l.b16 %v3134
          %v3920 = vunpack.c.h.b16 %v3134
          %v3921 = vunpack.c.l.b16 %v3135
          %v3922 = vunpack.c.h.b16 %v3135
          %v3923 = vunpack.c.l.b16 %v3136
          %v3924 = vunpack.c.h.b16 %v3136
          %v3925 = vunpack.c.l.b16 %v3137
          %v3926 = vunpack.c.h.b16 %v3137
          %v3927 = vunpack.c.l.b16 %v3138
          %v3928 = vunpack.c.h.b16 %v3138
          %v3929 = vpack.c.b16 %v3421, %v3417
          %v3930 = vpack.c.b16 %v3422, %v3418
          %v3931 = vpack.c.b16 %v3423, %v3419
          %v3932 = vpack.c.b16 %v3424, %v3420
          %v3933 = vpack.c.b16 %v3429, %v3425
          %v3934 = vpack.c.b16 %v3430, %v3426
          %v3935 = vpack.c.b16 %v3431, %v3427
          %v3936 = vpack.c.b16 %v3432, %v3428
          %v3937 = vpack.c.b16 %v3437, %v3433
          %v3938 = vpack.c.b16 %v3438, %v3434
          %v3939 = vpack.c.b16 %v3439, %v3435
          %v3940 = vpack.c.b16 %v3440, %v3436
          %v3941 = vpack.c.b16 %v3445, %v3441
          %v3942 = vpack.c.b16 %v3446, %v3442
          %v3943 = vpack.c.b16 %v3447, %v3443
          %v3944 = vpack.c.b16 %v3448, %v3444
          %v3945 = vpack.c.b16 %v3453, %v3449
          %v3946 = vpack.c.b16 %v3454, %v3450
          %v3947 = vpack.c.b16 %v3455, %v3451
          %v3948 = vpack.c.b16 %v3456, %v3452
          %v3949 = vpack.c.b16 %v3461, %v3457
          %v3950 = vpack.c.b16 %v3462, %v3458
          %v3951 = vpack.c.b16 %v3463, %v3459
          %v3952 = vpack.c.b16 %v3464, %v3460
          %v3953 = vpack.c.b16 %v3469, %v3465
          %v3954 = vpack.c.b16 %v3470, %v3466
          %v3955 = vpack.c.b16 %v3471, %v3467
          %v3956 = vpack.c.b16 %v3472, %v3468
          %v3957 = vpack.c.b16 %v3477, %v3473
          %v3958 = vpack.c.b16 %v3478, %v3474
          %v3959 = vpack.c.b16 %v3479, %v3475
          %v3960 = vpack.c.b16 %v3480, %v3476
          %v3961 = vpack.c.b16 %v3485, %v3481
          %v3962 = vpack.c.b16 %v3486, %v3482
          %v3963 = vpack.c.b16 %v3487, %v3483
          %v3964 = vpack.c.b16 %v3488, %v3484
          %v3965 = vpack.c.b16 %v3493, %v3489
          %v3966 = vpack.c.b16 %v3494, %v3490
          %v3967 = vpack.c.b16 %v3495, %v3491
          %v3968 = vpack.c.b16 %v3496, %v3492
          %v3969 = vpack.c.b16 %v3501, %v3497
          %v3970 = vpack.c.b16 %v3502, %v3498
          %v3971 = vpack.c.b16 %v3503, %v3499
          %v3972 = vpack.c.b16 %v3504, %v3500
          %v3973 = vpack.c.b16 %v3509, %v3505
          %v3974 = vpack.c.b16 %v3510, %v3506
          %v3975 = vpack.c.b16 %v3511, %v3507
          %v3976 = vpack.c.b16 %v3512, %v3508
          %v3977 = vpack.c.b16 %v3517, %v3513
          %v3978 = vpack.c.b16 %v3518, %v3514
          %v3979 = vpack.c.b16 %v3519, %v3515
          %v3980 = vpack.c.b16 %v3520, %v3516
          %v3981 = vpack.c.b16 %v3525, %v3521
          %v3982 = vpack.c.b16 %v3526, %v3522
          %v3983 = vpack.c.b16 %v3527, %v3523
          %v3984 = vpack.c.b16 %v3528, %v3524
          %v3985 = vpack.c.b16 %v3533, %v3529
          %v3986 = vpack.c.b16 %v3534, %v3530
          %v3987 = vpack.c.b16 %v3535, %v3531
          %v3988 = vpack.c.b16 %v3536, %v3532
          %v3989 = vpack.c.b16 %v3541, %v3537
          %v3990 = vpack.c.b16 %v3542, %v3538
          %v3991 = vpack.c.b16 %v3543, %v3539
          %v3992 = vpack.c.b16 %v3544, %v3540
          %v3993 = vpack.c.b16 %v3549, %v3545
          %v3994 = vpack.c.b16 %v3550, %v3546
          %v3995 = vpack.c.b16 %v3551, %v3547
          %v3996 = vpack.c.b16 %v3552, %v3548
          %v3997 = vpack.c.b16 %v3557, %v3553
          %v3998 = vpack.c.b16 %v3558, %v3554
          %v3999 = vpack.c.b16 %v3559, %v3555
          %v4000 = vpack.c.b16 %v3560, %v3556
          %v4001 = vpack.c.b16 %v3565, %v3561
          %v4002 = vpack.c.b16 %v3566, %v3562
          %v4003 = vpack.c.b16 %v3567, %v3563
          %v4004 = vpack.c.b16 %v3568, %v3564
          %v4005 = vpack.c.b16 %v3573, %v3569
          %v4006 = vpack.c.b16 %v3574, %v3570
          %v4007 = vpack.c.b16 %v3575, %v3571
          %v4008 = vpack.c.b16 %v3576, %v3572
          %v4009 = vpack.c.b16 %v3581, %v3577
          %v4010 = vpack.c.b16 %v3582, %v3578
          %v4011 = vpack.c.b16 %v3583, %v3579
          %v4012 = vpack.c.b16 %v3584, %v3580
          %v4013 = vpack.c.b16 %v3589, %v3585
          %v4014 = vpack.c.b16 %v3590, %v3586
          %v4015 = vpack.c.b16 %v3591, %v3587
          %v4016 = vpack.c.b16 %v3592, %v3588
          %v4017 = vpack.c.b16 %v3597, %v3593
          %v4018 = vpack.c.b16 %v3598, %v3594
          %v4019 = vpack.c.b16 %v3599, %v3595
          %v4020 = vpack.c.b16 %v3600, %v3596
          %v4021 = vpack.c.b16 %v3605, %v3601
          %v4022 = vpack.c.b16 %v3606, %v3602
          %v4023 = vpack.c.b16 %v3607, %v3603
          %v4024 = vpack.c.b16 %v3608, %v3604
          %v4025 = vpack.c.b16 %v3613, %v3609
          %v4026 = vpack.c.b16 %v3614, %v3610
          %v4027 = vpack.c.b16 %v3615, %v3611
          %v4028 = vpack.c.b16 %v3616, %v3612
          %v4029 = vpack.c.b16 %v3621, %v3617
          %v4030 = vpack.c.b16 %v3622, %v3618
          %v4031 = vpack.c.b16 %v3623, %v3619
          %v4032 = vpack.c.b16 %v3624, %v3620
          %v4033 = vpack.c.b16 %v3629, %v3625
          %v4034 = vpack.c.b16 %v3630, %v3626
          %v4035 = vpack.c.b16 %v3631, %v3627
          %v4036 = vpack.c.b16 %v3632, %v3628
          %v4037 = vpack.c.b16 %v3637, %v3633
          %v4038 = vpack.c.b16 %v3638, %v3634
          %v4039 = vpack.c.b16 %v3639, %v3635
          %v4040 = vpack.c.b16 %v3640, %v3636
          %v4041 = vpack.c.b16 %v3645, %v3641
          %v4042 = vpack.c.b16 %v3646, %v3642
          %v4043 = vpack.c.b16 %v3647, %v3643
          %v4044 = vpack.c.b16 %v3648, %v3644
          %v4045 = vpack.c.b16 %v3653, %v3649
          %v4046 = vpack.c.b16 %v3654, %v3650
          %v4047 = vpack.c.b16 %v3655, %v3651
          %v4048 = vpack.c.b16 %v3656, %v3652
          %v4049 = vpack.c.b16 %v3661, %v3657
          %v4050 = vpack.c.b16 %v3662, %v3658
          %v4051 = vpack.c.b16 %v3663, %v3659
          %v4052 = vpack.c.b16 %v3664, %v3660
          %v4053 = vpack.c.b16 %v3669, %v3665
          %v4054 = vpack.c.b16 %v3670, %v3666
          %v4055 = vpack.c.b16 %v3671, %v3667
          %v4056 = vpack.c.b16 %v3672, %v3668
          %v4057 = vpack.c.b16 %v3677, %v3673
          %v4058 = vpack.c.b16 %v3678, %v3674
          %v4059 = vpack.c.b16 %v3679, %v3675
          %v4060 = vpack.c.b16 %v3680, %v3676
          %v4061 = vpack.c.b16 %v3685, %v3681
          %v4062 = vpack.c.b16 %v3686, %v3682
          %v4063 = vpack.c.b16 %v3687, %v3683
          %v4064 = vpack.c.b16 %v3688, %v3684
          %v4065 = vpack.c.b16 %v3693, %v3689
          %v4066 = vpack.c.b16 %v3694, %v3690
          %v4067 = vpack.c.b16 %v3695, %v3691
          %v4068 = vpack.c.b16 %v3696, %v3692
          %v4069 = vpack.c.b16 %v3701, %v3697
          %v4070 = vpack.c.b16 %v3702, %v3698
          %v4071 = vpack.c.b16 %v3703, %v3699
          %v4072 = vpack.c.b16 %v3704, %v3700
          %v4073 = vpack.c.b16 %v3709, %v3705
          %v4074 = vpack.c.b16 %v3710, %v3706
          %v4075 = vpack.c.b16 %v3711, %v3707
          %v4076 = vpack.c.b16 %v3712, %v3708
          %v4077 = vpack.c.b16 %v3717, %v3713
          %v4078 = vpack.c.b16 %v3718, %v3714
          %v4079 = vpack.c.b16 %v3719, %v3715
          %v4080 = vpack.c.b16 %v3720, %v3716
          %v4081 = vpack.c.b16 %v3725, %v3721
          %v4082 = vpack.c.b16 %v3726, %v3722
          %v4083 = vpack.c.b16 %v3727, %v3723
          %v4084 = vpack.c.b16 %v3728, %v3724
          %v4085 = vpack.c.b16 %v3733, %v3729
          %v4086 = vpack.c.b16 %v3734, %v3730
          %v4087 = vpack.c.b16 %v3735, %v3731
          %v4088 = vpack.c.b16 %v3736, %v3732
          %v4089 = vpack.c.b16 %v3741, %v3737
          %v4090 = vpack.c.b16 %v3742, %v3738
          %v4091 = vpack.c.b16 %v3743, %v3739
          %v4092 = vpack.c.b16 %v3744, %v3740
          %v4093 = vpack.c.b16 %v3749, %v3745
          %v4094 = vpack.c.b16 %v3750, %v3746
          %v4095 = vpack.c.b16 %v3751, %v3747
          %v4096 = vpack.c.b16 %v3752, %v3748
          %v4097 = vpack.c.b16 %v3757, %v3753
          %v4098 = vpack.c.b16 %v3758, %v3754
          %v4099 = vpack.c.b16 %v3759, %v3755
          %v4100 = vpack.c.b16 %v3760, %v3756
          %v4101 = vpack.c.b16 %v3765, %v3761
          %v4102 = vpack.c.b16 %v3766, %v3762
          %v4103 = vpack.c.b16 %v3767, %v3763
          %v4104 = vpack.c.b16 %v3768, %v3764
          %v4105 = vpack.c.b16 %v3773, %v3769
          %v4106 = vpack.c.b16 %v3774, %v3770
          %v4107 = vpack.c.b16 %v3775, %v3771
          %v4108 = vpack.c.b16 %v3776, %v3772
          %v4109 = vpack.c.b16 %v3781, %v3777
          %v4110 = vpack.c.b16 %v3782, %v3778
          %v4111 = vpack.c.b16 %v3783, %v3779
          %v4112 = vpack.c.b16 %v3784, %v3780
          %v4113 = vpack.c.b16 %v3789, %v3785
          %v4114 = vpack.c.b16 %v3790, %v3786
          %v4115 = vpack.c.b16 %v3791, %v3787
          %v4116 = vpack.c.b16 %v3792, %v3788
          %v4117 = vpack.c.b16 %v3797, %v3793
          %v4118 = vpack.c.b16 %v3798, %v3794
          %v4119 = vpack.c.b16 %v3799, %v3795
          %v4120 = vpack.c.b16 %v3800, %v3796
          %v4121 = vpack.c.b16 %v3805, %v3801
          %v4122 = vpack.c.b16 %v3806, %v3802
          %v4123 = vpack.c.b16 %v3807, %v3803
          %v4124 = vpack.c.b16 %v3808, %v3804
          %v4125 = vpack.c.b16 %v3813, %v3809
          %v4126 = vpack.c.b16 %v3814, %v3810
          %v4127 = vpack.c.b16 %v3815, %v3811
          %v4128 = vpack.c.b16 %v3816, %v3812
          %v4129 = vpack.c.b16 %v3821, %v3817
          %v4130 = vpack.c.b16 %v3822, %v3818
          %v4131 = vpack.c.b16 %v3823, %v3819
          %v4132 = vpack.c.b16 %v3824, %v3820
          %v4133 = vpack.c.b16 %v3829, %v3825
          %v4134 = vpack.c.b16 %v3830, %v3826
          %v4135 = vpack.c.b16 %v3831, %v3827
          %v4136 = vpack.c.b16 %v3832, %v3828
          %v4137 = vpack.c.b16 %v3837, %v3833
          %v4138 = vpack.c.b16 %v3838, %v3834
          %v4139 = vpack.c.b16 %v3839, %v3835
          %v4140 = vpack.c.b16 %v3840, %v3836
          %v4141 = vpack.c.b16 %v3845, %v3841
          %v4142 = vpack.c.b16 %v3846, %v3842
          %v4143 = vpack.c.b16 %v3847, %v3843
          %v4144 = vpack.c.b16 %v3848, %v3844
          %v4145 = vpack.c.b16 %v3853, %v3849
          %v4146 = vpack.c.b16 %v3854, %v3850
          %v4147 = vpack.c.b16 %v3855, %v3851
          %v4148 = vpack.c.b16 %v3856, %v3852
          %v4149 = vpack.c.b16 %v3861, %v3857
          %v4150 = vpack.c.b16 %v3862, %v3858
          %v4151 = vpack.c.b16 %v3863, %v3859
          %v4152 = vpack.c.b16 %v3864, %v3860
          %v4153 = vpack.c.b16 %v3869, %v3865
          %v4154 = vpack.c.b16 %v3870, %v3866
          %v4155 = vpack.c.b16 %v3871, %v3867
          %v4156 = vpack.c.b16 %v3872, %v3868
          %v4157 = vpack.c.b16 %v3877, %v3873
          %v4158 = vpack.c.b16 %v3878, %v3874
          %v4159 = vpack.c.b16 %v3879, %v3875
          %v4160 = vpack.c.b16 %v3880, %v3876
          %v4161 = vpack.c.b16 %v3885, %v3881
          %v4162 = vpack.c.b16 %v3886, %v3882
          %v4163 = vpack.c.b16 %v3887, %v3883
          %v4164 = vpack.c.b16 %v3888, %v3884
          %v4165 = vpack.c.b16 %v3893, %v3889
          %v4166 = vpack.c.b16 %v3894, %v3890
          %v4167 = vpack.c.b16 %v3895, %v3891
          %v4168 = vpack.c.b16 %v3896, %v3892
          %v4169 = vpack.c.b16 %v3901, %v3897
          %v4170 = vpack.c.b16 %v3902, %v3898
          %v4171 = vpack.c.b16 %v3903, %v3899
          %v4172 = vpack.c.b16 %v3904, %v3900
          %v4173 = vpack.c.b16 %v3909, %v3905
          %v4174 = vpack.c.b16 %v3910, %v3906
          %v4175 = vpack.c.b16 %v3911, %v3907
          %v4176 = vpack.c.b16 %v3912, %v3908
          %v4177 = vpack.c.b16 %v3917, %v3913
          %v4178 = vpack.c.b16 %v3918, %v3914
          %v4179 = vpack.c.b16 %v3919, %v3915
          %v4180 = vpack.c.b16 %v3920, %v3916
          %v4181 = vpack.c.b16 %v3925, %v3921
          %v4182 = vpack.c.b16 %v3926, %v3922
          %v4183 = vpack.c.b16 %v3927, %v3923
          %v4184 = vpack.c.b16 %v3928, %v3924
          %4441 = vmatprep.subr.bf16.mxu0 %v3958
          %4442 = vmatpush1.bf16.msra.mxu0 %v3957
          %4443 = vmatprep.subr.bf16.mxu0 %v3954
          %4444 = vmatpush1.bf16.msra.mxu0 %v3953
          %4445 = vmatprep.subr.bf16.mxu0 %v3950
          %4446 = vmatpush1.bf16.msra.mxu0 %v3949
          %4447 = vmatprep.subr.bf16.mxu0 %v3946
          %4448 = vmatpush1.bf16.msra.mxu0 %v3945
          %4449 = vmatprep.subr.bf16.mxu0 %v3942
          %4450 = vmatpush1.bf16.msra.mxu0 %v3941
          %4451 = vmatprep.subr.bf16.mxu0 %v3938
          %4452 = vmatpush1.bf16.msra.mxu0 %v3937
          %4453 = vmatprep.subr.bf16.mxu0 %v3934
          %4454 = vmatpush1.bf16.msra.mxu0 %v3933
          %4455 = vmatprep.subr.bf16.mxu0 %v3930
          %4456 = vmatpush1.bf16.msra.mxu0 %v3929
          %4457 = vmatprep.subr.bf16.mxu0 %v3990
          %4458 = vmatpush2.bf16.msra.mxu0 %v3989
          %4459 = vmatprep.subr.bf16.mxu0 %v3986
          %4460 = vmatpush2.bf16.msra.mxu0 %v3985
          %4461 = vmatprep.subr.bf16.mxu0 %v3982
          %4462 = vmatpush2.bf16.msra.mxu0 %v3981
          %4463 = vmatprep.subr.bf16.mxu0 %v3978
          %4464 = vmatpush2.bf16.msra.mxu0 %v3977
          %4465 = vmatprep.subr.bf16.mxu0 %v3974
          %4466 = vmatpush2.bf16.msra.mxu0 %v3973
          %4467 = vmatprep.subr.bf16.mxu0 %v3970
          %4468 = vmatpush2.bf16.msra.mxu0 %v3969
          %4469 = vmatprep.subr.bf16.mxu0 %v3966
          %4470 = vmatpush2.bf16.msra.mxu0 %v3965
          %4471 = vmatprep.subr.bf16.mxu0 %v3962
          %4472 = vmatpush2.bf16.msra.mxu0 %v3961
          %4473 = vmatprep.mubr.bf16.mxu0 %v2876
          %4474 = vmatmul.mubr.bf16.gmra.mxu0 %v2875
          %v4475 = vpop.f32.mrf.mxu0
          %v4476 = vadd.f32 %v3144, %v4475
          %v4477 = vpop.f32.mrf.mxu0
          %v4478 = vadd.f32 %v3148, %v4477
          %v4479 = vpop.f32.mrf.mxu0
          %v4480 = vpop.f32.mrf.mxu0
          %4481 = vdwg.mxu0
          %4482 = vmatprep.subr.bf16.mxu0 %v4022
          %4483 = vmatpush1.bf16.msra.mxu0 %v4021
          %4484 = vmatprep.subr.bf16.mxu0 %v4018
          %4485 = vmatpush1.bf16.msra.mxu0 %v4017
          %4486 = vmatprep.subr.bf16.mxu0 %v4014
          %4487 = vmatpush1.bf16.msra.mxu0 %v4013
          %4488 = vmatprep.subr.bf16.mxu0 %v4010
          %4489 = vmatpush1.bf16.msra.mxu0 %v4009
          %4490 = vmatprep.subr.bf16.mxu0 %v4006
          %4491 = vmatpush1.bf16.msra.mxu0 %v4005
          %4492 = vmatprep.subr.bf16.mxu0 %v4002
          %4493 = vmatpush1.bf16.msra.mxu0 %v4001
          %4494 = vmatprep.subr.bf16.mxu0 %v3998
          %4495 = vmatpush1.bf16.msra.mxu0 %v3997
          %4496 = vmatprep.subr.bf16.mxu0 %v3994
          %4497 = vmatpush1.bf16.msra.mxu0 %v3993
          %4498 = vmatprep.subr.bf16.mxu0 %v4054
          %4499 = vmatpush2.bf16.msra.mxu0 %v4053
          %4500 = vmatprep.subr.bf16.mxu0 %v4050
          %4501 = vmatpush2.bf16.msra.mxu0 %v4049
          %4502 = vmatprep.subr.bf16.mxu0 %v4046
          %4503 = vmatpush2.bf16.msra.mxu0 %v4045
          %4504 = vmatprep.subr.bf16.mxu0 %v4042
          %4505 = vmatpush2.bf16.msra.mxu0 %v4041
          %4506 = vmatprep.subr.bf16.mxu0 %v4038
          %4507 = vmatpush2.bf16.msra.mxu0 %v4037
          %4508 = vmatprep.subr.bf16.mxu0 %v4034
          %4509 = vmatpush2.bf16.msra.mxu0 %v4033
          %4510 = vmatprep.subr.bf16.mxu0 %v4030
          %4511 = vmatpush2.bf16.msra.mxu0 %v4029
          %4512 = vmatprep.subr.bf16.mxu0 %v4026
          %4513 = vmatpush2.bf16.msra.mxu0 %v4025
          %4514 = vmatprep.mubr.bf16.mxu0 %v2878
          %4515 = vmatmul.mubr.bf16.gmra.mxu0 %v2877
          %v4516 = vpop.f32.mrf.mxu0
          %v4517 = vadd.f32 %v4476, %v4516
          %v4518 = vpop.f32.mrf.mxu0
          %v4519 = vadd.f32 %v4478, %v4518
          %v4520 = vpop.f32.mrf.mxu0
          %v4521 = vpop.f32.mrf.mxu0
          %4522 = vdwg.mxu0
          %4523 = vmatprep.subr.bf16.mxu0 %v4086
          %4524 = vmatpush1.bf16.msra.mxu0 %v4085
          %4525 = vmatprep.subr.bf16.mxu0 %v4082
          %4526 = vmatpush1.bf16.msra.mxu0 %v4081
          %4527 = vmatprep.subr.bf16.mxu0 %v4078
          %4528 = vmatpush1.bf16.msra.mxu0 %v4077
          %4529 = vmatprep.subr.bf16.mxu0 %v4074
          %4530 = vmatpush1.bf16.msra.mxu0 %v4073
          %4531 = vmatprep.subr.bf16.mxu0 %v4070
          %4532 = vmatpush1.bf16.msra.mxu0 %v4069
          %4533 = vmatprep.subr.bf16.mxu0 %v4066
          %4534 = vmatpush1.bf16.msra.mxu0 %v4065
          %4535 = vmatprep.subr.bf16.mxu0 %v4062
          %4536 = vmatpush1.bf16.msra.mxu0 %v4061
          %4537 = vmatprep.subr.bf16.mxu0 %v4058
          %4538 = vmatpush1.bf16.msra.mxu0 %v4057
          %4539 = vmatprep.subr.bf16.mxu0 %v4118
          %4540 = vmatpush2.bf16.msra.mxu0 %v4117
          %4541 = vmatprep.subr.bf16.mxu0 %v4114
          %4542 = vmatpush2.bf16.msra.mxu0 %v4113
          %4543 = vmatprep.subr.bf16.mxu0 %v4110
          %4544 = vmatpush2.bf16.msra.mxu0 %v4109
          %4545 = vmatprep.subr.bf16.mxu0 %v4106
          %4546 = vmatpush2.bf16.msra.mxu0 %v4105
          %4547 = vmatprep.subr.bf16.mxu0 %v4102
          %4548 = vmatpush2.bf16.msra.mxu0 %v4101
          %4549 = vmatprep.subr.bf16.mxu0 %v4098
          %4550 = vmatpush2.bf16.msra.mxu0 %v4097
          %4551 = vmatprep.subr.bf16.mxu0 %v4094
          %4552 = vmatpush2.bf16.msra.mxu0 %v4093
          %4553 = vmatprep.subr.bf16.mxu0 %v4090
          %4554 = vmatpush2.bf16.msra.mxu0 %v4089
          %4555 = vmatprep.mubr.bf16.mxu0 %v2880
          %4556 = vmatmul.mubr.bf16.gmra.mxu0 %v2879
          %v4557 = vpop.f32.mrf.mxu0
          %v4558 = vadd.f32 %v4517, %v4557
          %v4559 = vpop.f32.mrf.mxu0
          %v4560 = vadd.f32 %v4519, %v4559
          %v4561 = vpop.f32.mrf.mxu0
          %v4562 = vpop.f32.mrf.mxu0
          %4563 = vdwg.mxu0
          %4564 = vmatprep.subr.bf16.mxu0 %v4150
          %4565 = vmatpush1.bf16.msra.mxu0 %v4149
          %4566 = vmatprep.subr.bf16.mxu0 %v4146
          %4567 = vmatpush1.bf16.msra.mxu0 %v4145
          %4568 = vmatprep.subr.bf16.mxu0 %v4142
          %4569 = vmatpush1.bf16.msra.mxu0 %v4141
          %4570 = vmatprep.subr.bf16.mxu0 %v4138
          %4571 = vmatpush1.bf16.msra.mxu0 %v4137
          %4572 = vmatprep.subr.bf16.mxu0 %v4134
          %4573 = vmatpush1.bf16.msra.mxu0 %v4133
          %4574 = vmatprep.subr.bf16.mxu0 %v4130
          %4575 = vmatpush1.bf16.msra.mxu0 %v4129
          %4576 = vmatprep.subr.bf16.mxu0 %v4126
          %4577 = vmatpush1.bf16.msra.mxu0 %v4125
          %4578 = vmatprep.subr.bf16.mxu0 %v4122
          %4579 = vmatpush1.bf16.msra.mxu0 %v4121
          %4580 = vmatprep.subr.bf16.mxu0 %v4182
          %4581 = vmatpush2.bf16.msra.mxu0 %v4181
          %4582 = vmatprep.subr.bf16.mxu0 %v4178
          %4583 = vmatpush2.bf16.msra.mxu0 %v4177
          %4584 = vmatprep.subr.bf16.mxu0 %v4174
          %4585 = vmatpush2.bf16.msra.mxu0 %v4173
          %4586 = vmatprep.subr.bf16.mxu0 %v4170
          %4587 = vmatpush2.bf16.msra.mxu0 %v4169
          %4588 = vmatprep.subr.bf16.mxu0 %v4166
          %4589 = vmatpush2.bf16.msra.mxu0 %v4165
          %4590 = vmatprep.subr.bf16.mxu0 %v4162
          %4591 = vmatpush2.bf16.msra.mxu0 %v4161
          %4592 = vmatprep.subr.bf16.mxu0 %v4158
          %4593 = vmatpush2.bf16.msra.mxu0 %v4157
          %4594 = vmatprep.subr.bf16.mxu0 %v4154
          %4595 = vmatpush2.bf16.msra.mxu0 %v4153
          %4596 = vmatprep.mubr.bf16.mxu0 %v2882
          %4597 = vmatmul.mubr.bf16.gmra.mxu0 %v2881
          %v4598 = vpop.f32.mrf.mxu0
          %v4599 = vadd.f32 %v4558, %v4598
          %v4600 = vpop.f32.mrf.mxu0
          %v4601 = vadd.f32 %v4560, %v4600
          %v4602 = vpop.f32.mrf.mxu0
          %v4603 = vpop.f32.mrf.mxu0
          %4604 = vdwg.mxu0
          %4605 = vmatprep.subr.bf16.mxu0 %v3960
          %4606 = vmatpush1.bf16.msra.mxu0 %v3959
          %4607 = vmatprep.subr.bf16.mxu0 %v3956
          %4608 = vmatpush1.bf16.msra.mxu0 %v3955
          %4609 = vmatprep.subr.bf16.mxu0 %v3952
          %4610 = vmatpush1.bf16.msra.mxu0 %v3951
          %4611 = vmatprep.subr.bf16.mxu0 %v3948
          %4612 = vmatpush1.bf16.msra.mxu0 %v3947
          %4613 = vmatprep.subr.bf16.mxu0 %v3944
          %4614 = vmatpush1.bf16.msra.mxu0 %v3943
          %4615 = vmatprep.subr.bf16.mxu0 %v3940
          %4616 = vmatpush1.bf16.msra.mxu0 %v3939
          %4617 = vmatprep.subr.bf16.mxu0 %v3936
          %4618 = vmatpush1.bf16.msra.mxu0 %v3935
          %4619 = vmatprep.subr.bf16.mxu0 %v3932
          %4620 = vmatpush1.bf16.msra.mxu0 %v3931
          %4621 = vmatprep.subr.bf16.mxu0 %v3992
          %4622 = vmatpush2.bf16.msra.mxu0 %v3991
          %4623 = vmatprep.subr.bf16.mxu0 %v3988
          %4624 = vmatpush2.bf16.msra.mxu0 %v3987
          %4625 = vmatprep.subr.bf16.mxu0 %v3984
          %4626 = vmatpush2.bf16.msra.mxu0 %v3983
          %4627 = vmatprep.subr.bf16.mxu0 %v3980
          %4628 = vmatpush2.bf16.msra.mxu0 %v3979
          %4629 = vmatprep.subr.bf16.mxu0 %v3976
          %4630 = vmatpush2.bf16.msra.mxu0 %v3975
          %4631 = vmatprep.subr.bf16.mxu0 %v3972
          %4632 = vmatpush2.bf16.msra.mxu0 %v3971
          %4633 = vmatprep.subr.bf16.mxu0 %v3968
          %4634 = vmatpush2.bf16.msra.mxu0 %v3967
          %4635 = vmatprep.subr.bf16.mxu0 %v3964
          %4636 = vmatpush2.bf16.msra.mxu0 %v3963
          %4637 = vmatprep.mubr.bf16.mxu0 %v2876
          %4638 = vmatmul.mubr.bf16.gmra.mxu0 %v2875
          %v4639 = vpop.f32.mrf.mxu0
          %v4640 = vadd.f32 %v3152, %v4639
          %v4641 = vpop.f32.mrf.mxu0
          %v4642 = vadd.f32 %v3156, %v4641
          %v4643 = vpop.f32.mrf.mxu0
          %v4644 = vpop.f32.mrf.mxu0
          %4645 = vdwg.mxu0
          %4646 = vmatprep.subr.bf16.mxu0 %v4024
          %4647 = vmatpush1.bf16.msra.mxu0 %v4023
          %4648 = vmatprep.subr.bf16.mxu0 %v4020
          %4649 = vmatpush1.bf16.msra.mxu0 %v4019
          %4650 = vmatprep.subr.bf16.mxu0 %v4016
          %4651 = vmatpush1.bf16.msra.mxu0 %v4015
          %4652 = vmatprep.subr.bf16.mxu0 %v4012
          %4653 = vmatpush1.bf16.msra.mxu0 %v4011
          %4654 = vmatprep.subr.bf16.mxu0 %v4008
          %4655 = vmatpush1.bf16.msra.mxu0 %v4007
          %4656 = vmatprep.subr.bf16.mxu0 %v4004
          %4657 = vmatpush1.bf16.msra.mxu0 %v4003
          %4658 = vmatprep.subr.bf16.mxu0 %v4000
          %4659 = vmatpush1.bf16.msra.mxu0 %v3999
          %4660 = vmatprep.subr.bf16.mxu0 %v3996
          %4661 = vmatpush1.bf16.msra.mxu0 %v3995
          %4662 = vmatprep.subr.bf16.mxu0 %v4056
          %4663 = vmatpush2.bf16.msra.mxu0 %v4055
          %4664 = vmatprep.subr.bf16.mxu0 %v4052
          %4665 = vmatpush2.bf16.msra.mxu0 %v4051
          %4666 = vmatprep.subr.bf16.mxu0 %v4048
          %4667 = vmatpush2.bf16.msra.mxu0 %v4047
          %4668 = vmatprep.subr.bf16.mxu0 %v4044
          %4669 = vmatpush2.bf16.msra.mxu0 %v4043
          %4670 = vmatprep.subr.bf16.mxu0 %v4040
          %4671 = vmatpush2.bf16.msra.mxu0 %v4039
          %4672 = vmatprep.subr.bf16.mxu0 %v4036
          %4673 = vmatpush2.bf16.msra.mxu0 %v4035
          %4674 = vmatprep.subr.bf16.mxu0 %v4032
          %4675 = vmatpush2.bf16.msra.mxu0 %v4031
          %4676 = vmatprep.subr.bf16.mxu0 %v4028
          %4677 = vmatpush2.bf16.msra.mxu0 %v4027
          %4678 = vmatprep.mubr.bf16.mxu0 %v2878
          %4679 = vmatmul.mubr.bf16.gmra.mxu0 %v2877
          %v4680 = vpop.f32.mrf.mxu0
          %v4681 = vadd.f32 %v4640, %v4680
          %v4682 = vpop.f32.mrf.mxu0
          %v4683 = vadd.f32 %v4642, %v4682
          %v4684 = vpop.f32.mrf.mxu0
          %v4685 = vpop.f32.mrf.mxu0
          %4686 = vdwg.mxu0
          %4687 = vmatprep.subr.bf16.mxu0 %v4088
          %4688 = vmatpush1.bf16.msra.mxu0 %v4087
          %4689 = vmatprep.subr.bf16.mxu0 %v4084
          %4690 = vmatpush1.bf16.msra.mxu0 %v4083
          %4691 = vmatprep.subr.bf16.mxu0 %v4080
          %4692 = vmatpush1.bf16.msra.mxu0 %v4079
          %4693 = vmatprep.subr.bf16.mxu0 %v4076
          %4694 = vmatpush1.bf16.msra.mxu0 %v4075
          %4695 = vmatprep.subr.bf16.mxu0 %v4072
          %4696 = vmatpush1.bf16.msra.mxu0 %v4071
          %4697 = vmatprep.subr.bf16.mxu0 %v4068
          %4698 = vmatpush1.bf16.msra.mxu0 %v4067
          %4699 = vmatprep.subr.bf16.mxu0 %v4064
          %4700 = vmatpush1.bf16.msra.mxu0 %v4063
          %4701 = vmatprep.subr.bf16.mxu0 %v4060
          %4702 = vmatpush1.bf16.msra.mxu0 %v4059
          %4703 = vmatprep.subr.bf16.mxu0 %v4120
          %4704 = vmatpush2.bf16.msra.mxu0 %v4119
          %4705 = vmatprep.subr.bf16.mxu0 %v4116
          %4706 = vmatpush2.bf16.msra.mxu0 %v4115
          %4707 = vmatprep.subr.bf16.mxu0 %v4112
          %4708 = vmatpush2.bf16.msra.mxu0 %v4111
          %4709 = vmatprep.subr.bf16.mxu0 %v4108
          %4710 = vmatpush2.bf16.msra.mxu0 %v4107
          %4711 = vmatprep.subr.bf16.mxu0 %v4104
          %4712 = vmatpush2.bf16.msra.mxu0 %v4103
          %4713 = vmatprep.subr.bf16.mxu0 %v4100
          %4714 = vmatpush2.bf16.msra.mxu0 %v4099
          %4715 = vmatprep.subr.bf16.mxu0 %v4096
          %4716 = vmatpush2.bf16.msra.mxu0 %v4095
          %4717 = vmatprep.subr.bf16.mxu0 %v4092
          %4718 = vmatpush2.bf16.msra.mxu0 %v4091
          %4719 = vmatprep.mubr.bf16.mxu0 %v2880
          %4720 = vmatmul.mubr.bf16.gmra.mxu0 %v2879
          %v4721 = vpop.f32.mrf.mxu0
          %v4722 = vadd.f32 %v4681, %v4721
          %v4723 = vpop.f32.mrf.mxu0
          %v4724 = vadd.f32 %v4683, %v4723
          %v4725 = vpop.f32.mrf.mxu0
          %v4726 = vpop.f32.mrf.mxu0
          %4727 = vdwg.mxu0
          %4728 = vmatprep.subr.bf16.mxu0 %v4152
          %4729 = vmatpush1.bf16.msra.mxu0 %v4151
          %4730 = vmatprep.subr.bf16.mxu0 %v4148
          %4731 = vmatpush1.bf16.msra.mxu0 %v4147
          %4732 = vmatprep.subr.bf16.mxu0 %v4144
          %4733 = vmatpush1.bf16.msra.mxu0 %v4143
          %4734 = vmatprep.subr.bf16.mxu0 %v4140
          %4735 = vmatpush1.bf16.msra.mxu0 %v4139
          %4736 = vmatprep.subr.bf16.mxu0 %v4136
          %4737 = vmatpush1.bf16.msra.mxu0 %v4135
          %4738 = vmatprep.subr.bf16.mxu0 %v4132
          %4739 = vmatpush1.bf16.msra.mxu0 %v4131
          %4740 = vmatprep.subr.bf16.mxu0 %v4128
          %4741 = vmatpush1.bf16.msra.mxu0 %v4127
          %4742 = vmatprep.subr.bf16.mxu0 %v4124
          %4743 = vmatpush1.bf16.msra.mxu0 %v4123
          %4744 = vmatprep.subr.bf16.mxu0 %v4184
          %4745 = vmatpush2.bf16.msra.mxu0 %v4183
          %4746 = vmatprep.subr.bf16.mxu0 %v4180
          %4747 = vmatpush2.bf16.msra.mxu0 %v4179
          %4748 = vmatprep.subr.bf16.mxu0 %v4176
          %4749 = vmatpush2.bf16.msra.mxu0 %v4175
          %4750 = vmatprep.subr.bf16.mxu0 %v4172
          %4751 = vmatpush2.bf16.msra.mxu0 %v4171
          %4752 = vmatprep.subr.bf16.mxu0 %v4168
          %4753 = vmatpush2.bf16.msra.mxu0 %v4167
          %4754 = vmatprep.subr.bf16.mxu0 %v4164
          %4755 = vmatpush2.bf16.msra.mxu0 %v4163
          %4756 = vmatprep.subr.bf16.mxu0 %v4160
          %4757 = vmatpush2.bf16.msra.mxu0 %v4159
          %4758 = vmatprep.subr.bf16.mxu0 %v4156
          %4759 = vmatpush2.bf16.msra.mxu0 %v4155
          %4760 = vmatprep.mubr.bf16.mxu0 %v2882
          %4761 = vmatmul.mubr.bf16.gmra.mxu0 %v2881
          %v4762 = vpop.f32.mrf.mxu0
          %v4763 = vadd.f32 %v4722, %v4762
          %v4764 = vpop.f32.mrf.mxu0
          %v4765 = vadd.f32 %v4724, %v4764
          %v4766 = vpop.f32.mrf.mxu0
          %v4767 = vpop.f32.mrf.mxu0
          %4768 = vdwg.mxu0
          %v4769 = vmax.f32 %v4599, 0.0
          %v4770 = vmax.f32 %v4601, 0.0
          %v4771 = vmax.f32 %v4763, 0.0
          %v4772 = vmax.f32 %v4765, 0.0
          %v4773 = vpack.c.bf16 %v4769, %v4769
          %v4774 = vpack.c.bf16 %v4770, %v4770
          %v4775 = vpack.c.bf16 %v4771, %v4771
          %v4776 = vpack.c.bf16 %v4772, %v4772
          %v4777 = vld [vmem:[#allocation9] sm:$0xff]
          %v4778 = vld [vmem:[#allocation9 + $0x8] sm:$0xff]
          %v4779 = vld [vmem:[#allocation9 + $0x10] sm:$0xff]
          %v4780 = vld [vmem:[#allocation9 + $0x18] sm:$0xff]
          %v4781 = vld [vmem:[#allocation9 + $0x20] sm:$0xff]
          %v4782 = vld [vmem:[#allocation9 + $0x28] sm:$0xff]
          %v4783 = vld [vmem:[#allocation9 + $0x30] sm:$0xff]
          %v4784 = vld [vmem:[#allocation9 + $0x38] sm:$0xff]
          %v4785 = vld [vmem:[#allocation9 + $0x40] sm:$0xff]
          %v4786 = vld [vmem:[#allocation9 + $0x48] sm:$0xff]
          %v4787 = vld [vmem:[#allocation9 + $0x50] sm:$0xff]
          %v4788 = vld [vmem:[#allocation9 + $0x58] sm:$0xff]
          %v4789 = vld [vmem:[#allocation9 + $0x60] sm:$0xff]
          %v4790 = vld [vmem:[#allocation9 + $0x68] sm:$0xff]
          %v4791 = vld [vmem:[#allocation9 + $0x70] sm:$0xff]
          %v4792 = vld [vmem:[#allocation9 + $0x78] sm:$0xff]
          %v4793 = vld [vmem:[#allocation9 + $0x80] sm:$0xff]
          %v4794 = vld [vmem:[#allocation9 + $0x88] sm:$0xff]
          %v4795 = vld [vmem:[#allocation9 + $0x90] sm:$0xff]
          %v4796 = vld [vmem:[#allocation9 + $0x98] sm:$0xff]
          %v4797 = vld [vmem:[#allocation9 + $0xa0] sm:$0xff]
          %v4798 = vld [vmem:[#allocation9 + $0xa8] sm:$0xff]
          %v4799 = vld [vmem:[#allocation9 + $0xb0] sm:$0xff]
          %v4800 = vld [vmem:[#allocation9 + $0xb8] sm:$0xff]
          %v4801 = vld [vmem:[#allocation9 + $0xc0] sm:$0xff]
          %v4802 = vld [vmem:[#allocation9 + $0xc8] sm:$0xff]
          %v4803 = vld [vmem:[#allocation9 + $0xd0] sm:$0xff]
          %v4804 = vld [vmem:[#allocation9 + $0xd8] sm:$0xff]
          %v4805 = vld [vmem:[#allocation9 + $0xe0] sm:$0xff]
          %v4806 = vld [vmem:[#allocation9 + $0xe8] sm:$0xff]
          %v4807 = vld [vmem:[#allocation9 + $0xf0] sm:$0xff]
          %v4808 = vld [vmem:[#allocation9 + $0xf8] sm:$0xff]
          %v4809 = vld [vmem:[#allocation9 + $0x100] sm:$0xff]
          %v4810 = vld [vmem:[#allocation9 + $0x108] sm:$0xff]
          %v4811 = vld [vmem:[#allocation9 + $0x110] sm:$0xff]
          %v4812 = vld [vmem:[#allocation9 + $0x118] sm:$0xff]
          %v4813 = vld [vmem:[#allocation9 + $0x120] sm:$0xff]
          %v4814 = vld [vmem:[#allocation9 + $0x128] sm:$0xff]
          %v4815 = vld [vmem:[#allocation9 + $0x130] sm:$0xff]
          %v4816 = vld [vmem:[#allocation9 + $0x138] sm:$0xff]
          %v4817 = vld [vmem:[#allocation9 + $0x140] sm:$0xff]
          %v4818 = vld [vmem:[#allocation9 + $0x148] sm:$0xff]
          %v4819 = vld [vmem:[#allocation9 + $0x150] sm:$0xff]
          %v4820 = vld [vmem:[#allocation9 + $0x158] sm:$0xff]
          %v4821 = vld [vmem:[#allocation9 + $0x160] sm:$0xff]
          %v4822 = vld [vmem:[#allocation9 + $0x168] sm:$0xff]
          %v4823 = vld [vmem:[#allocation9 + $0x170] sm:$0xff]
          %v4824 = vld [vmem:[#allocation9 + $0x178] sm:$0xff]
          %v4825 = vld [vmem:[#allocation9 + $0x180] sm:$0xff]
          %v4826 = vld [vmem:[#allocation9 + $0x188] sm:$0xff]
          %v4827 = vld [vmem:[#allocation9 + $0x190] sm:$0xff]
          %v4828 = vld [vmem:[#allocation9 + $0x198] sm:$0xff]
          %v4829 = vld [vmem:[#allocation9 + $0x1a0] sm:$0xff]
          %v4830 = vld [vmem:[#allocation9 + $0x1a8] sm:$0xff]
          %v4831 = vld [vmem:[#allocation9 + $0x1b0] sm:$0xff]
          %v4832 = vld [vmem:[#allocation9 + $0x1b8] sm:$0xff]
          %v4833 = vld [vmem:[#allocation9 + $0x1c0] sm:$0xff]
          %v4834 = vld [vmem:[#allocation9 + $0x1c8] sm:$0xff]
          %v4835 = vld [vmem:[#allocation9 + $0x1d0] sm:$0xff]
          %v4836 = vld [vmem:[#allocation9 + $0x1d8] sm:$0xff]
          %v4837 = vld [vmem:[#allocation9 + $0x1e0] sm:$0xff]
          %v4838 = vld [vmem:[#allocation9 + $0x1e8] sm:$0xff]
          %v4839 = vld [vmem:[#allocation9 + $0x1f0] sm:$0xff]
          %v4840 = vld [vmem:[#allocation9 + $0x1f8] sm:$0xff]
          %v4841 = vld [vmem:[%s10] sm:$0x3]
          %v4843 = vlaneseq
          %v4844 = vshrl.u32 %v4843, 7
          %v4845 = vsub.s32 0, %v4844
          %v4846 = vrot.slane %v4841, %v4845
          %v4847 = vlaneseq
          %v4848 = vshrl.u32 %v4847, 7
          %v4849 = vsub.s32 1, %v4848
          %v4850 = vrot.slane %v4841, %v4849
          %v4917 = vunpack.c.l.b16 %v4777
          %v4918 = vunpack.c.h.b16 %v4777
          %v4919 = vunpack.c.l.b16 %v4778
          %v4920 = vunpack.c.h.b16 %v4778
          %v4921 = vunpack.c.l.b16 %v4779
          %v4922 = vunpack.c.h.b16 %v4779
          %v4923 = vunpack.c.l.b16 %v4780
          %v4924 = vunpack.c.h.b16 %v4780
          %v4925 = vunpack.c.l.b16 %v4781
          %v4926 = vunpack.c.h.b16 %v4781
          %v4927 = vunpack.c.l.b16 %v4782
          %v4928 = vunpack.c.h.b16 %v4782
          %v4929 = vunpack.c.l.b16 %v4783
          %v4930 = vunpack.c.h.b16 %v4783
          %v4931 = vunpack.c.l.b16 %v4784
          %v4932 = vunpack.c.h.b16 %v4784
          %v4933 = vunpack.c.l.b16 %v4785
          %v4934 = vunpack.c.h.b16 %v4785
          %v4935 = vunpack.c.l.b16 %v4786
          %v4936 = vunpack.c.h.b16 %v4786
          %v4937 = vunpack.c.l.b16 %v4787
          %v4938 = vunpack.c.h.b16 %v4787
          %v4939 = vunpack.c.l.b16 %v4788
          %v4940 = vunpack.c.h.b16 %v4788
          %v4941 = vunpack.c.l.b16 %v4789
          %v4942 = vunpack.c.h.b16 %v4789
          %v4943 = vunpack.c.l.b16 %v4790
          %v4944 = vunpack.c.h.b16 %v4790
          %v4945 = vunpack.c.l.b16 %v4791
          %v4946 = vunpack.c.h.b16 %v4791
          %v4947 = vunpack.c.l.b16 %v4792
          %v4948 = vunpack.c.h.b16 %v4792
          %v4949 = vunpack.c.l.b16 %v4793
          %v4950 = vunpack.c.h.b16 %v4793
          %v4951 = vunpack.c.l.b16 %v4794
          %v4952 = vunpack.c.h.b16 %v4794
          %v4953 = vunpack.c.l.b16 %v4795
          %v4954 = vunpack.c.h.b16 %v4795
          %v4955 = vunpack.c.l.b16 %v4796
          %v4956 = vunpack.c.h.b16 %v4796
          %v4957 = vunpack.c.l.b16 %v4797
          %v4958 = vunpack.c.h.b16 %v4797
          %v4959 = vunpack.c.l.b16 %v4798
          %v4960 = vunpack.c.h.b16 %v4798
          %v4961 = vunpack.c.l.b16 %v4799
          %v4962 = vunpack.c.h.b16 %v4799
          %v4963 = vunpack.c.l.b16 %v4800
          %v4964 = vunpack.c.h.b16 %v4800
          %v4965 = vunpack.c.l.b16 %v4801
          %v4966 = vunpack.c.h.b16 %v4801
          %v4967 = vunpack.c.l.b16 %v4802
          %v4968 = vunpack.c.h.b16 %v4802
          %v4969 = vunpack.c.l.b16 %v4803
          %v4970 = vunpack.c.h.b16 %v4803
          %v4971 = vunpack.c.l.b16 %v4804
          %v4972 = vunpack.c.h.b16 %v4804
          %v4973 = vunpack.c.l.b16 %v4805
          %v4974 = vunpack.c.h.b16 %v4805
          %v4975 = vunpack.c.l.b16 %v4806
          %v4976 = vunpack.c.h.b16 %v4806
          %v4977 = vunpack.c.l.b16 %v4807
          %v4978 = vunpack.c.h.b16 %v4807
          %v4979 = vunpack.c.l.b16 %v4808
          %v4980 = vunpack.c.h.b16 %v4808
          %v4981 = vunpack.c.l.b16 %v4809
          %v4982 = vunpack.c.h.b16 %v4809
          %v4983 = vunpack.c.l.b16 %v4810
          %v4984 = vunpack.c.h.b16 %v4810
          %v4985 = vunpack.c.l.b16 %v4811
          %v4986 = vunpack.c.h.b16 %v4811
          %v4987 = vunpack.c.l.b16 %v4812
          %v4988 = vunpack.c.h.b16 %v4812
          %v4989 = vunpack.c.l.b16 %v4813
          %v4990 = vunpack.c.h.b16 %v4813
          %v4991 = vunpack.c.l.b16 %v4814
          %v4992 = vunpack.c.h.b16 %v4814
          %v4993 = vunpack.c.l.b16 %v4815
          %v4994 = vunpack.c.h.b16 %v4815
          %v4995 = vunpack.c.l.b16 %v4816
          %v4996 = vunpack.c.h.b16 %v4816
          %v4997 = vunpack.c.l.b16 %v4817
          %v4998 = vunpack.c.h.b16 %v4817
          %v4999 = vunpack.c.l.b16 %v4818
          %v5000 = vunpack.c.h.b16 %v4818
          %v5001 = vunpack.c.l.b16 %v4819
          %v5002 = vunpack.c.h.b16 %v4819
          %v5003 = vunpack.c.l.b16 %v4820
          %v5004 = vunpack.c.h.b16 %v4820
          %v5005 = vunpack.c.l.b16 %v4821
          %v5006 = vunpack.c.h.b16 %v4821
          %v5007 = vunpack.c.l.b16 %v4822
          %v5008 = vunpack.c.h.b16 %v4822
          %v5009 = vunpack.c.l.b16 %v4823
          %v5010 = vunpack.c.h.b16 %v4823
          %v5011 = vunpack.c.l.b16 %v4824
          %v5012 = vunpack.c.h.b16 %v4824
          %v5013 = vunpack.c.l.b16 %v4825
          %v5014 = vunpack.c.h.b16 %v4825
          %v5015 = vunpack.c.l.b16 %v4826
          %v5016 = vunpack.c.h.b16 %v4826
          %v5017 = vunpack.c.l.b16 %v4827
          %v5018 = vunpack.c.h.b16 %v4827
          %v5019 = vunpack.c.l.b16 %v4828
          %v5020 = vunpack.c.h.b16 %v4828
          %v5021 = vunpack.c.l.b16 %v4829
          %v5022 = vunpack.c.h.b16 %v4829
          %v5023 = vunpack.c.l.b16 %v4830
          %v5024 = vunpack.c.h.b16 %v4830
          %v5025 = vunpack.c.l.b16 %v4831
          %v5026 = vunpack.c.h.b16 %v4831
          %v5027 = vunpack.c.l.b16 %v4832
          %v5028 = vunpack.c.h.b16 %v4832
          %v5029 = vunpack.c.l.b16 %v4833
          %v5030 = vunpack.c.h.b16 %v4833
          %v5031 = vunpack.c.l.b16 %v4834
          %v5032 = vunpack.c.h.b16 %v4834
          %v5033 = vunpack.c.l.b16 %v4835
          %v5034 = vunpack.c.h.b16 %v4835
          %v5035 = vunpack.c.l.b16 %v4836
          %v5036 = vunpack.c.h.b16 %v4836
          %v5037 = vunpack.c.l.b16 %v4837
          %v5038 = vunpack.c.h.b16 %v4837
          %v5039 = vunpack.c.l.b16 %v4838
          %v5040 = vunpack.c.h.b16 %v4838
          %v5041 = vunpack.c.l.b16 %v4839
          %v5042 = vunpack.c.h.b16 %v4839
          %v5043 = vunpack.c.l.b16 %v4840
          %v5044 = vunpack.c.h.b16 %v4840
          %v5045 = vpack.c.b16 %v4919, %v4917
          %v5046 = vpack.c.b16 %v4920, %v4918
          %v5047 = vpack.c.b16 %v4923, %v4921
          %v5048 = vpack.c.b16 %v4924, %v4922
          %v5049 = vpack.c.b16 %v4927, %v4925
          %v5050 = vpack.c.b16 %v4928, %v4926
          %v5051 = vpack.c.b16 %v4931, %v4929
          %v5052 = vpack.c.b16 %v4932, %v4930
          %v5053 = vpack.c.b16 %v4935, %v4933
          %v5054 = vpack.c.b16 %v4936, %v4934
          %v5055 = vpack.c.b16 %v4939, %v4937
          %v5056 = vpack.c.b16 %v4940, %v4938
          %v5057 = vpack.c.b16 %v4943, %v4941
          %v5058 = vpack.c.b16 %v4944, %v4942
          %v5059 = vpack.c.b16 %v4947, %v4945
          %v5060 = vpack.c.b16 %v4948, %v4946
          %v5061 = vpack.c.b16 %v4951, %v4949
          %v5062 = vpack.c.b16 %v4952, %v4950
          %v5063 = vpack.c.b16 %v4955, %v4953
          %v5064 = vpack.c.b16 %v4956, %v4954
          %v5065 = vpack.c.b16 %v4959, %v4957
          %v5066 = vpack.c.b16 %v4960, %v4958
          %v5067 = vpack.c.b16 %v4963, %v4961
          %v5068 = vpack.c.b16 %v4964, %v4962
          %v5069 = vpack.c.b16 %v4967, %v4965
          %v5070 = vpack.c.b16 %v4968, %v4966
          %v5071 = vpack.c.b16 %v4971, %v4969
          %v5072 = vpack.c.b16 %v4972, %v4970
          %v5073 = vpack.c.b16 %v4975, %v4973
          %v5074 = vpack.c.b16 %v4976, %v4974
          %v5075 = vpack.c.b16 %v4979, %v4977
          %v5076 = vpack.c.b16 %v4980, %v4978
          %v5077 = vpack.c.b16 %v4983, %v4981
          %v5078 = vpack.c.b16 %v4984, %v4982
          %v5079 = vpack.c.b16 %v4987, %v4985
          %v5080 = vpack.c.b16 %v4988, %v4986
          %v5081 = vpack.c.b16 %v4991, %v4989
          %v5082 = vpack.c.b16 %v4992, %v4990
          %v5083 = vpack.c.b16 %v4995, %v4993
          %v5084 = vpack.c.b16 %v4996, %v4994
          %v5085 = vpack.c.b16 %v4999, %v4997
          %v5086 = vpack.c.b16 %v5000, %v4998
          %v5087 = vpack.c.b16 %v5003, %v5001
          %v5088 = vpack.c.b16 %v5004, %v5002
          %v5089 = vpack.c.b16 %v5007, %v5005
          %v5090 = vpack.c.b16 %v5008, %v5006
          %v5091 = vpack.c.b16 %v5011, %v5009
          %v5092 = vpack.c.b16 %v5012, %v5010
          %v5093 = vpack.c.b16 %v5015, %v5013
          %v5094 = vpack.c.b16 %v5016, %v5014
          %v5095 = vpack.c.b16 %v5019, %v5017
          %v5096 = vpack.c.b16 %v5020, %v5018
          %v5097 = vpack.c.b16 %v5023, %v5021
          %v5098 = vpack.c.b16 %v5024, %v5022
          %v5099 = vpack.c.b16 %v5027, %v5025
          %v5100 = vpack.c.b16 %v5028, %v5026
          %v5101 = vpack.c.b16 %v5031, %v5029
          %v5102 = vpack.c.b16 %v5032, %v5030
          %v5103 = vpack.c.b16 %v5035, %v5033
          %v5104 = vpack.c.b16 %v5036, %v5034
          %v5105 = vpack.c.b16 %v5039, %v5037
          %v5106 = vpack.c.b16 %v5040, %v5038
          %v5107 = vpack.c.b16 %v5043, %v5041
          %v5108 = vpack.c.b16 %v5044, %v5042
          %5173 = vmatprep.subr.bf16.mxu0 %v5060
          %5174 = vmatpush1.bf16.msra.mxu0 %v5059
          %5175 = vmatprep.subr.bf16.mxu0 %v5058
          %5176 = vmatpush1.bf16.msra.mxu0 %v5057
          %5177 = vmatprep.subr.bf16.mxu0 %v5056
          %5178 = vmatpush1.bf16.msra.mxu0 %v5055
          %5179 = vmatprep.subr.bf16.mxu0 %v5054
          %5180 = vmatpush1.bf16.msra.mxu0 %v5053
          %5181 = vmatprep.subr.bf16.mxu0 %v5052
          %5182 = vmatpush1.bf16.msra.mxu0 %v5051
          %5183 = vmatprep.subr.bf16.mxu0 %v5050
          %5184 = vmatpush1.bf16.msra.mxu0 %v5049
          %5185 = vmatprep.subr.bf16.mxu0 %v5048
          %5186 = vmatpush1.bf16.msra.mxu0 %v5047
          %5187 = vmatprep.subr.bf16.mxu0 %v5046
          %5188 = vmatpush1.bf16.msra.mxu0 %v5045
          %5189 = vmatprep.subr.bf16.mxu0 %v5076
          %5190 = vmatpush2.bf16.msra.mxu0 %v5075
          %5191 = vmatprep.subr.bf16.mxu0 %v5074
          %5192 = vmatpush2.bf16.msra.mxu0 %v5073
          %5193 = vmatprep.subr.bf16.mxu0 %v5072
          %5194 = vmatpush2.bf16.msra.mxu0 %v5071
          %5195 = vmatprep.subr.bf16.mxu0 %v5070
          %5196 = vmatpush2.bf16.msra.mxu0 %v5069
          %5197 = vmatprep.subr.bf16.mxu0 %v5068
          %5198 = vmatpush2.bf16.msra.mxu0 %v5067
          %5199 = vmatprep.subr.bf16.mxu0 %v5066
          %5200 = vmatpush2.bf16.msra.mxu0 %v5065
          %5201 = vmatprep.subr.bf16.mxu0 %v5064
          %5202 = vmatpush2.bf16.msra.mxu0 %v5063
          %5203 = vmatprep.subr.bf16.mxu0 %v5062
          %5204 = vmatpush2.bf16.msra.mxu0 %v5061
          %5205 = vmatprep.mubr.bf16.mxu0 %v4774
          %5206 = vmatmul.mubr.bf16.gmra.mxu0 %v4773
          %v5207 = vpop.f32.mrf.mxu0
          %v5208 = vadd.f32 %v4846, %v5207
          %v5209 = vpop.f32.mrf.mxu0
          %v5210 = vadd.f32 %v4850, %v5209
          %v5211 = vpop.f32.mrf.mxu0
          %v5212 = vpop.f32.mrf.mxu0
          %5213 = vdwg.mxu0
          %5214 = vmatprep.subr.bf16.mxu0 %v5092
          %5215 = vmatpush1.bf16.msra.mxu0 %v5091
          %5216 = vmatprep.subr.bf16.mxu0 %v5090
          %5217 = vmatpush1.bf16.msra.mxu0 %v5089
          %5218 = vmatprep.subr.bf16.mxu0 %v5088
          %5219 = vmatpush1.bf16.msra.mxu0 %v5087
          %5220 = vmatprep.subr.bf16.mxu0 %v5086
          %5221 = vmatpush1.bf16.msra.mxu0 %v5085
          %5222 = vmatprep.subr.bf16.mxu0 %v5084
          %5223 = vmatpush1.bf16.msra.mxu0 %v5083
          %5224 = vmatprep.subr.bf16.mxu0 %v5082
          %5225 = vmatpush1.bf16.msra.mxu0 %v5081
          %5226 = vmatprep.subr.bf16.mxu0 %v5080
          %5227 = vmatpush1.bf16.msra.mxu0 %v5079
          %5228 = vmatprep.subr.bf16.mxu0 %v5078
          %5229 = vmatpush1.bf16.msra.mxu0 %v5077
          %5230 = vmatprep.subr.bf16.mxu0 %v5108
          %5231 = vmatpush2.bf16.msra.mxu0 %v5107
          %5232 = vmatprep.subr.bf16.mxu0 %v5106
          %5233 = vmatpush2.bf16.msra.mxu0 %v5105
          %5234 = vmatprep.subr.bf16.mxu0 %v5104
          %5235 = vmatpush2.bf16.msra.mxu0 %v5103
          %5236 = vmatprep.subr.bf16.mxu0 %v5102
          %5237 = vmatpush2.bf16.msra.mxu0 %v5101
          %5238 = vmatprep.subr.bf16.mxu0 %v5100
          %5239 = vmatpush2.bf16.msra.mxu0 %v5099
          %5240 = vmatprep.subr.bf16.mxu0 %v5098
          %5241 = vmatpush2.bf16.msra.mxu0 %v5097
          %5242 = vmatprep.subr.bf16.mxu0 %v5096
          %5243 = vmatpush2.bf16.msra.mxu0 %v5095
          %5244 = vmatprep.subr.bf16.mxu0 %v5094
          %5245 = vmatpush2.bf16.msra.mxu0 %v5093
          %5246 = vmatprep.mubr.bf16.mxu0 %v4776
          %5247 = vmatmul.mubr.bf16.gmra.mxu0 %v4775
          %v5248 = vpop.f32.mrf.mxu0
          %v5249 = vadd.f32 %v5208, %v5248
          %v5250 = vpop.f32.mrf.mxu0
          %v5251 = vadd.f32 %v5210, %v5250
          %v5252 = vpop.f32.mrf.mxu0
          %v5253 = vpop.f32.mrf.mxu0
          %5254 = vdwg.mxu0
          %v5255 = vmax.f32 %v5249, 0.0
          %v5256 = vmax.f32 %v5251, 0.0
          %v5257 = vpack.c.bf16 %v5255, %v5255
          %v5258 = vpack.c.bf16 %v5256, %v5256
          %v5259 = vld [vmem:[%s11] sm:$0xf]
          %v5260 = vld [vmem:[%s11 + $0x4] sm:$0xf]
          %v5261 = vld [vmem:[%s11 + $0x8] sm:$0xf]
          %v5262 = vld [vmem:[%s11 + $0xc] sm:$0xf]
          %v5263 = vld [vmem:[%s11 + $0x10] sm:$0xf]
          %v5264 = vld [vmem:[%s11 + $0x14] sm:$0xf]
          %v5265 = vld [vmem:[%s11 + $0x18] sm:$0xf]
          %v5266 = vld [vmem:[%s11 + $0x1c] sm:$0xf]
          %v5267 = vld [vmem:[%s11 + $0x20] sm:$0xf]
          %v5268 = vld [vmem:[%s11 + $0x24] sm:$0xf]
          %v5269 = vld [vmem:[%s11 + $0x28] sm:$0xf]
          %v5270 = vld [vmem:[%s11 + $0x2c] sm:$0xf]
          %v5271 = vld [vmem:[%s11 + $0x30] sm:$0xf]
          %v5272 = vld [vmem:[%s11 + $0x34] sm:$0xf]
          %v5273 = vld [vmem:[%s11 + $0x38] sm:$0xf]
          %v5274 = vld [vmem:[%s11 + $0x3c] sm:$0xf]
          %v5275 = vld [vmem:[%s11 + $0x40] sm:$0xf]
          %v5276 = vld [vmem:[%s11 + $0x44] sm:$0xf]
          %v5277 = vld [vmem:[%s11 + $0x48] sm:$0xf]
          %v5278 = vld [vmem:[%s11 + $0x4c] sm:$0xf]
          %v5279 = vld [vmem:[%s11 + $0x50] sm:$0xf]
          %v5280 = vld [vmem:[%s11 + $0x54] sm:$0xf]
          %v5281 = vld [vmem:[%s11 + $0x58] sm:$0xf]
          %v5282 = vld [vmem:[%s11 + $0x5c] sm:$0xf]
          %v5283 = vld [vmem:[%s11 + $0x60] sm:$0xf]
          %v5284 = vld [vmem:[%s11 + $0x64] sm:$0xf]
          %v5285 = vld [vmem:[%s11 + $0x68] sm:$0xf]
          %v5286 = vld [vmem:[%s11 + $0x6c] sm:$0xf]
          %v5287 = vld [vmem:[%s11 + $0x70] sm:$0xf]
          %v5288 = vld [vmem:[%s11 + $0x74] sm:$0xf]
          %v5289 = vld [vmem:[%s11 + $0x78] sm:$0xf]
          %v5290 = vld [vmem:[%s11 + $0x7c] sm:$0xf]
          %v5291 = vld [vmem:[%s12] sm:$0x1]
          %v5293 = vlaneseq
          %v5294 = vshrl.u32 %v5293, 7
          %v5295 = vsub.s32 0, %v5294
          %v5296 = vrot.slane %v5291, %v5295
          %v5330 = vunpack.c.l.b16 %v5259
          %v5331 = vunpack.c.l.b16 %v5260
          %v5332 = vunpack.c.l.b16 %v5261
          %v5333 = vunpack.c.l.b16 %v5262
          %v5334 = vunpack.c.l.b16 %v5263
          %v5335 = vunpack.c.l.b16 %v5264
          %v5336 = vunpack.c.l.b16 %v5265
          %v5337 = vunpack.c.l.b16 %v5266
          %v5338 = vunpack.c.l.b16 %v5267
          %v5339 = vunpack.c.l.b16 %v5268
          %v5340 = vunpack.c.l.b16 %v5269
          %v5341 = vunpack.c.l.b16 %v5270
          %v5342 = vunpack.c.l.b16 %v5271
          %v5343 = vunpack.c.l.b16 %v5272
          %v5344 = vunpack.c.l.b16 %v5273
          %v5345 = vunpack.c.l.b16 %v5274
          %v5346 = vunpack.c.l.b16 %v5275
          %v5347 = vunpack.c.l.b16 %v5276
          %v5348 = vunpack.c.l.b16 %v5277
          %v5349 = vunpack.c.l.b16 %v5278
          %v5350 = vunpack.c.l.b16 %v5279
          %v5351 = vunpack.c.l.b16 %v5280
          %v5352 = vunpack.c.l.b16 %v5281
          %v5353 = vunpack.c.l.b16 %v5282
          %v5354 = vunpack.c.l.b16 %v5283
          %v5355 = vunpack.c.l.b16 %v5284
          %v5356 = vunpack.c.l.b16 %v5285
          %v5357 = vunpack.c.l.b16 %v5286
          %v5358 = vunpack.c.l.b16 %v5287
          %v5359 = vunpack.c.l.b16 %v5288
          %v5360 = vunpack.c.l.b16 %v5289
          %v5361 = vunpack.c.l.b16 %v5290
          %v5362 = vpack.c.b16 %v5331, %v5330
          %v5363 = vpack.c.b16 %v5333, %v5332
          %v5364 = vpack.c.b16 %v5335, %v5334
          %v5365 = vpack.c.b16 %v5337, %v5336
          %v5366 = vpack.c.b16 %v5339, %v5338
          %v5367 = vpack.c.b16 %v5341, %v5340
          %v5368 = vpack.c.b16 %v5343, %v5342
          %v5369 = vpack.c.b16 %v5345, %v5344
          %v5370 = vpack.c.b16 %v5347, %v5346
          %v5371 = vpack.c.b16 %v5349, %v5348
          %v5372 = vpack.c.b16 %v5351, %v5350
          %v5373 = vpack.c.b16 %v5353, %v5352
          %v5374 = vpack.c.b16 %v5355, %v5354
          %v5375 = vpack.c.b16 %v5357, %v5356
          %v5376 = vpack.c.b16 %v5359, %v5358
          %v5377 = vpack.c.b16 %v5361, %v5360
          %5394 = vmatprep.subr.bf16.mxu0 0
          %5395 = vmatpush1.bf16.msra.mxu0 %v5369
          %5396 = vmatprep.subr.bf16.mxu0 0
          %5397 = vmatpush1.bf16.msra.mxu0 %v5368
          %5398 = vmatprep.subr.bf16.mxu0 0
          %5399 = vmatpush1.bf16.msra.mxu0 %v5367
          %5400 = vmatprep.subr.bf16.mxu0 0
          %5401 = vmatpush1.bf16.msra.mxu0 %v5366
          %5402 = vmatprep.subr.bf16.mxu0 0
          %5403 = vmatpush1.bf16.msra.mxu0 %v5365
          %5404 = vmatprep.subr.bf16.mxu0 0
          %5405 = vmatpush1.bf16.msra.mxu0 %v5364
          %5406 = vmatprep.subr.bf16.mxu0 0
          %5407 = vmatpush1.bf16.msra.mxu0 %v5363
          %5408 = vmatprep.subr.bf16.mxu0 0
          %5409 = vmatpush1.bf16.msra.mxu0 %v5362
          %5410 = vmatprep.subr.bf16.mxu0 0
          %5411 = vmatpush2.bf16.msra.mxu0 %v5377
          %5412 = vmatprep.subr.bf16.mxu0 0
          %5413 = vmatpush2.bf16.msra.mxu0 %v5376
          %5414 = vmatprep.subr.bf16.mxu0 0
          %5415 = vmatpush2.bf16.msra.mxu0 %v5375
          %5416 = vmatprep.subr.bf16.mxu0 0
          %5417 = vmatpush2.bf16.msra.mxu0 %v5374
          %5418 = vmatprep.subr.bf16.mxu0 0
          %5419 = vmatpush2.bf16.msra.mxu0 %v5373
          %5420 = vmatprep.subr.bf16.mxu0 0
          %5421 = vmatpush2.bf16.msra.mxu0 %v5372
          %5422 = vmatprep.subr.bf16.mxu0 0
          %5423 = vmatpush2.bf16.msra.mxu0 %v5371
          %5424 = vmatprep.subr.bf16.mxu0 0
          %5425 = vmatpush2.bf16.msra.mxu0 %v5370
          %5426 = vmatprep.mubr.bf16.mxu0 %v5258
          %5427 = vmatmul.mubr.bf16.gmra.mxu0 %v5257
          %v5428 = vpop.f32.mrf.mxu0
          %v5429 = vadd.f32 %v5296, %v5428
          %v5430 = vpop.f32.mrf.mxu0
          %v5431 = vpop.f32.mrf.mxu0
          %v5432 = vpop.f32.mrf.mxu0
          %5433 = vdwg.mxu0
          %v5434 = vld [vmem:[%s13] sm:$0x1]
          %v5436 = vlaneseq
          %v5437 = vshrl.u32 %v5436, 7
          %v5438 = vsub.s32 0, %v5437
          %v5439 = vrot.slane %v5434, %v5438
          %v5441 = vadd.f32 %v5429, %v5439
          %vm5442 = vcmask 123904
          %5443 = vst.msk [vmem:[%s573] sm:$0x3] %vm5442, %v5441
        $region137: #{tpu_custom_call.1} parent=112 // pred_fallthru
          _
        %s5444 = sand.u32 %s351, 1
        %s5445 = scalar_lea.sflag [#allocation6], %s5444
        %s5446 = sand.u32 %s351, 1
        %s5447 = smul.addr %s5446, 2
        %s5448 = scalar_lea.vmem [#allocation10], %s5447
        // Predicated region
        $region138: #{tpu_custom_call.1} parent=112 // pred_check
          %p5449 = pneg %p361
        $region139: #{tpu_custom_call.1} parent=112 // pred_check_branch
          %5451 = sbr.rel (%p5449) target = $region141
        $region140: #{tpu_custom_call.1} parent=112 // pred_region
          %s5453 = ssub.s32 32, 32
          %5454 = vsyncadd %s5445, %s5453
          %s5455 = smul.addr %s34, 32
          %s5456 = scalar_lea.hbm %s14, %s5455
          %s5458 = sshll.u32 %s5448, 4
          %s5459 = int_to_ptr.vmem [resolvable:$true] %s5458
          %5461 = dma.vmem_to_hbm [thread:$0]  %s5459, 32, %s5456, %s5445
        $region141: #{tpu_custom_call.1} parent=112 // pred_fallthru
          _
      $region113: #{tpu_custom_call.1} parent=5 // pred_fallthru
        _
      %p5462 = scmp.le.s32.totalorder 2, %s25
      // Predicated region
      $region142: #{tpu_custom_call.1} parent=5 // pred_check
        %p5463 = pneg %p5462
      $region143: #{tpu_custom_call.1} parent=5 // pred_check_branch
        %5465 = sbr.rel (%p5463) target = $region145
      $region144: #{tpu_custom_call.1} parent=5 // pred_region
        %s5466 = ssub.s32 %s25, 2
        // Predicated region
        $region146: #{tpu_custom_call.1} parent=144 // pred_check
          %p5467 = pneg %p367
        $region147: #{tpu_custom_call.1} parent=144 // pred_check_branch
          %5469 = sbr.rel (%p5467) target = $region149
        $region148: #{tpu_custom_call.1} parent=144 // pred_region
          %s5470 = sand.u32 %s352, 1
          %s5471 = scalar_lea.sflag [#allocation6], %s5470
          %s5472 = sand.u32 %s352, 1
          %s5473 = smul.addr %s5472, 2
          %s5474 = scalar_lea.vmem [#allocation10], %s5473
          %5475 = dma.done %s5471, 32
        $region149: #{tpu_custom_call.1} parent=144 // pred_fallthru
          _
      $region145: #{tpu_custom_call.1} parent=5 // pred_fallthru
        _
    $region6: #{tpu_custom_call.1} parent=1 // loop_footer
      %s29 = sadd.s32 1, %s25
    $region7: #{tpu_custom_call.1} parent=1 // loop_footer_branch
      %24 = sbr.rel target = $region3
    $region8: #{tpu_custom_call.1} parent=1 // loop_exit
      _
    %5476 = vsyncpa [#allocation5], 1
    %s5477 = scalar_lea.sflag [#allocation5], 1
    %5478 = vsyncpa %s5477, 1
    %5479 = vsyncpa [#allocation8], 1
    %5480 = vsyncpa [#allocation6], 1
    %s5481 = scalar_lea.sflag [#allocation6], 1
    %5482 = vsyncpa %s5481, 1

</llo_original>
